<compile_context>
chip_gen: v7x
topology: tpu7x:2x2x1
jax: 0.10.0
libtpu: 0.0.40
codegen_flags: <defaults>
</compile_context>

<pallas_src>
import jax
import jax.numpy as jnp
from jax.experimental import pallas as pl
from jax.experimental.pallas import tpu as pltpu


_LN_EPS = 1e-5                      # match torch.nn.LayerNorm default
_VMEM_LIMIT = 48 * 1024 * 1024      # safe headroom under v7x's 64 MiB physical VMEM


# ----------------------------------------------------------------------------
# small helpers used inside kernels
# ----------------------------------------------------------------------------
def _ln(x, g, b):
    # var = E[x^2] - E[x]^2 so the two lane reductions are independent (XLU overlap).
    mu = jnp.mean(x, axis=-1, keepdims=True)
    ms = jnp.mean(x * x, axis=-1, keepdims=True)
    var = jnp.maximum(ms - mu * mu, 0.0)
    return (x - mu) * jax.lax.rsqrt(var + _LN_EPS) * g + b


def _mm(a, w_ref, b_ref):
    """bf16 MXU matmul (f32 accumulate) + f32 bias.  Weights are stored bf16."""
    return (jnp.dot(a.astype(jnp.bfloat16), w_ref[...],
                    preferred_element_type=jnp.float32)
            + b_ref[...].astype(jnp.float32))


# ----------------------------------------------------------------------------
# fused encoder-stage kernel (patch embed + transformer block + folded decoder proj)
# ----------------------------------------------------------------------------
def _stage_kernel(col_ref, pw_ref, pb_ref, ln_ref,
                  wqkv_ref, bqkv_ref, wo_ref, bo_ref,
                  w1_ref, b1_ref, w2_ref, b2_ref,
                  dw_ref, db_ref,
                  feat_ref, dec_ref):
    lnp = ln_ref[...].astype(jnp.float32)          # (8, D) packed LN gammas/betas

    tok = _mm(col_ref[0], pw_ref, pb_ref)          # overlap patch embed (S, D), f32
    tok = _ln(tok, lnp[0], lnp[1])
    D = tok.shape[-1]

    # ---- efficient self-attention (fused QKV, softmax, out proj, residual) ----
    # TODO(synk): spatial-reduction (sr_ratio) of the reference MiT attention omitted.
    # TODO(synk): at realistic range-image S, replace whole-S attention with a
    #             flash-tiled kv loop (online softmax m/l/acc scratch) and add a
    #             token-row grid axis so each TensorCore gets several pipelined steps.
    t = _ln(tok, lnp[2], lnp[3])
    qkv = _mm(t, wqkv_ref, bqkv_ref)               # (S, 3D); 1/sqrt(D) folded into Q cols
    # D is a multiple of 128 -> these lane splits are (8,128)-tile aligned (no relayout).
    q = qkv[:, :D].astype(jnp.bfloat16)
    k = qkv[:, D:2 * D].astype(jnp.bfloat16)
    v = qkv[:, 2 * D:].astype(jnp.bfloat16)
    s = jnp.einsum("qd,kd->qk", q, k, preferred_element_type=jnp.float32)
    m = jnp.max(s, axis=-1, keepdims=True)
    p = jnp.exp(s - m)
    p = p * pl.reciprocal(jnp.sum(p, axis=-1, keepdims=True), approx=True)
    a = jnp.dot(p.astype(jnp.bfloat16), v, preferred_element_type=jnp.float32)
    tok = tok + _mm(a, wo_ref, bo_ref)

    # ---- Mix-FFN (fc1 -> GELU -> fc2, residual) ----
    # TODO(synk): Mix-FFN depthwise 3x3 conv between fc1/fc2 omitted (RangeEncoder
    #             source unavailable).
    t = _ln(tok, lnp[4], lnp[5])
    h = jax.nn.gelu(_mm(t, w1_ref, b1_ref))
    tok = tok + _mm(h, w2_ref, b2_ref)

    tok = _ln(tok, lnp[6], lnp[7])
    feat_ref[0] = tok.astype(feat_ref.dtype)
    # per-stage decoder linear with the matching fuse-conv slice pre-folded in
    # (tokens already resident in VMEM, no extra DMA).
    dec_ref[0] = _mm(tok, dw_ref, db_ref).astype(dec_ref.dtype)


def _run_stage(st, col, B, S, D, E):
    CK = col.shape[-1]
    Dh = st["w1"].shape[-1]
    feat, dec = pl.pallas_call(
        _stage_kernel,
        out_shape=(jax.ShapeDtypeStruct((B, S, D), jnp.bfloat16),
                   jax.ShapeDtypeStruct((B, S, E), jnp.bfloat16)),
        grid=(B,),
        in_specs=[
            pl.BlockSpec((1, S, CK), lambda b: (b, 0, 0)),   # im2col tokens (bf16)
            pl.BlockSpec((CK, D), lambda b: (0, 0)),         # patch_w (bf16)
            pl.BlockSpec((1, D), lambda b: (0, 0)),          # patch_b
            pl.BlockSpec((8, D), lambda b: (0, 0)),          # packed LN params
            pl.BlockSpec((D, 3 * D), lambda b: (0, 0)),      # wqkv (bf16, Q cols pre-scaled)
            pl.BlockSpec((1, 3 * D), lambda b: (0, 0)),      # bqkv
            pl.BlockSpec((D, D), lambda b: (0, 0)),          # wo (bf16)
            pl.BlockSpec((1, D), lambda b: (0, 0)),          # bo
            pl.BlockSpec((D, Dh), lambda b: (0, 0)),         # w1 (bf16)
            pl.BlockSpec((1, Dh), lambda b: (0, 0)),         # b1
            pl.BlockSpec((Dh, D), lambda b: (0, 0)),         # w2 (bf16)
            pl.BlockSpec((1, D), lambda b: (0, 0)),          # b2
            pl.BlockSpec((D, E), lambda b: (0, 0)),          # dec_w (fuse-folded, bf16)
            pl.BlockSpec((1, E), lambda b: (0, 0)),          # dec_b (fuse-folded)
        ],
        out_specs=(pl.BlockSpec((1, S, D), lambda b: (b, 0, 0)),
                   pl.BlockSpec((1, S, E), lambda b: (b, 0, 0))),
        compiler_params=pltpu.CompilerParams(
            dimension_semantics=("parallel",),
            vmem_limit_bytes=_VMEM_LIMIT),
    )(col, st["patch_w"], st["patch_b"], st["ln_pack"],
      st["wqkv"], st["bqkv"], st["wo"], st["bo"],
      st["w1"], st["b1"], st["w2"], st["b2"],
      st["dec_w"], st["dec_b"])
    return feat, dec


# ----------------------------------------------------------------------------
# fused 2-layer point-classification head kernel
# ----------------------------------------------------------------------------
def _mlp2_kernel(x_ref, w1_ref, b1_ref, w2_ref, b2_ref, o_ref):
    h = jnp.maximum(_mm(x_ref[...], w1_ref, b1_ref), 0.0)
    o_ref[...] = _mm(h, w2_ref, b2_ref).astype(o_ref.dtype)


def mlp2(x2d, w1, b1, w2, b2, *, row_cap=1024):
    M, K = x2d.shape
    H = w1.shape[-1]
    N = w2.shape[-1]
    if M <= row_cap:
        tm, Mp = M, M
    else:
        tm = row_cap
        Mp = pl.cdiv(M, tm) * tm
    if Mp != M:                       # pad instead of falling back to one huge block
        x2d = jnp.pad(x2d, ((0, Mp - M), (0, 0)))
    out = pl.pallas_call(
        _mlp2_kernel,
        out_shape=jax.ShapeDtypeStruct((Mp, N), jnp.bfloat16),
        grid=(Mp // tm,),
        in_specs=[
            pl.BlockSpec((tm, K), lambda i: (i, 0)),
            pl.BlockSpec((K, H), lambda i: (0, 0)),
            pl.BlockSpec((1, H), lambda i: (0, 0)),
            pl.BlockSpec((H, N), lambda i: (0, 0)),
            pl.BlockSpec((1, N), lambda i: (0, 0)),
        ],
        out_specs=pl.BlockSpec((tm, N), lambda i: (i, 0)),
        compiler_params=pltpu.CompilerParams(
            dimension_semantics=("parallel",),
            vmem_limit_bytes=_VMEM_LIMIT),
    )(x2d, w1, b1, w2, b2)
    return out[:M]


# ----------------------------------------------------------------------------
# JAX glue: im2col (NHWC), bilinear point sampling
# ----------------------------------------------------------------------------
def im2col_nhwc(x, ksize=3, stride=2, pad=1):
    # TODO(synk): at realistic image sizes express the patch embed as a strided
    # conv read directly by the kernel's index_map instead of materializing 9x cols.
    B, H, W, C = x.shape
    xp = jnp.pad(x, ((0, 0), (pad, pad), (pad, pad), (0, 0)))
    Ho = (H + 2 * pad - ksize) // stride + 1
    Wo = (W + 2 * pad - ksize) // stride + 1
    cols = []
    for di in range(ksize):
        for dj in range(ksize):
            cols.append(xp[:, di:di + stride * Ho:stride,
                           dj:dj + stride * Wo:stride, :])
    col = jnp.concatenate(cols, axis=-1)                 # (B, Ho, Wo, 9*C), bf16
    return col.reshape(B, Ho * Wo, ksize * ksize * C), Ho, Wo


def bilinear_sample(feat_nhwc, px, py):
    """Sample (B, H, W, C) at normalized coords px, py in [-1, 1] -> (B, N, C)."""
    # TODO(synk): align_corners semantics of the reference PointDecoder unknown;
    # using align_corners=True mapping.
    B, H, W, C = feat_nhwc.shape
    N = px.shape[1]
    fx = (px + 1.0) * 0.5 * (W - 1)
    fy = (py + 1.0) * 0.5 * (H - 1)
    x0 = jnp.floor(fx)
    y0 = jnp.floor(fy)
    wx1 = fx - x0
    wx0 = 1.0 - wx1
    wy1 = fy - y0
    wy0 = 1.0 - wy1
    x0c = jnp.clip(x0, 0, W - 1).astype(jnp.int32)
    x1c = jnp.clip(x0 + 1, 0, W - 1).astype(jnp.int32)
    y0c = jnp.clip(y0, 0, H - 1).astype(jnp.int32)
    y1c = jnp.clip(y0 + 1, 0, H - 1).astype(jnp.int32)
    feat = feat_nhwc.reshape(B, H * W, C)

    def gather(yi, xi):
        idx = yi * W + xi
        idx = jnp.broadcast_to(idx[:, :, None], (B, N, C))
        return jnp.take_along_axis(feat, idx, axis=1)    # (B, N, C)

    return (gather(y0c, x0c) * (wy0 * wx0)[..., None]
            + gather(y0c, x1c) * (wy0 * wx1)[..., None]
            + gather(y1c, x0c) * (wy1 * wx0)[..., None]
            + gather(y1c, x1c) * (wy1 * wx1)[..., None])


# ----------------------------------------------------------------------------
# Parameter init (deterministic, synthetic).  Matmul weights stored bf16.
# ----------------------------------------------------------------------------
def _dense(key, fan_in, fan_out):
    w = 0.02 * jax.random.normal(key, (fan_in, fan_out), jnp.float32)
    b = jnp.zeros((1, fan_out), jnp.float32)
    return w, b


def init_segformer(key, c_in=5, embed_dims=(128, 256), embedding_dim=128,
                   num_classes=20, point_dim=4, mlp_ratio=2):
    keys = iter(jax.random.split(key, 64))
    n_stage = len(embed_dims)
    E = embedding_dim
    cls_pad = max(128, ((num_classes + 127) // 128) * 128)   # lane-dense head output
    params = {"stages": [], "embedding_dim": E,
              "num_classes": num_classes, "cls_pad": cls_pad}

    # decoder 1x1 fuse conv generated up-front so it can be folded per stage
    # (concat order in the reference decoder is last stage first).
    fuse_w, fuse_b = _dense(next(keys), E * n_stage, E)

    prev = c_in
    for si, D in enumerate(embed_dims):
        st = {}
        pw, pb = _dense(next(keys), prev * 9, D)
        st["patch_w"], st["patch_b"] = pw.astype(jnp.bfloat16), pb

        # distinct per-LN gammas/betas; rows: [pe_g, pe_b, ln1_g, ln1_b, ln2_g, ln2_b, lnf_g, lnf_b]
        g = 1.0 + 0.02 * jax.random.normal(next(keys), (4, D), jnp.float32)
        b = 0.02 * jax.random.normal(next(keys), (4, D), jnp.float32)
        st["ln_pack"] = jnp.stack(
            [g[0], b[0], g[1], b[1], g[2], b[2], g[3], b[3]], axis=0)

        wqkv, bqkv = _dense(next(keys), D, 3 * D)
        scale = 1.0 / float(D) ** 0.5          # fold attention 1/sqrt(d) into Q columns
        wqkv = wqkv.at[:, :D].multiply(scale)
        bqkv = bqkv.at[:, :D].multiply(scale)
        st["wqkv"], st["bqkv"] = wqkv.astype(jnp.bfloat16), bqkv

        wo, bo = _dense(next(keys), D, D)
        st["wo"], st["bo"] = wo.astype(jnp.bfloat16), bo
        w1, b1 = _dense(next(keys), D, D * mlp_ratio)
        st["w1"], st["b1"] = w1.astype(jnp.bfloat16), b1
        w2, b2 = _dense(next(keys), D * mlp_ratio, D)
        st["w2"], st["b2"] = w2.astype(jnp.bfloat16), b2

        # per-stage decoder linear with its fuse-conv slice folded in
        dw, db = _dense(next(keys), D, E)
        fsl = fuse_w[(n_stage - 1 - si) * E:(n_stage - si) * E, :]
        st["dec_w"] = (dw @ fsl).astype(jnp.bfloat16)
        st["dec_b"] = db @ fsl
        params["stages"].append(st)
        prev = D

    params["fuse_b"] = fuse_b                     # applied once after summing stage maps

    hw1, hb1 = _dense(next(keys), E + point_dim, E)
    params["head_w1"], params["head_b1"] = hw1.astype(jnp.bfloat16), hb1
    hw2, hb2 = _dense(next(keys), E, num_classes)
    hw2 = jnp.pad(hw2, ((0, 0), (0, cls_pad - num_classes)))
    hb2 = jnp.pad(hb2, ((0, 0), (0, cls_pad - num_classes)))
    params["head_w2"], params["head_b2"] = hw2.astype(jnp.bfloat16), hb2
    return params


# ----------------------------------------------------------------------------
# Forward pass
# ----------------------------------------------------------------------------
def segformer_forward(params, x_nchw, px, py, points):
    B = x_nchw.shape[0]
    E = params["embedding_dim"]
    # NCHW -> NHWC once; activations travel HBM in bf16 from here on.
    cur = jnp.transpose(x_nchw, (0, 2, 3, 1)).astype(jnp.bfloat16)

    # ---------------- backbone (RangeEncoder, MiT-style) ----------------
    dec_maps = []
    sizes = []
    for st in params["stages"]:
        col, Ho, Wo = im2col_nhwc(cur, ksize=3, stride=2, pad=1)
        S = Ho * Wo
        D = st["wo"].shape[-1]
        feat, dec = _run_stage(st, col, B, S, D, E)   # one fused pallas_call per stage
        cur = feat.reshape(B, Ho, Wo, D)
        dec_maps.append(dec.reshape(B, Ho, Wo, E))
        sizes.append((Ho, Wo))

    # ---------------- decoder (PointDecoder, SegFormer-style) ----------------
    # fuse 1x1 conv is folded into dec_w inside the stage kernels; here we only
    # upsample, sum, then bias+ReLU as one fused XLA elementwise.
    Ht, Wt = sizes[0]
    acc = jnp.zeros((B, Ht, Wt, E), jnp.float32)
    for dm in dec_maps:
        dm = dm.astype(jnp.float32)
        if dm.shape[1:3] != (Ht, Wt):
            dm = jax.image.resize(dm, (B, Ht, Wt, E), method="bilinear")
        acc = acc + dm
    # TODO(synk): BatchNorm after the 1x1 fuse conv uses identity (fresh) stats; folds away here.
    fmap = jnp.maximum(acc + params["fuse_b"][0], 0.0)

    sampled = bilinear_sample(fmap, px, py)           # (B, Npts, E)
    Npts = points.shape[1]
    head_in = jnp.concatenate([sampled, points.astype(jnp.float32)], axis=-1)
    head_in = head_in.reshape(B * Npts, -1).astype(jnp.bfloat16)
    logits = mlp2(head_in, params["head_w1"], params["head_b1"],
                  params["head_w2"], params["head_b2"])
    logits = logits.reshape(B, Npts, params["cls_pad"])[:, :, :params["num_classes"]]
    return logits.astype(jnp.float32)


# ----------------------------------------------------------------------------
if __name__ == "__main__":
    key = jax.random.PRNGKey(0)
    k_param, k_x, k_px, k_py, k_pts = jax.random.split(key, 5)

    B, C_in, H, W = 2, 5, 16, 16
    Npts, point_dim, num_classes = 64, 4, 20

    params = init_segformer(k_param, c_in=C_in, embed_dims=(128, 256),
                            embedding_dim=128, num_classes=num_classes,
                            point_dim=point_dim)

    x = jax.random.normal(k_x, (B, C_in, H, W), jnp.float32)
    px = jax.random.uniform(k_px, (B, Npts), jnp.float32, -1.0, 1.0)
    py = jax.random.uniform(k_py, (B, Npts), jnp.float32, -1.0, 1.0)
    points = jax.random.normal(k_pts, (B, Npts, point_dim), jnp.float32)

    out = segformer_forward(params, x, px, py, points)
    out = jax.block_until_ready(out)
    assert out.shape == (B, Npts, num_classes)
    assert bool(jnp.all(jnp.isfinite(out)))
    print("KERNEL_OK")
</pallas_src>

<mosaic_0001>
module attributes {stable_mosaic.version = 11 : i64} {
  func.func @_stage_kernel(%arg0: i32, %arg1: memref<1x64x45xbf16, #tpu.memory_space<vmem>>, %arg2: memref<45x128xbf16, #tpu.memory_space<vmem>>, %arg3: memref<1x128xf32, #tpu.memory_space<vmem>>, %arg4: memref<8x128xf32, #tpu.memory_space<vmem>>, %arg5: memref<128x384xbf16, #tpu.memory_space<vmem>>, %arg6: memref<1x384xf32, #tpu.memory_space<vmem>>, %arg7: memref<128x128xbf16, #tpu.memory_space<vmem>>, %arg8: memref<1x128xf32, #tpu.memory_space<vmem>>, %arg9: memref<128x256xbf16, #tpu.memory_space<vmem>>, %arg10: memref<1x256xf32, #tpu.memory_space<vmem>>, %arg11: memref<256x128xbf16, #tpu.memory_space<vmem>>, %arg12: memref<1x128xf32, #tpu.memory_space<vmem>>, %arg13: memref<128x128xbf16, #tpu.memory_space<vmem>>, %arg14: memref<1x128xf32, #tpu.memory_space<vmem>>, %arg15: memref<1x64x128xbf16, #tpu.memory_space<vmem>>, %arg16: memref<1x64x128xbf16, #tpu.memory_space<vmem>>) attributes {dimension_semantics = [#tpu.dimension_semantics<parallel>], iteration_bounds = array<i64: 2>, scalar_prefetch = 0 : i64, scratch_operands = 0 : i64, tpu.core_type = #tpu.core_type<tc>, window_params = [{transform_indices = @transform_0, window_bounds = array<i64: 1, 64, 45>}, {pipeline_mode = #tpu.pipeline_mode<synchronous>, transform_indices = @transform_1, window_bounds = array<i64: 45, 128>}, {pipeline_mode = #tpu.pipeline_mode<synchronous>, transform_indices = @transform_2, window_bounds = array<i64: 1, 128>}, {pipeline_mode = #tpu.pipeline_mode<synchronous>, transform_indices = @transform_3, window_bounds = array<i64: 8, 128>}, {pipeline_mode = #tpu.pipeline_mode<synchronous>, transform_indices = @transform_4, window_bounds = array<i64: 128, 384>}, {pipeline_mode = #tpu.pipeline_mode<synchronous>, transform_indices = @transform_5, window_bounds = array<i64: 1, 384>}, {pipeline_mode = #tpu.pipeline_mode<synchronous>, transform_indices = @transform_6, window_bounds = array<i64: 128, 128>}, {pipeline_mode = #tpu.pipeline_mode<synchronous>, transform_indices = @transform_7, window_bounds = array<i64: 1, 128>}, {pipeline_mode = #tpu.pipeline_mode<synchronous>, transform_indices = @transform_8, window_bounds = array<i64: 128, 256>}, {pipeline_mode = #tpu.pipeline_mode<synchronous>, transform_indices = @transform_9, window_bounds = array<i64: 1, 256>}, {pipeline_mode = #tpu.pipeline_mode<synchronous>, transform_indices = @transform_10, window_bounds = array<i64: 256, 128>}, {pipeline_mode = #tpu.pipeline_mode<synchronous>, transform_indices = @transform_11, window_bounds = array<i64: 1, 128>}, {pipeline_mode = #tpu.pipeline_mode<synchronous>, transform_indices = @transform_12, window_bounds = array<i64: 128, 128>}, {pipeline_mode = #tpu.pipeline_mode<synchronous>, transform_indices = @transform_13, window_bounds = array<i64: 1, 128>}, {transform_indices = @transform_14, window_bounds = array<i64: 1, 64, 128>}, {transform_indices = @transform_15, window_bounds = array<i64: 1, 64, 128>}]} {
    %c0 = arith.constant 0 : index
    %c0_0 = arith.constant 0 : index
    %0 = vector.load %arg4[%c0, %c0_0] : memref<8x128xf32, #tpu.memory_space<vmem>>, vector<8x128xf32>
    %c0_1 = arith.constant 0 : index
    %c0_2 = arith.constant 0 : index
    %c0_3 = arith.constant 0 : index
    %1 = vector.load %arg1[%c0_1, %c0_2, %c0_3] : memref<1x64x45xbf16, #tpu.memory_space<vmem>>, vector<1x64x45xbf16>
    %2 = vector.shape_cast %1 : vector<1x64x45xbf16> to vector<64x45xbf16>
    %c0_4 = arith.constant 0 : index
    %c0_5 = arith.constant 0 : index
    %3 = vector.load %arg2[%c0_4, %c0_5] : memref<45x128xbf16, #tpu.memory_space<vmem>>, vector<45x128xbf16>
    %cst = arith.constant dense<0.000000e+00> : vector<64x128xf32>
    %4 = tpu.matmul %2, %3, %cst {dimension_numbers = #tpu.dot_dimension_numbers<[1], [0], [0], [1], [0, 0, 1, 1], [], []>} : vector<64x45xbf16>, vector<45x128xbf16>, vector<64x128xf32> -> vector<64x128xf32>
    %c0_6 = arith.constant 0 : index
    %c0_7 = arith.constant 0 : index
    %5 = vector.load %arg3[%c0_6, %c0_7] : memref<1x128xf32, #tpu.memory_space<vmem>>, vector<1x128xf32>
    %6 = vector.broadcast %5 : vector<1x128xf32> to vector<64x128xf32>
    %7 = arith.addf %4, %6 : vector<64x128xf32>
    %8 = vector.extract_strided_slice %0 {offsets = [0, 0], sizes = [1, 128], strides = [1, 1]} : vector<8x128xf32> to vector<1x128xf32>
    %9 = vector.shape_cast %8 : vector<1x128xf32> to vector<128xf32>
    %10 = vector.extract_strided_slice %0 {offsets = [1, 0], sizes = [1, 128], strides = [1, 1]} : vector<8x128xf32> to vector<1x128xf32>
    %11 = vector.shape_cast %10 : vector<1x128xf32> to vector<128xf32>
    %cst_8 = arith.constant dense<0.000000e+00> : vector<64xf32>
    %12 = vector.multi_reduction <add>, %7, %cst_8 [1] : vector<64x128xf32> to vector<64xf32>
    %13 = vector.shape_cast %12 : vector<64xf32> to vector<64x1xf32>
    %cst_9 = arith.constant 1.280000e+02 : f32
    %14 = vector.broadcast %cst_9 : f32 to vector<64x1xf32>
    %15 = arith.divf %13, %14 : vector<64x1xf32>
    %16 = arith.mulf %7, %7 : vector<64x128xf32>
    %cst_10 = arith.constant dense<0.000000e+00> : vector<64xf32>
    %17 = vector.multi_reduction <add>, %16, %cst_10 [1] : vector<64x128xf32> to vector<64xf32>
    %18 = vector.shape_cast %17 : vector<64xf32> to vector<64x1xf32>
    %cst_11 = arith.constant 1.280000e+02 : f32
    %19 = vector.broadcast %cst_11 : f32 to vector<64x1xf32>
    %20 = arith.divf %18, %19 : vector<64x1xf32>
    %21 = arith.mulf %15, %15 : vector<64x1xf32>
    %22 = arith.subf %20, %21 : vector<64x1xf32>
    %cst_12 = arith.constant 0.000000e+00 : f32
    %23 = vector.broadcast %cst_12 : f32 to vector<64x1xf32>
    %24 = arith.maximumf %22, %23 : vector<64x1xf32>
    %25 = vector.broadcast %15 : vector<64x1xf32> to vector<64x128xf32>
    %26 = arith.subf %7, %25 : vector<64x128xf32>
    %cst_13 = arith.constant 9.99999974E-6 : f32
    %27 = vector.broadcast %cst_13 : f32 to vector<64x1xf32>
    %28 = arith.addf %24, %27 : vector<64x1xf32>
    %29 = math.rsqrt %28 : vector<64x1xf32>
    %30 = vector.broadcast %29 : vector<64x1xf32> to vector<64x128xf32>
    %31 = arith.mulf %26, %30 : vector<64x128xf32>
    %32 = vector.shape_cast %9 : vector<128xf32> to vector<1x128xf32>
    %33 = vector.broadcast %32 : vector<1x128xf32> to vector<64x128xf32>
    %34 = arith.mulf %31, %33 : vector<64x128xf32>
    %35 = vector.shape_cast %11 : vector<128xf32> to vector<1x128xf32>
    %36 = vector.broadcast %35 : vector<1x128xf32> to vector<64x128xf32>
    %37 = arith.addf %34, %36 : vector<64x128xf32>
    %38 = vector.extract_strided_slice %0 {offsets = [2, 0], sizes = [1, 128], strides = [1, 1]} : vector<8x128xf32> to vector<1x128xf32>
    %39 = vector.shape_cast %38 : vector<1x128xf32> to vector<128xf32>
    %40 = vector.extract_strided_slice %0 {offsets = [3, 0], sizes = [1, 128], strides = [1, 1]} : vector<8x128xf32> to vector<1x128xf32>
    %41 = vector.shape_cast %40 : vector<1x128xf32> to vector<128xf32>
    %cst_14 = arith.constant dense<0.000000e+00> : vector<64xf32>
    %42 = vector.multi_reduction <add>, %37, %cst_14 [1] : vector<64x128xf32> to vector<64xf32>
    %43 = vector.shape_cast %42 : vector<64xf32> to vector<64x1xf32>
    %cst_15 = arith.constant 1.280000e+02 : f32
    %44 = vector.broadcast %cst_15 : f32 to vector<64x1xf32>
    %45 = arith.divf %43, %44 : vector<64x1xf32>
    %46 = arith.mulf %37, %37 : vector<64x128xf32>
    %cst_16 = arith.constant dense<0.000000e+00> : vector<64xf32>
    %47 = vector.multi_reduction <add>, %46, %cst_16 [1] : vector<64x128xf32> to vector<64xf32>
    %48 = vector.shape_cast %47 : vector<64xf32> to vector<64x1xf32>
    %cst_17 = arith.constant 1.280000e+02 : f32
    %49 = vector.broadcast %cst_17 : f32 to vector<64x1xf32>
    %50 = arith.divf %48, %49 : vector<64x1xf32>
    %51 = arith.mulf %45, %45 : vector<64x1xf32>
    %52 = arith.subf %50, %51 : vector<64x1xf32>
    %cst_18 = arith.constant 0.000000e+00 : f32
    %53 = vector.broadcast %cst_18 : f32 to vector<64x1xf32>
    %54 = arith.maximumf %52, %53 : vector<64x1xf32>
    %55 = vector.broadcast %45 : vector<64x1xf32> to vector<64x128xf32>
    %56 = arith.subf %37, %55 : vector<64x128xf32>
    %cst_19 = arith.constant 9.99999974E-6 : f32
    %57 = vector.broadcast %cst_19 : f32 to vector<64x1xf32>
    %58 = arith.addf %54, %57 : vector<64x1xf32>
    %59 = math.rsqrt %58 : vector<64x1xf32>
    %60 = vector.broadcast %59 : vector<64x1xf32> to vector<64x128xf32>
    %61 = arith.mulf %56, %60 : vector<64x128xf32>
    %62 = vector.shape_cast %39 : vector<128xf32> to vector<1x128xf32>
    %63 = vector.broadcast %62 : vector<1x128xf32> to vector<64x128xf32>
    %64 = arith.mulf %61, %63 : vector<64x128xf32>
    %65 = vector.shape_cast %41 : vector<128xf32> to vector<1x128xf32>
    %66 = vector.broadcast %65 : vector<1x128xf32> to vector<64x128xf32>
    %67 = arith.addf %64, %66 : vector<64x128xf32>
    %68 = arith.truncf %67 : vector<64x128xf32> to vector<64x128xbf16>
    %c0_20 = arith.constant 0 : index
    %c0_21 = arith.constant 0 : index
    %69 = vector.load %arg5[%c0_20, %c0_21] : memref<128x384xbf16, #tpu.memory_space<vmem>>, vector<128x384xbf16>
    %cst_22 = arith.constant dense<0.000000e+00> : vector<64x384xf32>
    %70 = tpu.matmul %68, %69, %cst_22 {dimension_numbers = #tpu.dot_dimension_numbers<[1], [0], [0], [1], [0, 0, 1, 1], [], []>} : vector<64x128xbf16>, vector<128x384xbf16>, vector<64x384xf32> -> vector<64x384xf32>
    %c0_23 = arith.constant 0 : index
    %c0_24 = arith.constant 0 : index
    %71 = vector.load %arg6[%c0_23, %c0_24] : memref<1x384xf32, #tpu.memory_space<vmem>>, vector<1x384xf32>
    %72 = vector.broadcast %71 : vector<1x384xf32> to vector<64x384xf32>
    %73 = arith.addf %70, %72 : vector<64x384xf32>
    %74 = vector.extract_strided_slice %73 {offsets = [0, 0], sizes = [64, 128], strides = [1, 1]} : vector<64x384xf32> to vector<64x128xf32>
    %75 = arith.truncf %74 : vector<64x128xf32> to vector<64x128xbf16>
    %76 = vector.extract_strided_slice %73 {offsets = [0, 128], sizes = [64, 128], strides = [1, 1]} : vector<64x384xf32> to vector<64x128xf32>
    %77 = arith.truncf %76 : vector<64x128xf32> to vector<64x128xbf16>
    %78 = vector.extract_strided_slice %73 {offsets = [0, 256], sizes = [64, 128], strides = [1, 1]} : vector<64x384xf32> to vector<64x128xf32>
    %79 = arith.truncf %78 : vector<64x128xf32> to vector<64x128xbf16>
    "tpu.trace_start"() <{level = 10 : i32, message = "qd,kd->qk"}> : () -> ()
    %cst_25 = arith.constant dense<0.000000e+00> : vector<64x64xf32>
    %80 = tpu.matmul %75, %77, %cst_25 {dimension_numbers = #tpu.dot_dimension_numbers<[1], [1], [0], [0], [0, 0, 1, 0], [], []>} : vector<64x128xbf16>, vector<64x128xbf16>, vector<64x64xf32> -> vector<64x64xf32>
    "tpu.trace_stop"() : () -> ()
    %cst_26 = arith.constant dense<0xFF800000> : vector<64xf32>
    %81 = vector.multi_reduction <maximumf>, %80, %cst_26 [1] : vector<64x64xf32> to vector<64xf32>
    %82 = vector.shape_cast %81 : vector<64xf32> to vector<64x1xf32>
    %83 = vector.broadcast %82 : vector<64x1xf32> to vector<64x64xf32>
    %84 = arith.subf %80, %83 : vector<64x64xf32>
    %85 = math.exp %84 : vector<64x64xf32>
    %cst_27 = arith.constant dense<0.000000e+00> : vector<64xf32>
    %86 = vector.multi_reduction <add>, %85, %cst_27 [1] : vector<64x64xf32> to vector<64xf32>
    %87 = vector.shape_cast %86 : vector<64xf32> to vector<64x1xf32>
    %88 = tpu.reciprocal %87 {approx = true} : vector<64x1xf32> -> vector<64x1xf32>
    %89 = vector.broadcast %88 : vector<64x1xf32> to vector<64x64xf32>
    %90 = arith.mulf %85, %89 : vector<64x64xf32>
    %91 = arith.truncf %90 : vector<64x64xf32> to vector<64x64xbf16>
    %cst_28 = arith.constant dense<0.000000e+00> : vector<64x128xf32>
    %92 = tpu.matmul %91, %79, %cst_28 {dimension_numbers = #tpu.dot_dimension_numbers<[1], [0], [0], [1], [0, 0, 1, 1], [], []>} : vector<64x64xbf16>, vector<64x128xbf16>, vector<64x128xf32> -> vector<64x128xf32>
    %93 = arith.truncf %92 : vector<64x128xf32> to vector<64x128xbf16>
    %c0_29 = arith.constant 0 : index
    %c0_30 = arith.constant 0 : index
    %94 = vector.load %arg7[%c0_29, %c0_30] : memref<128x128xbf16, #tpu.memory_space<vmem>>, vector<128x128xbf16>
    %cst_31 = arith.constant dense<0.000000e+00> : vector<64x128xf32>
    %95 = tpu.matmul %93, %94, %cst_31 {dimension_numbers = #tpu.dot_dimension_numbers<[1], [0], [0], [1], [0, 0, 1, 1], [], []>} : vector<64x128xbf16>, vector<128x128xbf16>, vector<64x128xf32> -> vector<64x128xf32>
    %c0_32 = arith.constant 0 : index
    %c0_33 = arith.constant 0 : index
    %96 = vector.load %arg8[%c0_32, %c0_33] : memref<1x128xf32, #tpu.memory_space<vmem>>, vector<1x128xf32>
    %97 = vector.broadcast %96 : vector<1x128xf32> to vector<64x128xf32>
    %98 = arith.addf %95, %97 : vector<64x128xf32>
    %99 = arith.addf %37, %98 : vector<64x128xf32>
    %100 = vector.extract_strided_slice %0 {offsets = [4, 0], sizes = [1, 128], strides = [1, 1]} : vector<8x128xf32> to vector<1x128xf32>
    %101 = vector.shape_cast %100 : vector<1x128xf32> to vector<128xf32>
    %102 = vector.extract_strided_slice %0 {offsets = [5, 0], sizes = [1, 128], strides = [1, 1]} : vector<8x128xf32> to vector<1x128xf32>
    %103 = vector.shape_cast %102 : vector<1x128xf32> to vector<128xf32>
    %cst_34 = arith.constant dense<0.000000e+00> : vector<64xf32>
    %104 = vector.multi_reduction <add>, %99, %cst_34 [1] : vector<64x128xf32> to vector<64xf32>
    %105 = vector.shape_cast %104 : vector<64xf32> to vector<64x1xf32>
    %cst_35 = arith.constant 1.280000e+02 : f32
    %106 = vector.broadcast %cst_35 : f32 to vector<64x1xf32>
    %107 = arith.divf %105, %106 : vector<64x1xf32>
    %108 = arith.mulf %99, %99 : vector<64x128xf32>
    %cst_36 = arith.constant dense<0.000000e+00> : vector<64xf32>
    %109 = vector.multi_reduction <add>, %108, %cst_36 [1] : vector<64x128xf32> to vector<64xf32>
    %110 = vector.shape_cast %109 : vector<64xf32> to vector<64x1xf32>
    %cst_37 = arith.constant 1.280000e+02 : f32
    %111 = vector.broadcast %cst_37 : f32 to vector<64x1xf32>
    %112 = arith.divf %110, %111 : vector<64x1xf32>
    %113 = arith.mulf %107, %107 : vector<64x1xf32>
    %114 = arith.subf %112, %113 : vector<64x1xf32>
    %cst_38 = arith.constant 0.000000e+00 : f32
    %115 = vector.broadcast %cst_38 : f32 to vector<64x1xf32>
    %116 = arith.maximumf %114, %115 : vector<64x1xf32>
    %117 = vector.broadcast %107 : vector<64x1xf32> to vector<64x128xf32>
    %118 = arith.subf %99, %117 : vector<64x128xf32>
    %cst_39 = arith.constant 9.99999974E-6 : f32
    %119 = vector.broadcast %cst_39 : f32 to vector<64x1xf32>
    %120 = arith.addf %116, %119 : vector<64x1xf32>
    %121 = math.rsqrt %120 : vector<64x1xf32>
    %122 = vector.broadcast %121 : vector<64x1xf32> to vector<64x128xf32>
    %123 = arith.mulf %118, %122 : vector<64x128xf32>
    %124 = vector.shape_cast %101 : vector<128xf32> to vector<1x128xf32>
    %125 = vector.broadcast %124 : vector<1x128xf32> to vector<64x128xf32>
    %126 = arith.mulf %123, %125 : vector<64x128xf32>
    %127 = vector.shape_cast %103 : vector<128xf32> to vector<1x128xf32>
    %128 = vector.broadcast %127 : vector<1x128xf32> to vector<64x128xf32>
    %129 = arith.addf %126, %128 : vector<64x128xf32>
    %130 = arith.truncf %129 : vector<64x128xf32> to vector<64x128xbf16>
    %c0_40 = arith.constant 0 : index
    %c0_41 = arith.constant 0 : index
    %131 = vector.load %arg9[%c0_40, %c0_41] : memref<128x256xbf16, #tpu.memory_space<vmem>>, vector<128x256xbf16>
    %cst_42 = arith.constant dense<0.000000e+00> : vector<64x256xf32>
    %132 = tpu.matmul %130, %131, %cst_42 {dimension_numbers = #tpu.dot_dimension_numbers<[1], [0], [0], [1], [0, 0, 1, 1], [], []>} : vector<64x128xbf16>, vector<128x256xbf16>, vector<64x256xf32> -> vector<64x256xf32>
    %c0_43 = arith.constant 0 : index
    %c0_44 = arith.constant 0 : index
    %133 = vector.load %arg10[%c0_43, %c0_44] : memref<1x256xf32, #tpu.memory_space<vmem>>, vector<1x256xf32>
    %134 = vector.broadcast %133 : vector<1x256xf32> to vector<64x256xf32>
    %135 = arith.addf %132, %134 : vector<64x256xf32>
    %136 = arith.mulf %135, %135 : vector<64x256xf32>
    %137 = arith.mulf %135, %136 : vector<64x256xf32>
    %cst_45 = arith.constant 4.471500e-02 : f32
    %138 = vector.broadcast %cst_45 : f32 to vector<64x256xf32>
    %139 = arith.mulf %138, %137 : vector<64x256xf32>
    %140 = arith.addf %135, %139 : vector<64x256xf32>
    %cst_46 = arith.constant 0.797884583 : f32
    %141 = vector.broadcast %cst_46 : f32 to vector<64x256xf32>
    %142 = arith.mulf %141, %140 : vector<64x256xf32>
    %143 = math.tanh %142 : vector<64x256xf32>
    %cst_47 = arith.constant 1.000000e+00 : f32
    %144 = vector.broadcast %cst_47 : f32 to vector<64x256xf32>
    %145 = arith.addf %144, %143 : vector<64x256xf32>
    %cst_48 = arith.constant 5.000000e-01 : f32
    %146 = vector.broadcast %cst_48 : f32 to vector<64x256xf32>
    %147 = arith.mulf %146, %145 : vector<64x256xf32>
    %148 = arith.mulf %135, %147 : vector<64x256xf32>
    %149 = arith.truncf %148 : vector<64x256xf32> to vector<64x256xbf16>
    %c0_49 = arith.constant 0 : index
    %c0_50 = arith.constant 0 : index
    %150 = vector.load %arg11[%c0_49, %c0_50] : memref<256x128xbf16, #tpu.memory_space<vmem>>, vector<256x128xbf16>
    %cst_51 = arith.constant dense<0.000000e+00> : vector<64x128xf32>
    %151 = tpu.matmul %149, %150, %cst_51 {dimension_numbers = #tpu.dot_dimension_numbers<[1], [0], [0], [1], [0, 0, 1, 1], [], []>} : vector<64x256xbf16>, vector<256x128xbf16>, vector<64x128xf32> -> vector<64x128xf32>
    %c0_52 = arith.constant 0 : index
    %c0_53 = arith.constant 0 : index
    %152 = vector.load %arg12[%c0_52, %c0_53] : memref<1x128xf32, #tpu.memory_space<vmem>>, vector<1x128xf32>
    %153 = vector.broadcast %152 : vector<1x128xf32> to vector<64x128xf32>
    %154 = arith.addf %151, %153 : vector<64x128xf32>
    %155 = arith.addf %99, %154 : vector<64x128xf32>
    %156 = vector.extract_strided_slice %0 {offsets = [6, 0], sizes = [1, 128], strides = [1, 1]} : vector<8x128xf32> to vector<1x128xf32>
    %157 = vector.shape_cast %156 : vector<1x128xf32> to vector<128xf32>
    %158 = vector.extract_strided_slice %0 {offsets = [7, 0], sizes = [1, 128], strides = [1, 1]} : vector<8x128xf32> to vector<1x128xf32>
    %159 = vector.shape_cast %158 : vector<1x128xf32> to vector<128xf32>
    %cst_54 = arith.constant dense<0.000000e+00> : vector<64xf32>
    %160 = vector.multi_reduction <add>, %155, %cst_54 [1] : vector<64x128xf32> to vector<64xf32>
    %161 = vector.shape_cast %160 : vector<64xf32> to vector<64x1xf32>
    %cst_55 = arith.constant 1.280000e+02 : f32
    %162 = vector.broadcast %cst_55 : f32 to vector<64x1xf32>
    %163 = arith.divf %161, %162 : vector<64x1xf32>
    %164 = arith.mulf %155, %155 : vector<64x128xf32>
    %cst_56 = arith.constant dense<0.000000e+00> : vector<64xf32>
    %165 = vector.multi_reduction <add>, %164, %cst_56 [1] : vector<64x128xf32> to vector<64xf32>
    %166 = vector.shape_cast %165 : vector<64xf32> to vector<64x1xf32>
    %cst_57 = arith.constant 1.280000e+02 : f32
    %167 = vector.broadcast %cst_57 : f32 to vector<64x1xf32>
    %168 = arith.divf %166, %167 : vector<64x1xf32>
    %169 = arith.mulf %163, %163 : vector<64x1xf32>
    %170 = arith.subf %168, %169 : vector<64x1xf32>
    %cst_58 = arith.constant 0.000000e+00 : f32
    %171 = vector.broadcast %cst_58 : f32 to vector<64x1xf32>
    %172 = arith.maximumf %170, %171 : vector<64x1xf32>
    %173 = vector.broadcast %163 : vector<64x1xf32> to vector<64x128xf32>
    %174 = arith.subf %155, %173 : vector<64x128xf32>
    %cst_59 = arith.constant 9.99999974E-6 : f32
    %175 = vector.broadcast %cst_59 : f32 to vector<64x1xf32>
    %176 = arith.addf %172, %175 : vector<64x1xf32>
    %177 = math.rsqrt %176 : vector<64x1xf32>
    %178 = vector.broadcast %177 : vector<64x1xf32> to vector<64x128xf32>
    %179 = arith.mulf %174, %178 : vector<64x128xf32>
    %180 = vector.shape_cast %157 : vector<128xf32> to vector<1x128xf32>
    %181 = vector.broadcast %180 : vector<1x128xf32> to vector<64x128xf32>
    %182 = arith.mulf %179, %181 : vector<64x128xf32>
    %183 = vector.shape_cast %159 : vector<128xf32> to vector<1x128xf32>
    %184 = vector.broadcast %183 : vector<1x128xf32> to vector<64x128xf32>
    %185 = arith.addf %182, %184 : vector<64x128xf32>
    %186 = arith.truncf %185 : vector<64x128xf32> to vector<64x128xbf16>
    %c0_60 = arith.constant 0 : index
    %c0_61 = arith.constant 0 : index
    %c0_62 = arith.constant 0 : index
    %187 = vector.load %arg15[%c0_60, %c0_61, %c0_62] : memref<1x64x128xbf16, #tpu.memory_space<vmem>>, vector<1x64x128xbf16>
    %188 = vector.shape_cast %187 : vector<1x64x128xbf16> to vector<64x128xbf16>
    %189 = vector.shape_cast %186 : vector<64x128xbf16> to vector<1x64x128xbf16>
    tpu.vector_store %arg15[%c0_60, %c0_61, %c0_62], %189 {strides = array<i32>} : memref<1x64x128xbf16, #tpu.memory_space<vmem>>, vector<1x64x128xbf16>,
    %190 = arith.truncf %185 : vector<64x128xf32> to vector<64x128xbf16>
    %c0_63 = arith.constant 0 : index
    %c0_64 = arith.constant 0 : index
    %191 = vector.load %arg13[%c0_63, %c0_64] : memref<128x128xbf16, #tpu.memory_space<vmem>>, vector<128x128xbf16>
    %cst_65 = arith.constant dense<0.000000e+00> : vector<64x128xf32>
    %192 = tpu.matmul %190, %191, %cst_65 {dimension_numbers = #tpu.dot_dimension_numbers<[1], [0], [0], [1], [0, 0, 1, 1], [], []>} : vector<64x128xbf16>, vector<128x128xbf16>, vector<64x128xf32> -> vector<64x128xf32>
    %c0_66 = arith.constant 0 : index
    %c0_67 = arith.constant 0 : index
    %193 = vector.load %arg14[%c0_66, %c0_67] : memref<1x128xf32, #tpu.memory_space<vmem>>, vector<1x128xf32>
    %194 = vector.broadcast %193 : vector<1x128xf32> to vector<64x128xf32>
    %195 = arith.addf %192, %194 : vector<64x128xf32>
    %196 = arith.truncf %195 : vector<64x128xf32> to vector<64x128xbf16>
    %c0_68 = arith.constant 0 : index
    %c0_69 = arith.constant 0 : index
    %c0_70 = arith.constant 0 : index
    %197 = vector.load %arg16[%c0_68, %c0_69, %c0_70] : memref<1x64x128xbf16, #tpu.memory_space<vmem>>, vector<1x64x128xbf16>
    %198 = vector.shape_cast %197 : vector<1x64x128xbf16> to vector<64x128xbf16>
    %199 = vector.shape_cast %196 : vector<64x128xbf16> to vector<1x64x128xbf16>
    tpu.vector_store %arg16[%c0_68, %c0_69, %c0_70], %199 {strides = array<i32>} : memref<1x64x128xbf16, #tpu.memory_space<vmem>>, vector<1x64x128xbf16>,
    return
  }
  func.func @transform_0(%arg0: i32) -> (i32, i32, i32) {
    %c0_i32 = arith.constant 0 : i32
    %c0_i32_0 = arith.constant 0 : i32
    %c0_i32_1 = arith.constant 0 : i32
    return %arg0, %c0_i32, %c0_i32_0 : i32, i32, i32
  }
  func.func @transform_1(%arg0: i32) -> (i32, i32) {
    %c0_i32 = arith.constant 0 : i32
    %c0_i32_0 = arith.constant 0 : i32
    %c0_i32_1 = arith.constant 0 : i32
    return %c0_i32, %c0_i32_0 : i32, i32
  }
  func.func @transform_2(%arg0: i32) -> (i32, i32) {
    %c0_i32 = arith.constant 0 : i32
    %c0_i32_0 = arith.constant 0 : i32
    %c0_i32_1 = arith.constant 0 : i32
    return %c0_i32, %c0_i32_0 : i32, i32
  }
  func.func @transform_3(%arg0: i32) -> (i32, i32) {
    %c0_i32 = arith.constant 0 : i32
    %c0_i32_0 = arith.constant 0 : i32
    %c0_i32_1 = arith.constant 0 : i32
    return %c0_i32, %c0_i32_0 : i32, i32
  }
  func.func @transform_4(%arg0: i32) -> (i32, i32) {
    %c0_i32 = arith.constant 0 : i32
    %c0_i32_0 = arith.constant 0 : i32
    %c0_i32_1 = arith.constant 0 : i32
    return %c0_i32, %c0_i32_0 : i32, i32
  }
  func.func @transform_5(%arg0: i32) -> (i32, i32) {
    %c0_i32 = arith.constant 0 : i32
    %c0_i32_0 = arith.constant 0 : i32
    %c0_i32_1 = arith.constant 0 : i32
    return %c0_i32, %c0_i32_0 : i32, i32
  }
  func.func @transform_6(%arg0: i32) -> (i32, i32) {
    %c0_i32 = arith.constant 0 : i32
    %c0_i32_0 = arith.constant 0 : i32
    %c0_i32_1 = arith.constant 0 : i32
    return %c0_i32, %c0_i32_0 : i32, i32
  }
  func.func @transform_7(%arg0: i32) -> (i32, i32) {
    %c0_i32 = arith.constant 0 : i32
    %c0_i32_0 = arith.constant 0 : i32
    %c0_i32_1 = arith.constant 0 : i32
    return %c0_i32, %c0_i32_0 : i32, i32
  }
  func.func @transform_8(%arg0: i32) -> (i32, i32) {
    %c0_i32 = arith.constant 0 : i32
    %c0_i32_0 = arith.constant 0 : i32
    %c0_i32_1 = arith.constant 0 : i32
    return %c0_i32, %c0_i32_0 : i32, i32
  }
  func.func @transform_9(%arg0: i32) -> (i32, i32) {
    %c0_i32 = arith.constant 0 : i32
    %c0_i32_0 = arith.constant 0 : i32
    %c0_i32_1 = arith.constant 0 : i32
    return %c0_i32, %c0_i32_0 : i32, i32
  }
  func.func @transform_10(%arg0: i32) -> (i32, i32) {
    %c0_i32 = arith.constant 0 : i32
    %c0_i32_0 = arith.constant 0 : i32
    %c0_i32_1 = arith.constant 0 : i32
    return %c0_i32, %c0_i32_0 : i32, i32
  }
  func.func @transform_11(%arg0: i32) -> (i32, i32) {
    %c0_i32 = arith.constant 0 : i32
    %c0_i32_0 = arith.constant 0 : i32
    %c0_i32_1 = arith.constant 0 : i32
    return %c0_i32, %c0_i32_0 : i32, i32
  }
  func.func @transform_12(%arg0: i32) -> (i32, i32) {
    %c0_i32 = arith.constant 0 : i32
    %c0_i32_0 = arith.constant 0 : i32
    %c0_i32_1 = arith.constant 0 : i32
    return %c0_i32, %c0_i32_0 : i32, i32
  }
  func.func @transform_13(%arg0: i32) -> (i32, i32) {
    %c0_i32 = arith.constant 0 : i32
    %c0_i32_0 = arith.constant 0 : i32
    %c0_i32_1 = arith.constant 0 : i32
    return %c0_i32, %c0_i32_0 : i32, i32
  }
  func.func @transform_14(%arg0: i32) -> (i32, i32, i32) {
    %c0_i32 = arith.constant 0 : i32
    %c0_i32_0 = arith.constant 0 : i32
    %c0_i32_1 = arith.constant 0 : i32
    return %arg0, %c0_i32, %c0_i32_0 : i32, i32, i32
  }
  func.func @transform_15(%arg0: i32) -> (i32, i32, i32) {
    %c0_i32 = arith.constant 0 : i32
    %c0_i32_0 = arith.constant 0 : i32
    %c0_i32_1 = arith.constant 0 : i32
    return %arg0, %c0_i32, %c0_i32_0 : i32, i32, i32
  }
}

</mosaic_0001>

<llo_original>
// kernel: tpu_custom_call.1
$region0: #{tpu_custom_call.1}
  #allocation0 [shape = 'u32[]', space=smem, size = 0x4, offset = 0x4, fixed_abs, tag = 'smem constant byte address 0x4 - core index']
  #allocation1 [shape = 'u32[144,128]{1,0:T(1,128)}', space=vmem, size = 0x12000, scoped, tag = 'internal scratch']
  %s0 = inlined_call_operand.vmem [shape: bf16[2,64,45], index: 0, kind: input, shape index: {}]
  %s1 = inlined_call_operand.hbm [shape: bf16[45,128], index: 1, kind: input, shape index: {}]
  %s2 = inlined_call_operand.hbm [shape: f32[1,128], index: 2, kind: input, shape index: {}]
  %s3 = inlined_call_operand.vmem [shape: f32[8,128], index: 3, kind: input, shape index: {}]
  %s4 = inlined_call_operand.hbm [shape: bf16[128,384], index: 4, kind: input, shape index: {}]
  %s5 = inlined_call_operand.vmem [shape: f32[1,384], index: 5, kind: input, shape index: {}]
  %s6 = inlined_call_operand.hbm [shape: bf16[128,128], index: 6, kind: input, shape index: {}]
  %s7 = inlined_call_operand.hbm [shape: f32[1,128], index: 7, kind: input, shape index: {}]
  %s8 = inlined_call_operand.vmem [shape: bf16[128,256], index: 8, kind: input, shape index: {}]
  %s9 = inlined_call_operand.vmem [shape: f32[1,256], index: 9, kind: input, shape index: {}]
  %s10 = inlined_call_operand.hbm [shape: bf16[256,128], index: 10, kind: input, shape index: {}]
  %s11 = inlined_call_operand.vmem [shape: f32[1,128], index: 11, kind: input, shape index: {}]
  %s12 = inlined_call_operand.hbm [shape: bf16[128,128], index: 12, kind: input, shape index: {}]
  %s13 = inlined_call_operand.vmem [shape: f32[1,128], index: 13, kind: input, shape index: {}]
  %s14 = inlined_call_operand.hbm [shape: bf16[2,64,128], index: 14, kind: output, shape index: {0}]
  %s15 = inlined_call_operand.hbm [shape: bf16[2,64,128], index: 15, kind: output, shape index: {1}]
  %16 = xla_tuple %s14, %s15
  %s17 = sld [smem:[#allocation0]]
  $region125: #{tpu_custom_call.1} parent=0
    _
  %s19 = ssub.s32 1, %s17
  %s20 = scalar_select 0, %s19, %s17
  $region1: #{tpu_custom_call.1} parent=0
    #allocation2 [shape = 'u8[12288]{0}', space=vmem, size = 0x3000, scoped, tag = 'input window, operand 1, single buffered']
    #allocation3 [shape = 's32[2]{0}', space=sflag, size = 0x8, scoped, tag = 'scoped memory for tpu_custom_call.1']
    #allocation4 [shape = 's32[2]{0}', space=sflag, size = 0x8, scoped, tag = 'scoped memory for tpu_custom_call.1']
    #allocation5 [shape = 'u8[512]{0}', space=vmem, size = 0x400, scoped, tag = 'input window, operand 2, single buffered']
    #allocation6 [shape = 's32[1]{0}', space=sflag, size = 0x4, scoped, tag = 'scoped memory for tpu_custom_call.1']
    #allocation7 [shape = 'u8[98304]{0}', space=vmem, size = 0x18000, scoped, tag = 'input window, operand 4, single buffered']
    #allocation8 [shape = 'u8[32768]{0}', space=vmem, size = 0x8000, scoped, tag = 'input window, operand 6, single buffered']
    #allocation9 [shape = 's32[1]{0}', space=sflag, size = 0x4, scoped, tag = 'scoped memory for tpu_custom_call.1']
    #allocation10 [shape = 'u8[512]{0}', space=vmem, size = 0x400, scoped, tag = 'input window, operand 7, single buffered']
    #allocation11 [shape = 'u8[65536]{0}', space=vmem, size = 0x10000, scoped, tag = 'input window, operand 10, single buffered']
    #allocation12 [shape = 's32[1]{0}', space=sflag, size = 0x4, scoped, tag = 'scoped memory for tpu_custom_call.1']
    #allocation13 [shape = 'u8[32768]{0}', space=vmem, size = 0x8000, scoped, tag = 'input window, operand 12, single buffered']
    #allocation14 [shape = 'u8[32768]{0}', space=vmem, size = 0x8000, scoped, tag = 'output window, operand 0']
    #allocation15 [shape = 'u8[32768]{0}', space=vmem, size = 0x8000, scoped, tag = 'output window, operand 1']
    #allocation16 [shape = 's32[2]{0}', space=sflag, size = 0x8, scoped, tag = 'scoped memory for tpu_custom_call.1']
    %21 = vsyncpa [#allocation3], 0
    %22 = vsyncpa [#allocation6], 0
    %23 = vsyncpa [#allocation9], 0
    %24 = vsyncpa [#allocation12], 0
    %25 = vsyncpa [#allocation4], 0
    %s26 = scalar_lea.sflag [#allocation4], 1
    %27 = vsyncpa %s26, 0
    %28 = vsyncpa [#allocation16], 0
    %s29 = scalar_lea.sflag [#allocation16], 1
    %30 = vsyncpa %s29, 0
    loop: start=0, step=1, limit=4
    $region2: #{tpu_custom_call.1} parent=1 // loop_pre_header
      _
    $region3: #{tpu_custom_call.1} parent=1 // loop_header
      %s32 = sphi 0, %s36
      %p33 = scmp.ge.s32.totalorder %s32, 4
      %s42 = sphi 0, %s44
      %s45 = sphi 0, %s42
      %s46 = sphi 0, %s45
      %s62 = sphi 0, %s46
      %s66 = sphi 0, %s66
      %s68 = sphi 0, %s66
      %s69 = sphi 0, %s68
      %s83 = sphi 0, %s69
      %s87 = sphi 0, %s87
      %s89 = sphi 0, %s87
      %s90 = sphi 0, %s89
      %s104 = sphi 0, %s90
      %s108 = sphi 0, %s108
      %s110 = sphi 0, %s108
      %s111 = sphi 0, %s110
      %s125 = sphi 0, %s111
      %s129 = sphi 0, %s129
      %s131 = sphi 0, %s129
      %s132 = sphi 0, %s131
      %s146 = sphi 0, %s132
      %s150 = sphi 0, %s150
      %s152 = sphi 0, %s150
      %s153 = sphi 0, %s152
      %s167 = sphi 0, %s153
      %s171 = sphi 0, %s171
      %s173 = sphi 0, %s171
      %s174 = sphi 0, %s173
      %s188 = sphi 0, %s174
      %s192 = sphi 0, %s192
      %s194 = sphi 0, %s192
      %s195 = sphi 0, %s194
      %s209 = sphi 0, %s195
      %s213 = sphi 0, %s213
      %s215 = sphi 0, %s213
      %s216 = sphi 0, %s215
      %s230 = sphi 0, %s216
      %s234 = sphi 0, %s234
      %s236 = sphi 0, %s234
      %s237 = sphi 0, %s236
      %s251 = sphi 0, %s237
      %s255 = sphi 0, %s255
      %s257 = sphi 0, %s255
      %s258 = sphi 0, %s257
      %s272 = sphi 0, %s258
      %s276 = sphi 0, %s276
      %s278 = sphi 0, %s276
      %s279 = sphi 0, %s278
      %s293 = sphi 0, %s279
      %s297 = sphi 0, %s297
      %s299 = sphi 0, %s297
      %s300 = sphi 0, %s299
      %s314 = sphi 0, %s300
      %s318 = sphi 0, %s318
      %s320 = sphi 0, %s318
      %s321 = sphi 0, %s320
      %s335 = sphi 0, %s321
      %s341 = sphi 0, %s343
      %s344 = sphi 0, %s341
      %s345 = sphi 0, %s344
      %s361 = sphi 0, %s345
      %s367 = sphi 0, %s369
      %s370 = sphi 0, %s367
      %s371 = sphi 0, %s370
      %s387 = sphi 0, %s371
    $region4: #{tpu_custom_call.1} parent=1 // loop_header_branch
      %35 = sbr.rel (%p33) target = $region8
    $region5: #{tpu_custom_call.1} parent=1 // loop_body
      %s37 = ssub.s32 %s32, 1
      %s38 = ssub.s32 %s32, 2
      %s39 = sadd.s32 %s32, 1
      %s40 = ssub.s32 %s32, %s39
      %p41 = scmp.eq.s32.totalorder %s40, 0
      %s43 = sadd.s32 %s42, 1
      %s44 = scalar_select %p41, %s42, %s43
      %p47 = pneg %p41
      %p48 = scmp.eq.s32.totalorder %s32, 1
      %p49 = por %p47, %p48
      %p50 = scmp.ne.s32.totalorder %s42, %s45
      %p51 = scmp.eq.s32.totalorder %s32, 0
      %p52 = por %p50, %p51
      %p53 = scmp.ne.s32.totalorder %s42, %s45
      %p54 = scmp.eq.s32.totalorder %s37, 1
      %p55 = por %p53, %p54
      %p56 = scmp.ne.s32.totalorder %s45, %s46
      %p57 = scmp.eq.s32.totalorder %s37, 0
      %p58 = por %p56, %p57
      %p59 = scmp.ne.s32.totalorder %s45, %s46
      %p60 = scmp.eq.s32.totalorder %s38, 1
      %p61 = por %p59, %p60
      %p63 = scmp.ne.s32.totalorder %s46, %s62
      %p64 = scmp.eq.s32.totalorder %s38, 0
      %p65 = por %p63, %p64
      %s67 = sadd.s32 %s66, 1
      %p70 = scmp.eq.s32.totalorder %s32, 1
      %p71 = scmp.ne.s32.totalorder %s66, %s68
      %p72 = scmp.eq.s32.totalorder %s32, 0
      %p73 = por %p71, %p72
      %p74 = scmp.ne.s32.totalorder %s66, %s68
      %p75 = scmp.eq.s32.totalorder %s37, 1
      %p76 = por %p74, %p75
      %p77 = scmp.ne.s32.totalorder %s68, %s69
      %p78 = scmp.eq.s32.totalorder %s37, 0
      %p79 = por %p77, %p78
      %p80 = scmp.ne.s32.totalorder %s68, %s69
      %p81 = scmp.eq.s32.totalorder %s38, 1
      %p82 = por %p80, %p81
      %p84 = scmp.ne.s32.totalorder %s69, %s83
      %p85 = scmp.eq.s32.totalorder %s38, 0
      %p86 = por %p84, %p85
      %s88 = sadd.s32 %s87, 1
      %p91 = scmp.eq.s32.totalorder %s32, 1
      %p92 = scmp.ne.s32.totalorder %s87, %s89
      %p93 = scmp.eq.s32.totalorder %s32, 0
      %p94 = por %p92, %p93
      %p95 = scmp.ne.s32.totalorder %s87, %s89
      %p96 = scmp.eq.s32.totalorder %s37, 1
      %p97 = por %p95, %p96
      %p98 = scmp.ne.s32.totalorder %s89, %s90
      %p99 = scmp.eq.s32.totalorder %s37, 0
      %p100 = por %p98, %p99
      %p101 = scmp.ne.s32.totalorder %s89, %s90
      %p102 = scmp.eq.s32.totalorder %s38, 1
      %p103 = por %p101, %p102
      %p105 = scmp.ne.s32.totalorder %s90, %s104
      %p106 = scmp.eq.s32.totalorder %s38, 0
      %p107 = por %p105, %p106
      %s109 = sadd.s32 %s108, 1
      %p112 = scmp.eq.s32.totalorder %s32, 1
      %p113 = scmp.ne.s32.totalorder %s108, %s110
      %p114 = scmp.eq.s32.totalorder %s32, 0
      %p115 = por %p113, %p114
      %p116 = scmp.ne.s32.totalorder %s108, %s110
      %p117 = scmp.eq.s32.totalorder %s37, 1
      %p118 = por %p116, %p117
      %p119 = scmp.ne.s32.totalorder %s110, %s111
      %p120 = scmp.eq.s32.totalorder %s37, 0
      %p121 = por %p119, %p120
      %p122 = scmp.ne.s32.totalorder %s110, %s111
      %p123 = scmp.eq.s32.totalorder %s38, 1
      %p124 = por %p122, %p123
      %p126 = scmp.ne.s32.totalorder %s111, %s125
      %p127 = scmp.eq.s32.totalorder %s38, 0
      %p128 = por %p126, %p127
      %s130 = sadd.s32 %s129, 1
      %p133 = scmp.eq.s32.totalorder %s32, 1
      %p134 = scmp.ne.s32.totalorder %s129, %s131
      %p135 = scmp.eq.s32.totalorder %s32, 0
      %p136 = por %p134, %p135
      %p137 = scmp.ne.s32.totalorder %s129, %s131
      %p138 = scmp.eq.s32.totalorder %s37, 1
      %p139 = por %p137, %p138
      %p140 = scmp.ne.s32.totalorder %s131, %s132
      %p141 = scmp.eq.s32.totalorder %s37, 0
      %p142 = por %p140, %p141
      %p143 = scmp.ne.s32.totalorder %s131, %s132
      %p144 = scmp.eq.s32.totalorder %s38, 1
      %p145 = por %p143, %p144
      %p147 = scmp.ne.s32.totalorder %s132, %s146
      %p148 = scmp.eq.s32.totalorder %s38, 0
      %p149 = por %p147, %p148
      %s151 = sadd.s32 %s150, 1
      %p154 = scmp.eq.s32.totalorder %s32, 1
      %p155 = scmp.ne.s32.totalorder %s150, %s152
      %p156 = scmp.eq.s32.totalorder %s32, 0
      %p157 = por %p155, %p156
      %p158 = scmp.ne.s32.totalorder %s150, %s152
      %p159 = scmp.eq.s32.totalorder %s37, 1
      %p160 = por %p158, %p159
      %p161 = scmp.ne.s32.totalorder %s152, %s153
      %p162 = scmp.eq.s32.totalorder %s37, 0
      %p163 = por %p161, %p162
      %p164 = scmp.ne.s32.totalorder %s152, %s153
      %p165 = scmp.eq.s32.totalorder %s38, 1
      %p166 = por %p164, %p165
      %p168 = scmp.ne.s32.totalorder %s153, %s167
      %p169 = scmp.eq.s32.totalorder %s38, 0
      %p170 = por %p168, %p169
      %s172 = sadd.s32 %s171, 1
      %p175 = scmp.eq.s32.totalorder %s32, 1
      %p176 = scmp.ne.s32.totalorder %s171, %s173
      %p177 = scmp.eq.s32.totalorder %s32, 0
      %p178 = por %p176, %p177
      %p179 = scmp.ne.s32.totalorder %s171, %s173
      %p180 = scmp.eq.s32.totalorder %s37, 1
      %p181 = por %p179, %p180
      %p182 = scmp.ne.s32.totalorder %s173, %s174
      %p183 = scmp.eq.s32.totalorder %s37, 0
      %p184 = por %p182, %p183
      %p185 = scmp.ne.s32.totalorder %s173, %s174
      %p186 = scmp.eq.s32.totalorder %s38, 1
      %p187 = por %p185, %p186
      %p189 = scmp.ne.s32.totalorder %s174, %s188
      %p190 = scmp.eq.s32.totalorder %s38, 0
      %p191 = por %p189, %p190
      %s193 = sadd.s32 %s192, 1
      %p196 = scmp.eq.s32.totalorder %s32, 1
      %p197 = scmp.ne.s32.totalorder %s192, %s194
      %p198 = scmp.eq.s32.totalorder %s32, 0
      %p199 = por %p197, %p198
      %p200 = scmp.ne.s32.totalorder %s192, %s194
      %p201 = scmp.eq.s32.totalorder %s37, 1
      %p202 = por %p200, %p201
      %p203 = scmp.ne.s32.totalorder %s194, %s195
      %p204 = scmp.eq.s32.totalorder %s37, 0
      %p205 = por %p203, %p204
      %p206 = scmp.ne.s32.totalorder %s194, %s195
      %p207 = scmp.eq.s32.totalorder %s38, 1
      %p208 = por %p206, %p207
      %p210 = scmp.ne.s32.totalorder %s195, %s209
      %p211 = scmp.eq.s32.totalorder %s38, 0
      %p212 = por %p210, %p211
      %s214 = sadd.s32 %s213, 1
      %p217 = scmp.eq.s32.totalorder %s32, 1
      %p218 = scmp.ne.s32.totalorder %s213, %s215
      %p219 = scmp.eq.s32.totalorder %s32, 0
      %p220 = por %p218, %p219
      %p221 = scmp.ne.s32.totalorder %s213, %s215
      %p222 = scmp.eq.s32.totalorder %s37, 1
      %p223 = por %p221, %p222
      %p224 = scmp.ne.s32.totalorder %s215, %s216
      %p225 = scmp.eq.s32.totalorder %s37, 0
      %p226 = por %p224, %p225
      %p227 = scmp.ne.s32.totalorder %s215, %s216
      %p228 = scmp.eq.s32.totalorder %s38, 1
      %p229 = por %p227, %p228
      %p231 = scmp.ne.s32.totalorder %s216, %s230
      %p232 = scmp.eq.s32.totalorder %s38, 0
      %p233 = por %p231, %p232
      %s235 = sadd.s32 %s234, 1
      %p238 = scmp.eq.s32.totalorder %s32, 1
      %p239 = scmp.ne.s32.totalorder %s234, %s236
      %p240 = scmp.eq.s32.totalorder %s32, 0
      %p241 = por %p239, %p240
      %p242 = scmp.ne.s32.totalorder %s234, %s236
      %p243 = scmp.eq.s32.totalorder %s37, 1
      %p244 = por %p242, %p243
      %p245 = scmp.ne.s32.totalorder %s236, %s237
      %p246 = scmp.eq.s32.totalorder %s37, 0
      %p247 = por %p245, %p246
      %p248 = scmp.ne.s32.totalorder %s236, %s237
      %p249 = scmp.eq.s32.totalorder %s38, 1
      %p250 = por %p248, %p249
      %p252 = scmp.ne.s32.totalorder %s237, %s251
      %p253 = scmp.eq.s32.totalorder %s38, 0
      %p254 = por %p252, %p253
      %s256 = sadd.s32 %s255, 1
      %p259 = scmp.eq.s32.totalorder %s32, 1
      %p260 = scmp.ne.s32.totalorder %s255, %s257
      %p261 = scmp.eq.s32.totalorder %s32, 0
      %p262 = por %p260, %p261
      %p263 = scmp.ne.s32.totalorder %s255, %s257
      %p264 = scmp.eq.s32.totalorder %s37, 1
      %p265 = por %p263, %p264
      %p266 = scmp.ne.s32.totalorder %s257, %s258
      %p267 = scmp.eq.s32.totalorder %s37, 0
      %p268 = por %p266, %p267
      %p269 = scmp.ne.s32.totalorder %s257, %s258
      %p270 = scmp.eq.s32.totalorder %s38, 1
      %p271 = por %p269, %p270
      %p273 = scmp.ne.s32.totalorder %s258, %s272
      %p274 = scmp.eq.s32.totalorder %s38, 0
      %p275 = por %p273, %p274
      %s277 = sadd.s32 %s276, 1
      %p280 = scmp.eq.s32.totalorder %s32, 1
      %p281 = scmp.ne.s32.totalorder %s276, %s278
      %p282 = scmp.eq.s32.totalorder %s32, 0
      %p283 = por %p281, %p282
      %p284 = scmp.ne.s32.totalorder %s276, %s278
      %p285 = scmp.eq.s32.totalorder %s37, 1
      %p286 = por %p284, %p285
      %p287 = scmp.ne.s32.totalorder %s278, %s279
      %p288 = scmp.eq.s32.totalorder %s37, 0
      %p289 = por %p287, %p288
      %p290 = scmp.ne.s32.totalorder %s278, %s279
      %p291 = scmp.eq.s32.totalorder %s38, 1
      %p292 = por %p290, %p291
      %p294 = scmp.ne.s32.totalorder %s279, %s293
      %p295 = scmp.eq.s32.totalorder %s38, 0
      %p296 = por %p294, %p295
      %s298 = sadd.s32 %s297, 1
      %p301 = scmp.eq.s32.totalorder %s32, 1
      %p302 = scmp.ne.s32.totalorder %s297, %s299
      %p303 = scmp.eq.s32.totalorder %s32, 0
      %p304 = por %p302, %p303
      %p305 = scmp.ne.s32.totalorder %s297, %s299
      %p306 = scmp.eq.s32.totalorder %s37, 1
      %p307 = por %p305, %p306
      %p308 = scmp.ne.s32.totalorder %s299, %s300
      %p309 = scmp.eq.s32.totalorder %s37, 0
      %p310 = por %p308, %p309
      %p311 = scmp.ne.s32.totalorder %s299, %s300
      %p312 = scmp.eq.s32.totalorder %s38, 1
      %p313 = por %p311, %p312
      %p315 = scmp.ne.s32.totalorder %s300, %s314
      %p316 = scmp.eq.s32.totalorder %s38, 0
      %p317 = por %p315, %p316
      %s319 = sadd.s32 %s318, 1
      %p322 = scmp.eq.s32.totalorder %s32, 1
      %p323 = scmp.ne.s32.totalorder %s318, %s320
      %p324 = scmp.eq.s32.totalorder %s32, 0
      %p325 = por %p323, %p324
      %p326 = scmp.ne.s32.totalorder %s318, %s320
      %p327 = scmp.eq.s32.totalorder %s37, 1
      %p328 = por %p326, %p327
      %p329 = scmp.ne.s32.totalorder %s320, %s321
      %p330 = scmp.eq.s32.totalorder %s37, 0
      %p331 = por %p329, %p330
      %p332 = scmp.ne.s32.totalorder %s320, %s321
      %p333 = scmp.eq.s32.totalorder %s38, 1
      %p334 = por %p332, %p333
      %p336 = scmp.ne.s32.totalorder %s321, %s335
      %p337 = scmp.eq.s32.totalorder %s38, 0
      %p338 = por %p336, %p337
      %s339 = ssub.s32 %s32, %s39
      %p340 = scmp.eq.s32.totalorder %s339, 0
      %s342 = sadd.s32 %s341, 1
      %s343 = scalar_select %p340, %s341, %s342
      %p346 = pneg %p340
      %p347 = scmp.eq.s32.totalorder %s32, 1
      %p348 = por %p346, %p347
      %p349 = scmp.ne.s32.totalorder %s341, %s344
      %p350 = scmp.eq.s32.totalorder %s32, 0
      %p351 = por %p349, %p350
      %p352 = scmp.ne.s32.totalorder %s341, %s344
      %p353 = scmp.eq.s32.totalorder %s37, 1
      %p354 = por %p352, %p353
      %p355 = scmp.ne.s32.totalorder %s344, %s345
      %p356 = scmp.eq.s32.totalorder %s37, 0
      %p357 = por %p355, %p356
      %p358 = scmp.ne.s32.totalorder %s344, %s345
      %p359 = scmp.eq.s32.totalorder %s38, 1
      %p360 = por %p358, %p359
      %p362 = scmp.ne.s32.totalorder %s345, %s361
      %p363 = scmp.eq.s32.totalorder %s38, 0
      %p364 = por %p362, %p363
      %s365 = ssub.s32 %s32, %s39
      %p366 = scmp.eq.s32.totalorder %s365, 0
      %s368 = sadd.s32 %s367, 1
      %s369 = scalar_select %p366, %s367, %s368
      %p372 = pneg %p366
      %p373 = scmp.eq.s32.totalorder %s32, 1
      %p374 = por %p372, %p373
      %p375 = scmp.ne.s32.totalorder %s367, %s370
      %p376 = scmp.eq.s32.totalorder %s32, 0
      %p377 = por %p375, %p376
      %p378 = scmp.ne.s32.totalorder %s367, %s370
      %p379 = scmp.eq.s32.totalorder %s37, 1
      %p380 = por %p378, %p379
      %p381 = scmp.ne.s32.totalorder %s370, %s371
      %p382 = scmp.eq.s32.totalorder %s37, 0
      %p383 = por %p381, %p382
      %p384 = scmp.ne.s32.totalorder %s370, %s371
      %p385 = scmp.eq.s32.totalorder %s38, 1
      %p386 = por %p384, %p385
      %p388 = scmp.ne.s32.totalorder %s371, %s387
      %p389 = scmp.eq.s32.totalorder %s38, 0
      %p390 = por %p388, %p389
      %p391 = scmp.le.s32.totalorder 1, %s32
      %p392 = scmp.lt.s32.totalorder %s32, 3
      %p393 = pnand %p391, %p392
      %p394 = pneg %p393
      // Predicated region
      $region9: #{tpu_custom_call.1} parent=5 // pred_check
        _
      $region10: #{tpu_custom_call.1} parent=5 // pred_check_branch
        %396 = sbr.rel (%p393) target = $region12
      $region11: #{tpu_custom_call.1} parent=5 // pred_region
        %s397 = ssub.s32 %s32, 1
        // Predicated region
        $region13: #{tpu_custom_call.1} parent=11 // pred_check
          %p398 = pneg %p79
        $region14: #{tpu_custom_call.1} parent=11 // pred_check_branch
          %400 = sbr.rel (%p398) target = $region16
        $region15: #{tpu_custom_call.1} parent=11 // pred_region
          %s402 = ssub.s32 384, 384
          %403 = vsyncadd [#allocation3], %s402
          %s404 = sshll.u32 [#allocation2], 4
          %s405 = int_to_ptr.vmem [resolvable:$true] %s404
          %410 = dma.hbm_to_vmem [thread:$0]  %s1, 384, %s405, [#allocation3], 64, 64, 4
        $region16: #{tpu_custom_call.1} parent=11 // pred_fallthru
          _
        // Predicated region
        $region17: #{tpu_custom_call.1} parent=11 // pred_check
          %p411 = pneg %p100
        $region18: #{tpu_custom_call.1} parent=11 // pred_check_branch
          %413 = sbr.rel (%p411) target = $region20
        $region19: #{tpu_custom_call.1} parent=11 // pred_region
          %s415 = ssub.s32 16, 16
          %416 = vsyncadd [#allocation6], %s415
          %s418 = sshll.u32 [#allocation5], 4
          %s419 = int_to_ptr.vmem [resolvable:$true] %s418
          %421 = dma.hbm_to_vmem [thread:$0]  %s2, 16, %s419, [#allocation6]
        $region20: #{tpu_custom_call.1} parent=11 // pred_fallthru
          _
        // Predicated region
        $region21: #{tpu_custom_call.1} parent=11 // pred_check
          %p422 = pneg %p121
        $region22: #{tpu_custom_call.1} parent=11 // pred_check_branch
          %424 = sbr.rel (%p422) target = $region24
        $region23: #{tpu_custom_call.1} parent=11 // pred_region
          _
        $region24: #{tpu_custom_call.1} parent=11 // pred_fallthru
          _
        // Predicated region
        $region25: #{tpu_custom_call.1} parent=11 // pred_check
          %p425 = pneg %p142
        $region26: #{tpu_custom_call.1} parent=11 // pred_check_branch
          %427 = sbr.rel (%p425) target = $region28
        $region27: #{tpu_custom_call.1} parent=11 // pred_region
          %s429 = ssub.s32 3072, 3072
          %430 = vsyncadd [#allocation6], %s429
          %s431 = sshll.u32 [#allocation7], 4
          %s432 = int_to_ptr.vmem [resolvable:$true] %s431
          %437 = dma.hbm_to_vmem [thread:$0]  %s4, 3072, %s432, [#allocation6], 192, 192, 12
        $region28: #{tpu_custom_call.1} parent=11 // pred_fallthru
          _
        // Predicated region
        $region29: #{tpu_custom_call.1} parent=11 // pred_check
          %p438 = pneg %p163
        $region30: #{tpu_custom_call.1} parent=11 // pred_check_branch
          %440 = sbr.rel (%p438) target = $region32
        $region31: #{tpu_custom_call.1} parent=11 // pred_region
          _
        $region32: #{tpu_custom_call.1} parent=11 // pred_fallthru
          _
        // Predicated region
        $region33: #{tpu_custom_call.1} parent=11 // pred_check
          %p441 = pneg %p184
        $region34: #{tpu_custom_call.1} parent=11 // pred_check_branch
          %443 = sbr.rel (%p441) target = $region36
        $region35: #{tpu_custom_call.1} parent=11 // pred_region
          %s445 = ssub.s32 1024, 1024
          %446 = vsyncadd [#allocation9], %s445
          %s447 = sshll.u32 [#allocation8], 4
          %s448 = int_to_ptr.vmem [resolvable:$true] %s447
          %453 = dma.hbm_to_vmem [thread:$0]  %s6, 1024, %s448, [#allocation9], 64, 64, 4
        $region36: #{tpu_custom_call.1} parent=11 // pred_fallthru
          _
        // Predicated region
        $region37: #{tpu_custom_call.1} parent=11 // pred_check
          %p454 = pneg %p205
        $region38: #{tpu_custom_call.1} parent=11 // pred_check_branch
          %456 = sbr.rel (%p454) target = $region40
        $region39: #{tpu_custom_call.1} parent=11 // pred_region
          %s458 = ssub.s32 16, 16
          %459 = vsyncadd [#allocation9], %s458
          %s461 = sshll.u32 [#allocation10], 4
          %s462 = int_to_ptr.vmem [resolvable:$true] %s461
          %464 = dma.hbm_to_vmem [thread:$0]  %s7, 16, %s462, [#allocation9]
        $region40: #{tpu_custom_call.1} parent=11 // pred_fallthru
          _
        // Predicated region
        $region41: #{tpu_custom_call.1} parent=11 // pred_check
          %p465 = pneg %p226
        $region42: #{tpu_custom_call.1} parent=11 // pred_check_branch
          %467 = sbr.rel (%p465) target = $region44
        $region43: #{tpu_custom_call.1} parent=11 // pred_region
          _
        $region44: #{tpu_custom_call.1} parent=11 // pred_fallthru
          _
        // Predicated region
        $region45: #{tpu_custom_call.1} parent=11 // pred_check
          %p468 = pneg %p247
        $region46: #{tpu_custom_call.1} parent=11 // pred_check_branch
          %470 = sbr.rel (%p468) target = $region48
        $region47: #{tpu_custom_call.1} parent=11 // pred_region
          _
        $region48: #{tpu_custom_call.1} parent=11 // pred_fallthru
          _
        // Predicated region
        $region49: #{tpu_custom_call.1} parent=11 // pred_check
          %p471 = pneg %p268
        $region50: #{tpu_custom_call.1} parent=11 // pred_check_branch
          %473 = sbr.rel (%p471) target = $region52
        $region51: #{tpu_custom_call.1} parent=11 // pred_region
          %s475 = ssub.s32 2048, 2048
          %476 = vsyncadd [#allocation12], %s475
          %s477 = sshll.u32 [#allocation11], 4
          %s478 = int_to_ptr.vmem [resolvable:$true] %s477
          %483 = dma.hbm_to_vmem [thread:$0]  %s10, 2048, %s478, [#allocation12], 64, 64, 4
        $region52: #{tpu_custom_call.1} parent=11 // pred_fallthru
          _
        // Predicated region
        $region53: #{tpu_custom_call.1} parent=11 // pred_check
          %p484 = pneg %p289
        $region54: #{tpu_custom_call.1} parent=11 // pred_check_branch
          %486 = sbr.rel (%p484) target = $region56
        $region55: #{tpu_custom_call.1} parent=11 // pred_region
          _
        $region56: #{tpu_custom_call.1} parent=11 // pred_fallthru
          _
        // Predicated region
        $region57: #{tpu_custom_call.1} parent=11 // pred_check
          %p487 = pneg %p310
        $region58: #{tpu_custom_call.1} parent=11 // pred_check_branch
          %489 = sbr.rel (%p487) target = $region60
        $region59: #{tpu_custom_call.1} parent=11 // pred_region
          %s491 = ssub.s32 1024, 1024
          %492 = vsyncadd [#allocation12], %s491
          %s493 = sshll.u32 [#allocation13], 4
          %s494 = int_to_ptr.vmem [resolvable:$true] %s493
          %499 = dma.hbm_to_vmem [thread:$0]  %s12, 1024, %s494, [#allocation12], 64, 64, 4
        $region60: #{tpu_custom_call.1} parent=11 // pred_fallthru
          _
        // Predicated region
        $region61: #{tpu_custom_call.1} parent=11 // pred_check
          %p500 = pneg %p331
        $region62: #{tpu_custom_call.1} parent=11 // pred_check_branch
          %502 = sbr.rel (%p500) target = $region64
        $region63: #{tpu_custom_call.1} parent=11 // pred_region
          _
        $region64: #{tpu_custom_call.1} parent=11 // pred_fallthru
          _
      $region12: #{tpu_custom_call.1} parent=5 // pred_fallthru
        _
      %p503 = scmp.lt.s32.totalorder %s32, 2
      // Predicated region
      $region65: #{tpu_custom_call.1} parent=5 // pred_check
        %p504 = pneg %p503
      $region66: #{tpu_custom_call.1} parent=5 // pred_check_branch
        %506 = sbr.rel (%p504) target = $region68
      $region67: #{tpu_custom_call.1} parent=5 // pred_region
        // Predicated region
        $region69: #{tpu_custom_call.1} parent=67 // pred_check
          %p507 = pneg %p52
        $region70: #{tpu_custom_call.1} parent=67 // pred_check_branch
          %509 = sbr.rel (%p507) target = $region72
        $region71: #{tpu_custom_call.1} parent=67 // pred_region
          %p510 = scmp.lt.s32.totalorder %s32, 1
          %s511 = scalar_select %p510, %s32, 1
          %s512 = smul.addr %s511, 8
          %s513 = smul.addr %s512, 4
          %s514 = scalar_lea.vmem %s0, %s513
        $region72: #{tpu_custom_call.1} parent=67 // pred_fallthru
          _
      $region68: #{tpu_custom_call.1} parent=5 // pred_fallthru
        _
      %p515 = scmp.le.s32.totalorder 1, %s32
      %p516 = scmp.lt.s32.totalorder %s32, 3
      %p517 = pnand %p515, %p516
      %p518 = pneg %p517
      // Predicated region
      $region73: #{tpu_custom_call.1} parent=5 // pred_check
        _
      $region74: #{tpu_custom_call.1} parent=5 // pred_check_branch
        %520 = sbr.rel (%p517) target = $region76
      $region75: #{tpu_custom_call.1} parent=5 // pred_region
        %s521 = ssub.s32 %s32, 1
        // Predicated region
        $region77: #{tpu_custom_call.1} parent=75 // pred_check
          %p522 = pneg %p79
        $region78: #{tpu_custom_call.1} parent=75 // pred_check_branch
          %524 = sbr.rel (%p522) target = $region80
        $region79: #{tpu_custom_call.1} parent=75 // pred_region
          %525 = dma.done [#allocation3], 384
        $region80: #{tpu_custom_call.1} parent=75 // pred_fallthru
          _
        // Predicated region
        $region81: #{tpu_custom_call.1} parent=75 // pred_check
          %p526 = pneg %p100
        $region82: #{tpu_custom_call.1} parent=75 // pred_check_branch
          %528 = sbr.rel (%p526) target = $region84
        $region83: #{tpu_custom_call.1} parent=75 // pred_region
          %529 = dma.done [#allocation6], 16
        $region84: #{tpu_custom_call.1} parent=75 // pred_fallthru
          _
        // Predicated region
        $region85: #{tpu_custom_call.1} parent=75 // pred_check
          %p530 = pneg %p142
        $region86: #{tpu_custom_call.1} parent=75 // pred_check_branch
          %532 = sbr.rel (%p530) target = $region88
        $region87: #{tpu_custom_call.1} parent=75 // pred_region
          %533 = dma.done [#allocation6], 3072
        $region88: #{tpu_custom_call.1} parent=75 // pred_fallthru
          _
        // Predicated region
        $region89: #{tpu_custom_call.1} parent=75 // pred_check
          %p534 = pneg %p184
        $region90: #{tpu_custom_call.1} parent=75 // pred_check_branch
          %536 = sbr.rel (%p534) target = $region92
        $region91: #{tpu_custom_call.1} parent=75 // pred_region
          %537 = dma.done [#allocation9], 1024
        $region92: #{tpu_custom_call.1} parent=75 // pred_fallthru
          _
        // Predicated region
        $region93: #{tpu_custom_call.1} parent=75 // pred_check
          %p538 = pneg %p205
        $region94: #{tpu_custom_call.1} parent=75 // pred_check_branch
          %540 = sbr.rel (%p538) target = $region96
        $region95: #{tpu_custom_call.1} parent=75 // pred_region
          %541 = dma.done [#allocation9], 16
        $region96: #{tpu_custom_call.1} parent=75 // pred_fallthru
          _
        // Predicated region
        $region97: #{tpu_custom_call.1} parent=75 // pred_check
          %p542 = pneg %p268
        $region98: #{tpu_custom_call.1} parent=75 // pred_check_branch
          %544 = sbr.rel (%p542) target = $region100
        $region99: #{tpu_custom_call.1} parent=75 // pred_region
          %545 = dma.done [#allocation12], 2048
        $region100: #{tpu_custom_call.1} parent=75 // pred_fallthru
          _
        // Predicated region
        $region101: #{tpu_custom_call.1} parent=75 // pred_check
          %p546 = pneg %p310
        $region102: #{tpu_custom_call.1} parent=75 // pred_check_branch
          %548 = sbr.rel (%p546) target = $region104
        $region103: #{tpu_custom_call.1} parent=75 // pred_region
          %549 = dma.done [#allocation12], 1024
        $region104: #{tpu_custom_call.1} parent=75 // pred_fallthru
          _
        %p550 = scmp.lt.s32.totalorder %s37, 1
        %s551 = scalar_select %p550, %s37, 1
        %s552 = smul.addr %s551, 8
        %s553 = smul.addr %s552, 4
        %s554 = scalar_lea.vmem %s0, %s553
        %p555 = pneg %p58
        %p556 = pneg %p55
        %p557 = pneg %p79
        %p558 = pneg %p76
        %p559 = pneg %p100
        %p560 = pneg %p97
        %p561 = pneg %p121
        %p562 = pneg %p118
        %p563 = pneg %p142
        %p564 = pneg %p139
        %p565 = pneg %p163
        %p566 = pneg %p160
        %p567 = pneg %p184
        %p568 = pneg %p181
        %p569 = pneg %p205
        %p570 = pneg %p202
        %p571 = pneg %p226
        %p572 = pneg %p223
        %p573 = pneg %p247
        %p574 = pneg %p244
        %p575 = pneg %p268
        %p576 = pneg %p265
        %p577 = pneg %p289
        %p578 = pneg %p286
        %p579 = pneg %p310
        %p580 = pneg %p307
        %p581 = pneg %p331
        %p582 = pneg %p328
        %p583 = pneg %p357
        %p584 = pneg %p354
        %s585 = sand.u32 %s344, 1
        %s586 = scalar_lea.sflag [#allocation4], %s585
        %s587 = sand.u32 %s344, 1
        %s588 = smul.addr %s587, 32
        %s589 = scalar_lea.vmem [#allocation14], %s588
        %p590 = pneg %p383
        %p591 = pneg %p380
        %s592 = sand.u32 %s370, 1
        %s593 = scalar_lea.sflag [#allocation16], %s592
        %s594 = sand.u32 %s370, 1
        %s595 = smul.addr %s594, 32
        %s596 = scalar_lea.vmem [#allocation15], %s595
        %p597 = scmp.lt.s32.totalorder %s37, 1
        %s598 = scalar_select %p597, %s37, 1
        %s599 = smul.addr %s598, 8
        %s600 = smul.addr %s599, 4
        %s601 = scalar_lea.vmem %s0, %s600
        %v603 = vld [vmem:[%s3] sm:$0xff]
        %v604 = vld [vmem:[%s601] sm:$0xf]
        %v605 = vld [vmem:[%s601 + $0x4] sm:$0xf]
        %v606 = vld [vmem:[%s601 + $0x8] sm:$0xf]
        %v607 = vld [vmem:[%s601 + $0xc] sm:$0xf]
        %v608 = vld [vmem:[%s601 + $0x10] sm:$0xf]
        %v609 = vld [vmem:[%s601 + $0x14] sm:$0xf]
        %v610 = vld [vmem:[%s601 + $0x18] sm:$0xf]
        %v611 = vld [vmem:[%s601 + $0x1c] sm:$0xf]
        %v612 = vld [vmem:[#allocation2] sm:$0xf]
        %v613 = vld [vmem:[#allocation2 + $0x4] sm:$0xf]
        %v614 = vld [vmem:[#allocation2 + $0x8] sm:$0xf]
        %v615 = vld [vmem:[#allocation2 + $0xc] sm:$0xf]
        %v616 = vld [vmem:[#allocation2 + $0x10] sm:$0xf]
        %v617 = vld [vmem:[#allocation2 + $0x14] sm:$0x7]
        %v618 = vld [vmem:[#allocation5] sm:$0x1]
        %v620 = vlaneseq
        %v621 = vshrl.u32 %v620, 7
        %v622 = vsub.s32 0, %v621
        %v623 = vrot.slane %v618, %v622
        %v633 = vunpack.c.l.b16 %v604
        %v634 = vunpack.c.l.b16 %v605
        %v635 = vunpack.c.l.b16 %v606
        %v636 = vunpack.c.l.b16 %v607
        %v637 = vunpack.c.l.b16 %v608
        %v638 = vunpack.c.l.b16 %v609
        %v639 = vunpack.c.l.b16 %v610
        %v640 = vunpack.c.l.b16 %v611
        %v641 = vpack.c.b16 %v634, %v633
        %v642 = vpack.c.b16 %v636, %v635
        %v643 = vpack.c.b16 %v638, %v637
        %v644 = vpack.c.b16 %v640, %v639
        %v651 = vunpack.c.l.b16 %v612
        %v652 = vunpack.c.l.b16 %v613
        %v653 = vunpack.c.l.b16 %v614
        %v654 = vunpack.c.l.b16 %v615
        %v655 = vunpack.c.l.b16 %v616
        %v656 = vunpack.c.l.b16 %v617
        %v657 = vpack.c.b16 %v652, %v651
        %v658 = vpack.c.b16 %v654, %v653
        %v659 = vpack.c.b16 %v656, %v655
        %vm662 = vcmask 367616
        %v664 = vsel %vm662, %v641, 0
        %v667 = vsel %vm662, %v642, 0
        %v670 = vsel %vm662, %v643, 0
        %v673 = vsel %vm662, %v644, 0
        %vm675 = vcmask 1045504
        %vm676 = vcmask 1046528
        %v677 = vsel %vm675, 4294967295, 65535
        %v678 = vsel %vm676, %v677, 0
        %v680 = vand.u32 %v659, %v678
        %682 = vmatprep.subr.bf16.mxu0 0
        %683 = vmatpush1.bf16.msra.mxu0 %v657
        %684 = vmatprep.subr.bf16.mxu0 0
        %685 = vmatpush1.bf16.msra.mxu0 %v658
        %686 = vmatprep.subr.bf16.mxu0 0
        %687 = vmatpush1.bf16.msra.mxu0 %v680
        %688 = vmatprep.subr.bf16.mxu0 0
        %689 = vmatpush1.bf16.msra.mxu0 0
        %690 = vmatprep.subr.bf16.mxu0 0
        %691 = vmatpush1.bf16.msra.mxu0 0
        %692 = vmatprep.subr.bf16.mxu0 0
        %693 = vmatpush1.bf16.msra.mxu0 0
        %694 = vmatprep.subr.bf16.mxu0 0
        %695 = vmatpush1.bf16.msra.mxu0 0
        %696 = vmatprep.subr.bf16.mxu0 0
        %697 = vmatpush1.bf16.msra.mxu0 0
        %698 = vmatprep.subr.bf16.mxu0 0
        %699 = vmatpush1.bf16.msra.mxu0 0
        %700 = vmatprep.subr.bf16.mxu0 0
        %701 = vmatpush1.bf16.msra.mxu0 0
        %702 = vmatprep.subr.bf16.mxu0 0
        %703 = vmatpush1.bf16.msra.mxu0 0
        %704 = vmatprep.subr.bf16.mxu0 0
        %705 = vmatpush1.bf16.msra.mxu0 0
        %706 = vmatprep.subr.bf16.mxu0 0
        %707 = vmatpush1.bf16.msra.mxu0 0
        %708 = vmatprep.subr.bf16.mxu0 0
        %709 = vmatpush1.bf16.msra.mxu0 0
        %710 = vmatprep.subr.bf16.mxu0 0
        %711 = vmatpush1.bf16.msra.mxu0 0
        %712 = vmatprep.subr.bf16.mxu0 0
        %713 = vmatpush1.bf16.msra.mxu0 0
        %714 = vmatprep.mubr.bf16.mxu0 0
        %715 = vmatmul.mubr.bf16.gmra.mrb[0].mxu0 %v664
        %v716 = vpop.f32.mrb[0].mxu0
        %v717 = vadd.f32 %v623, %v716
        %v718 = vpop.f32.mrb[0].mxu0
        %v719 = vpop.f32.mrb[0].mxu0
        %v720 = vadd.f32 %v623, %v719
        %v721 = vpop.f32.mrb[0].mxu0
        %722 = vmatprep.mubr.bf16.mxu0 0
        %723 = vmatmul.mubr.bf16.gmra.mrb[0].mxu0 %v667
        %v724 = vpop.f32.mrb[0].mxu0
        %v725 = vadd.f32 %v623, %v724
        %v726 = vpop.f32.mrb[0].mxu0
        %v727 = vpop.f32.mrb[0].mxu0
        %v728 = vadd.f32 %v623, %v727
        %v729 = vpop.f32.mrb[0].mxu0
        %730 = vmatprep.mubr.bf16.mxu0 0
        %731 = vmatmul.mubr.bf16.gmra.mrb[0].mxu0 %v670
        %v732 = vpop.f32.mrb[0].mxu0
        %v733 = vadd.f32 %v623, %v732
        %v734 = vpop.f32.mrb[0].mxu0
        %v735 = vpop.f32.mrb[0].mxu0
        %v736 = vadd.f32 %v623, %v735
        %v737 = vpop.f32.mrb[0].mxu0
        %738 = vmatprep.mubr.bf16.mxu0 0
        %739 = vmatmul.mubr.bf16.gmra.mrb[0].mxu0 %v673
        %v740 = vpop.f32.mrb[0].mxu0
        %v741 = vadd.f32 %v623, %v740
        %v742 = vpop.f32.mrb[0].mxu0
        %v743 = vpop.f32.mrb[0].mxu0
        %v744 = vadd.f32 %v623, %v743
        %v745 = vpop.f32.mrb[0].mxu0
        %746 = vdwg.mxu0
        %747 = vadd.xlane.f32.xlu0 %v717
        %v748 = vpop.xlane.xlu0 %747
        %749 = vadd.xlane.f32.xlu0 %v720
        %v750 = vpop.xlane.xlu0 %749
        %751 = vadd.xlane.f32.xlu0 %v725
        %v752 = vpop.xlane.xlu0 %751
        %753 = vadd.xlane.f32.xlu0 %v728
        %v754 = vpop.xlane.xlu0 %753
        %755 = vadd.xlane.f32.xlu0 %v733
        %v756 = vpop.xlane.xlu0 %755
        %757 = vadd.xlane.f32.xlu0 %v736
        %v758 = vpop.xlane.xlu0 %757
        %759 = vadd.xlane.f32.xlu0 %v741
        %v760 = vpop.xlane.xlu0 %759
        %761 = vadd.xlane.f32.xlu0 %v744
        %v762 = vpop.xlane.xlu0 %761
        %v763 = vrcp.pop 128.0
        %v764 = vmul.f32 %v748, %v763
        %v765 = vmul.f32 %v750, %v763
        %v766 = vmul.f32 %v752, %v763
        %v767 = vmul.f32 %v754, %v763
        %v768 = vmul.f32 %v756, %v763
        %v769 = vmul.f32 %v758, %v763
        %v770 = vmul.f32 %v760, %v763
        %v771 = vmul.f32 %v762, %v763
        %v772 = vmul.f32 %v717, %v717
        %v773 = vmul.f32 %v720, %v720
        %v774 = vmul.f32 %v725, %v725
        %v775 = vmul.f32 %v728, %v728
        %v776 = vmul.f32 %v733, %v733
        %v777 = vmul.f32 %v736, %v736
        %v778 = vmul.f32 %v741, %v741
        %v779 = vmul.f32 %v744, %v744
        %780 = vadd.xlane.f32.xlu0 %v772
        %v781 = vpop.xlane.xlu0 %780
        %782 = vadd.xlane.f32.xlu0 %v773
        %v783 = vpop.xlane.xlu0 %782
        %784 = vadd.xlane.f32.xlu0 %v774
        %v785 = vpop.xlane.xlu0 %784
        %786 = vadd.xlane.f32.xlu0 %v775
        %v787 = vpop.xlane.xlu0 %786
        %788 = vadd.xlane.f32.xlu0 %v776
        %v789 = vpop.xlane.xlu0 %788
        %790 = vadd.xlane.f32.xlu0 %v777
        %v791 = vpop.xlane.xlu0 %790
        %792 = vadd.xlane.f32.xlu0 %v778
        %v793 = vpop.xlane.xlu0 %792
        %794 = vadd.xlane.f32.xlu0 %v779
        %v795 = vpop.xlane.xlu0 %794
        %v796 = vmul.f32 %v781, %v763
        %v797 = vmul.f32 %v783, %v763
        %v798 = vmul.f32 %v785, %v763
        %v799 = vmul.f32 %v787, %v763
        %v800 = vmul.f32 %v789, %v763
        %v801 = vmul.f32 %v791, %v763
        %v802 = vmul.f32 %v793, %v763
        %v803 = vmul.f32 %v795, %v763
        %v804 = vmul.f32 %v764, %v764
        %v805 = vmul.f32 %v765, %v765
        %v806 = vmul.f32 %v766, %v766
        %v807 = vmul.f32 %v767, %v767
        %v808 = vmul.f32 %v768, %v768
        %v809 = vmul.f32 %v769, %v769
        %v810 = vmul.f32 %v770, %v770
        %v811 = vmul.f32 %v771, %v771
        %v812 = vsub.f32 %v796, %v804
        %v813 = vsub.f32 %v797, %v805
        %v814 = vsub.f32 %v798, %v806
        %v815 = vsub.f32 %v799, %v807
        %v816 = vsub.f32 %v800, %v808
        %v817 = vsub.f32 %v801, %v809
        %v818 = vsub.f32 %v802, %v810
        %v819 = vsub.f32 %v803, %v811
        %v820 = vmax.f32 %v812, 0.0
        %v821 = vmax.f32 %v813, 0.0
        %v822 = vmax.f32 %v814, 0.0
        %v823 = vmax.f32 %v815, 0.0
        %v824 = vmax.f32 %v816, 0.0
        %v825 = vmax.f32 %v817, 0.0
        %v826 = vmax.f32 %v818, 0.0
        %v827 = vmax.f32 %v819, 0.0
        %v828 = vsub.f32 %v717, %v764
        %v829 = vsub.f32 %v720, %v765
        %v830 = vsub.f32 %v725, %v766
        %v831 = vsub.f32 %v728, %v767
        %v832 = vsub.f32 %v733, %v768
        %v833 = vsub.f32 %v736, %v769
        %v834 = vsub.f32 %v741, %v770
        %v835 = vsub.f32 %v744, %v771
        %v836 = vadd.f32 %v820, 1e-05
        %v837 = vadd.f32 %v821, 1e-05
        %v838 = vadd.f32 %v822, 1e-05
        %v839 = vadd.f32 %v823, 1e-05
        %v840 = vadd.f32 %v824, 1e-05
        %v841 = vadd.f32 %v825, 1e-05
        %v842 = vadd.f32 %v826, 1e-05
        %v843 = vadd.f32 %v827, 1e-05
        %v844 = vrsqrt.pop %v836
        %v845 = vrsqrt.pop %v837
        %v846 = vrsqrt.pop %v838
        %v847 = vrsqrt.pop %v839
        %v848 = vrsqrt.pop %v840
        %v849 = vrsqrt.pop %v841
        %v850 = vrsqrt.pop %v842
        %v851 = vrsqrt.pop %v843
        %v852 = vmul.f32 %v828, %v844
        %v853 = vmul.f32 %v829, %v845
        %v854 = vmul.f32 %v830, %v846
        %v855 = vmul.f32 %v831, %v847
        %v856 = vmul.f32 %v832, %v848
        %v857 = vmul.f32 %v833, %v849
        %v858 = vmul.f32 %v834, %v850
        %v859 = vmul.f32 %v835, %v851
        %v860 = vlaneseq
        %v861 = vshrl.u32 %v860, 7
        %v862 = vsub.s32 0, %v861
        %v863 = vrot.slane %v603, %v862
        %v864 = vmul.f32 %v852, %v863
        %v865 = vmul.f32 %v853, %v863
        %v866 = vmul.f32 %v854, %v863
        %v867 = vmul.f32 %v855, %v863
        %v868 = vmul.f32 %v856, %v863
        %v869 = vmul.f32 %v857, %v863
        %v870 = vmul.f32 %v858, %v863
        %v871 = vmul.f32 %v859, %v863
        %v872 = vlaneseq
        %v873 = vshrl.u32 %v872, 7
        %v874 = vsub.s32 1, %v873
        %v875 = vrot.slane %v603, %v874
        %v876 = vadd.f32 %v864, %v875
        %v877 = vadd.f32 %v865, %v875
        %v878 = vadd.f32 %v866, %v875
        %v879 = vadd.f32 %v867, %v875
        %v880 = vadd.f32 %v868, %v875
        %v881 = vadd.f32 %v869, %v875
        %v882 = vadd.f32 %v870, %v875
        %v883 = vadd.f32 %v871, %v875
        %884 = vadd.xlane.f32.xlu0 %v876
        %v885 = vpop.xlane.xlu0 %884
        %886 = vadd.xlane.f32.xlu0 %v877
        %v887 = vpop.xlane.xlu0 %886
        %888 = vadd.xlane.f32.xlu0 %v878
        %v889 = vpop.xlane.xlu0 %888
        %890 = vadd.xlane.f32.xlu0 %v879
        %v891 = vpop.xlane.xlu0 %890
        %892 = vadd.xlane.f32.xlu0 %v880
        %v893 = vpop.xlane.xlu0 %892
        %894 = vadd.xlane.f32.xlu0 %v881
        %v895 = vpop.xlane.xlu0 %894
        %896 = vadd.xlane.f32.xlu0 %v882
        %v897 = vpop.xlane.xlu0 %896
        %898 = vadd.xlane.f32.xlu0 %v883
        %v899 = vpop.xlane.xlu0 %898
        %v900 = vmul.f32 %v885, %v763
        %v901 = vmul.f32 %v887, %v763
        %v902 = vmul.f32 %v889, %v763
        %v903 = vmul.f32 %v891, %v763
        %v904 = vmul.f32 %v893, %v763
        %v905 = vmul.f32 %v895, %v763
        %v906 = vmul.f32 %v897, %v763
        %v907 = vmul.f32 %v899, %v763
        %v908 = vmul.f32 %v876, %v876
        %v909 = vmul.f32 %v877, %v877
        %v910 = vmul.f32 %v878, %v878
        %v911 = vmul.f32 %v879, %v879
        %v912 = vmul.f32 %v880, %v880
        %v913 = vmul.f32 %v881, %v881
        %v914 = vmul.f32 %v882, %v882
        %v915 = vmul.f32 %v883, %v883
        %916 = vadd.xlane.f32.xlu0 %v908
        %v917 = vpop.xlane.xlu0 %916
        %918 = vadd.xlane.f32.xlu0 %v909
        %v919 = vpop.xlane.xlu0 %918
        %920 = vadd.xlane.f32.xlu0 %v910
        %v921 = vpop.xlane.xlu0 %920
        %922 = vadd.xlane.f32.xlu0 %v911
        %v923 = vpop.xlane.xlu0 %922
        %924 = vadd.xlane.f32.xlu0 %v912
        %v925 = vpop.xlane.xlu0 %924
        %926 = vadd.xlane.f32.xlu0 %v913
        %v927 = vpop.xlane.xlu0 %926
        %928 = vadd.xlane.f32.xlu0 %v914
        %v929 = vpop.xlane.xlu0 %928
        %930 = vadd.xlane.f32.xlu0 %v915
        %v931 = vpop.xlane.xlu0 %930
        %v932 = vmul.f32 %v917, %v763
        %v933 = vmul.f32 %v919, %v763
        %v934 = vmul.f32 %v921, %v763
        %v935 = vmul.f32 %v923, %v763
        %v936 = vmul.f32 %v925, %v763
        %v937 = vmul.f32 %v927, %v763
        %v938 = vmul.f32 %v929, %v763
        %v939 = vmul.f32 %v931, %v763
        %v940 = vmul.f32 %v900, %v900
        %v941 = vmul.f32 %v901, %v901
        %v942 = vmul.f32 %v902, %v902
        %v943 = vmul.f32 %v903, %v903
        %v944 = vmul.f32 %v904, %v904
        %v945 = vmul.f32 %v905, %v905
        %v946 = vmul.f32 %v906, %v906
        %v947 = vmul.f32 %v907, %v907
        %v948 = vsub.f32 %v932, %v940
        %v949 = vsub.f32 %v933, %v941
        %v950 = vsub.f32 %v934, %v942
        %v951 = vsub.f32 %v935, %v943
        %v952 = vsub.f32 %v936, %v944
        %v953 = vsub.f32 %v937, %v945
        %v954 = vsub.f32 %v938, %v946
        %v955 = vsub.f32 %v939, %v947
        %v956 = vmax.f32 %v948, 0.0
        %v957 = vmax.f32 %v949, 0.0
        %v958 = vmax.f32 %v950, 0.0
        %v959 = vmax.f32 %v951, 0.0
        %v960 = vmax.f32 %v952, 0.0
        %v961 = vmax.f32 %v953, 0.0
        %v962 = vmax.f32 %v954, 0.0
        %v963 = vmax.f32 %v955, 0.0
        %v964 = vsub.f32 %v876, %v900
        %v965 = vsub.f32 %v877, %v901
        %v966 = vsub.f32 %v878, %v902
        %v967 = vsub.f32 %v879, %v903
        %v968 = vsub.f32 %v880, %v904
        %v969 = vsub.f32 %v881, %v905
        %v970 = vsub.f32 %v882, %v906
        %v971 = vsub.f32 %v883, %v907
        %v972 = vadd.f32 %v956, 1e-05
        %v973 = vadd.f32 %v957, 1e-05
        %v974 = vadd.f32 %v958, 1e-05
        %v975 = vadd.f32 %v959, 1e-05
        %v976 = vadd.f32 %v960, 1e-05
        %v977 = vadd.f32 %v961, 1e-05
        %v978 = vadd.f32 %v962, 1e-05
        %v979 = vadd.f32 %v963, 1e-05
        %v980 = vrsqrt.pop %v972
        %v981 = vrsqrt.pop %v973
        %v982 = vrsqrt.pop %v974
        %v983 = vrsqrt.pop %v975
        %v984 = vrsqrt.pop %v976
        %v985 = vrsqrt.pop %v977
        %v986 = vrsqrt.pop %v978
        %v987 = vrsqrt.pop %v979
        %v988 = vmul.f32 %v964, %v980
        %v989 = vmul.f32 %v965, %v981
        %v990 = vmul.f32 %v966, %v982
        %v991 = vmul.f32 %v967, %v983
        %v992 = vmul.f32 %v968, %v984
        %v993 = vmul.f32 %v969, %v985
        %v994 = vmul.f32 %v970, %v986
        %v995 = vmul.f32 %v971, %v987
        %v996 = vlaneseq
        %v997 = vshrl.u32 %v996, 7
        %v998 = vsub.s32 2, %v997
        %v999 = vrot.slane %v603, %v998
        %v1000 = vmul.f32 %v988, %v999
        %v1001 = vmul.f32 %v989, %v999
        %v1002 = vmul.f32 %v990, %v999
        %v1003 = vmul.f32 %v991, %v999
        %v1004 = vmul.f32 %v992, %v999
        %v1005 = vmul.f32 %v993, %v999
        %v1006 = vmul.f32 %v994, %v999
        %v1007 = vmul.f32 %v995, %v999
        %v1008 = vlaneseq
        %v1009 = vshrl.u32 %v1008, 7
        %v1010 = vsub.s32 3, %v1009
        %v1011 = vrot.slane %v603, %v1010
        %v1012 = vadd.f32 %v1000, %v1011
        %v1013 = vadd.f32 %v1001, %v1011
        %v1014 = vadd.f32 %v1002, %v1011
        %v1015 = vadd.f32 %v1003, %v1011
        %v1016 = vadd.f32 %v1004, %v1011
        %v1017 = vadd.f32 %v1005, %v1011
        %v1018 = vadd.f32 %v1006, %v1011
        %v1019 = vadd.f32 %v1007, %v1011
        %v1020 = vpack.c.bf16 %v1013, %v1012
        %v1021 = vpack.c.bf16 %v1015, %v1014
        %v1022 = vpack.c.bf16 %v1017, %v1016
        %v1023 = vpack.c.bf16 %v1019, %v1018
        %v1024 = vld [vmem:[#allocation7] sm:$0xff]
        %v1025 = vld [vmem:[#allocation7 + $0x8] sm:$0xf]
        %v1026 = vld [vmem:[#allocation7 + $0xc] sm:$0xff]
        %v1027 = vld [vmem:[#allocation7 + $0x14] sm:$0xf]
        %v1028 = vld [vmem:[#allocation7 + $0x18] sm:$0xff]
        %v1029 = vld [vmem:[#allocation7 + $0x20] sm:$0xf]
        %v1030 = vld [vmem:[#allocation7 + $0x24] sm:$0xff]
        %v1031 = vld [vmem:[#allocation7 + $0x2c] sm:$0xf]
        %v1032 = vld [vmem:[#allocation7 + $0x30] sm:$0xff]
        %v1033 = vld [vmem:[#allocation7 + $0x38] sm:$0xf]
        %v1034 = vld [vmem:[#allocation7 + $0x3c] sm:$0xff]
        %v1035 = vld [vmem:[#allocation7 + $0x44] sm:$0xf]
        %v1036 = vld [vmem:[#allocation7 + $0x48] sm:$0xff]
        %v1037 = vld [vmem:[#allocation7 + $0x50] sm:$0xf]
        %v1038 = vld [vmem:[#allocation7 + $0x54] sm:$0xff]
        %v1039 = vld [vmem:[#allocation7 + $0x5c] sm:$0xf]
        %v1040 = vld [vmem:[#allocation7 + $0x60] sm:$0xff]
        %v1041 = vld [vmem:[#allocation7 + $0x68] sm:$0xf]
        %v1042 = vld [vmem:[#allocation7 + $0x6c] sm:$0xff]
        %v1043 = vld [vmem:[#allocation7 + $0x74] sm:$0xf]
        %v1044 = vld [vmem:[#allocation7 + $0x78] sm:$0xff]
        %v1045 = vld [vmem:[#allocation7 + $0x80] sm:$0xf]
        %v1046 = vld [vmem:[#allocation7 + $0x84] sm:$0xff]
        %v1047 = vld [vmem:[#allocation7 + $0x8c] sm:$0xf]
        %v1048 = vld [vmem:[#allocation7 + $0x90] sm:$0xff]
        %v1049 = vld [vmem:[#allocation7 + $0x98] sm:$0xf]
        %v1050 = vld [vmem:[#allocation7 + $0x9c] sm:$0xff]
        %v1051 = vld [vmem:[#allocation7 + $0xa4] sm:$0xf]
        %v1052 = vld [vmem:[#allocation7 + $0xa8] sm:$0xff]
        %v1053 = vld [vmem:[#allocation7 + $0xb0] sm:$0xf]
        %v1054 = vld [vmem:[#allocation7 + $0xb4] sm:$0xff]
        %v1055 = vld [vmem:[#allocation7 + $0xbc] sm:$0xf]
        %v1056 = vld [vmem:[%s5] sm:$0x7]
        %v1058 = vlaneseq
        %v1059 = vshrl.u32 %v1058, 7
        %v1060 = vsub.s32 0, %v1059
        %v1061 = vrot.slane %v1056, %v1060
        %v1062 = vlaneseq
        %v1063 = vshrl.u32 %v1062, 7
        %v1064 = vsub.s32 1, %v1063
        %v1065 = vrot.slane %v1056, %v1064
        %v1066 = vlaneseq
        %v1067 = vshrl.u32 %v1066, 7
        %v1068 = vsub.s32 2, %v1067
        %v1069 = vrot.slane %v1056, %v1068
        %v1105 = vunpack.c.l.b16 %v1024
        %v1106 = vunpack.c.h.b16 %v1024
        %v1107 = vunpack.c.l.b16 %v1025
        %v1108 = vunpack.c.l.b16 %v1026
        %v1109 = vunpack.c.h.b16 %v1026
        %v1110 = vunpack.c.l.b16 %v1027
        %v1111 = vunpack.c.l.b16 %v1028
        %v1112 = vunpack.c.h.b16 %v1028
        %v1113 = vunpack.c.l.b16 %v1029
        %v1114 = vunpack.c.l.b16 %v1030
        %v1115 = vunpack.c.h.b16 %v1030
        %v1116 = vunpack.c.l.b16 %v1031
        %v1117 = vunpack.c.l.b16 %v1032
        %v1118 = vunpack.c.h.b16 %v1032
        %v1119 = vunpack.c.l.b16 %v1033
        %v1120 = vunpack.c.l.b16 %v1034
        %v1121 = vunpack.c.h.b16 %v1034
        %v1122 = vunpack.c.l.b16 %v1035
        %v1123 = vunpack.c.l.b16 %v1036
        %v1124 = vunpack.c.h.b16 %v1036
        %v1125 = vunpack.c.l.b16 %v1037
        %v1126 = vunpack.c.l.b16 %v1038
        %v1127 = vunpack.c.h.b16 %v1038
        %v1128 = vunpack.c.l.b16 %v1039
        %v1129 = vunpack.c.l.b16 %v1040
        %v1130 = vunpack.c.h.b16 %v1040
        %v1131 = vunpack.c.l.b16 %v1041
        %v1132 = vunpack.c.l.b16 %v1042
        %v1133 = vunpack.c.h.b16 %v1042
        %v1134 = vunpack.c.l.b16 %v1043
        %v1135 = vunpack.c.l.b16 %v1044
        %v1136 = vunpack.c.h.b16 %v1044
        %v1137 = vunpack.c.l.b16 %v1045
        %v1138 = vunpack.c.l.b16 %v1046
        %v1139 = vunpack.c.h.b16 %v1046
        %v1140 = vunpack.c.l.b16 %v1047
        %v1141 = vunpack.c.l.b16 %v1048
        %v1142 = vunpack.c.h.b16 %v1048
        %v1143 = vunpack.c.l.b16 %v1049
        %v1144 = vunpack.c.l.b16 %v1050
        %v1145 = vunpack.c.h.b16 %v1050
        %v1146 = vunpack.c.l.b16 %v1051
        %v1147 = vunpack.c.l.b16 %v1052
        %v1148 = vunpack.c.h.b16 %v1052
        %v1149 = vunpack.c.l.b16 %v1053
        %v1150 = vunpack.c.l.b16 %v1054
        %v1151 = vunpack.c.h.b16 %v1054
        %v1152 = vunpack.c.l.b16 %v1055
        %v1153 = vpack.c.b16 %v1108, %v1105
        %v1154 = vpack.c.b16 %v1109, %v1106
        %v1155 = vpack.c.b16 %v1110, %v1107
        %v1156 = vpack.c.b16 %v1114, %v1111
        %v1157 = vpack.c.b16 %v1115, %v1112
        %v1158 = vpack.c.b16 %v1116, %v1113
        %v1159 = vpack.c.b16 %v1120, %v1117
        %v1160 = vpack.c.b16 %v1121, %v1118
        %v1161 = vpack.c.b16 %v1122, %v1119
        %v1162 = vpack.c.b16 %v1126, %v1123
        %v1163 = vpack.c.b16 %v1127, %v1124
        %v1164 = vpack.c.b16 %v1128, %v1125
        %v1165 = vpack.c.b16 %v1132, %v1129
        %v1166 = vpack.c.b16 %v1133, %v1130
        %v1167 = vpack.c.b16 %v1134, %v1131
        %v1168 = vpack.c.b16 %v1138, %v1135
        %v1169 = vpack.c.b16 %v1139, %v1136
        %v1170 = vpack.c.b16 %v1140, %v1137
        %v1171 = vpack.c.b16 %v1144, %v1141
        %v1172 = vpack.c.b16 %v1145, %v1142
        %v1173 = vpack.c.b16 %v1146, %v1143
        %v1174 = vpack.c.b16 %v1150, %v1147
        %v1175 = vpack.c.b16 %v1151, %v1148
        %v1176 = vpack.c.b16 %v1152, %v1149
        %1201 = vmatprep.subr.bf16.mxu0 %v1154
        %1202 = vmatpush1.bf16.msra.mxu0 %v1153
        %1203 = vmatprep.subr.bf16.mxu0 %v1157
        %1204 = vmatpush1.bf16.msra.mxu0 %v1156
        %1205 = vmatprep.subr.bf16.mxu0 %v1160
        %1206 = vmatpush1.bf16.msra.mxu0 %v1159
        %1207 = vmatprep.subr.bf16.mxu0 %v1163
        %1208 = vmatpush1.bf16.msra.mxu0 %v1162
        %1209 = vmatprep.subr.bf16.mxu0 %v1166
        %1210 = vmatpush1.bf16.msra.mxu0 %v1165
        %1211 = vmatprep.subr.bf16.mxu0 %v1169
        %1212 = vmatpush1.bf16.msra.mxu0 %v1168
        %1213 = vmatprep.subr.bf16.mxu0 %v1172
        %1214 = vmatpush1.bf16.msra.mxu0 %v1171
        %1215 = vmatprep.subr.bf16.mxu0 %v1175
        %1216 = vmatpush1.bf16.msra.mxu0 %v1174
        %1217 = vmatprep.subr.bf16.mxu0 0
        %1218 = vmatpush1.bf16.msra.mxu0 0
        %1219 = vmatprep.subr.bf16.mxu0 0
        %1220 = vmatpush1.bf16.msra.mxu0 0
        %1221 = vmatprep.subr.bf16.mxu0 0
        %1222 = vmatpush1.bf16.msra.mxu0 0
        %1223 = vmatprep.subr.bf16.mxu0 0
        %1224 = vmatpush1.bf16.msra.mxu0 0
        %1225 = vmatprep.subr.bf16.mxu0 0
        %1226 = vmatpush1.bf16.msra.mxu0 0
        %1227 = vmatprep.subr.bf16.mxu0 0
        %1228 = vmatpush1.bf16.msra.mxu0 0
        %1229 = vmatprep.subr.bf16.mxu0 0
        %1230 = vmatpush1.bf16.msra.mxu0 0
        %1231 = vmatprep.subr.bf16.mxu0 0
        %1232 = vmatpush1.bf16.msra.mxu0 0
        %1233 = vmatprep.mubr.bf16.mxu0 0
        %1234 = vmatmul.mubr.bf16.gmra.mrb[0].mxu0 %v1020
        %v1235 = vpop.f32.mrb[0].mxu0
        %v1236 = vadd.f32 %v1061, %v1235
        %v1237 = vpop.f32.mrb[0].mxu0
        %v1238 = vadd.f32 %v1065, %v1237
        %v1239 = vpop.f32.mrb[0].mxu0
        %v1240 = vadd.f32 %v1061, %v1239
        %v1241 = vpop.f32.mrb[0].mxu0
        %v1242 = vadd.f32 %v1065, %v1241
        %1243 = vmatprep.mubr.bf16.mxu0 0
        %1244 = vmatmul.mubr.bf16.gmra.mrb[0].mxu0 %v1021
        %v1245 = vpop.f32.mrb[0].mxu0
        %v1246 = vadd.f32 %v1061, %v1245
        %v1247 = vpop.f32.mrb[0].mxu0
        %v1248 = vadd.f32 %v1065, %v1247
        %v1249 = vpop.f32.mrb[0].mxu0
        %v1250 = vadd.f32 %v1061, %v1249
        %v1251 = vpop.f32.mrb[0].mxu0
        %v1252 = vadd.f32 %v1065, %v1251
        %1253 = vmatprep.mubr.bf16.mxu0 0
        %1254 = vmatmul.mubr.bf16.gmra.mrb[0].mxu0 %v1022
        %v1255 = vpop.f32.mrb[0].mxu0
        %v1256 = vadd.f32 %v1061, %v1255
        %v1257 = vpop.f32.mrb[0].mxu0
        %v1258 = vadd.f32 %v1065, %v1257
        %v1259 = vpop.f32.mrb[0].mxu0
        %v1260 = vadd.f32 %v1061, %v1259
        %v1261 = vpop.f32.mrb[0].mxu0
        %v1262 = vadd.f32 %v1065, %v1261
        %1263 = vmatprep.mubr.bf16.mxu0 0
        %1264 = vmatmul.mubr.bf16.gmra.mrb[0].mxu0 %v1023
        %v1265 = vpop.f32.mrb[0].mxu0
        %v1266 = vadd.f32 %v1061, %v1265
        %v1267 = vpop.f32.mrb[0].mxu0
        %v1268 = vadd.f32 %v1065, %v1267
        %v1269 = vpop.f32.mrb[0].mxu0
        %v1270 = vadd.f32 %v1061, %v1269
        %v1271 = vpop.f32.mrb[0].mxu0
        %v1272 = vadd.f32 %v1065, %v1271
        %1273 = vdwg.mxu0
        %1274 = vmatprep.subr.bf16.mxu0 0
        %1275 = vmatpush1.bf16.msra.mxu0 %v1155
        %1276 = vmatprep.subr.bf16.mxu0 0
        %1277 = vmatpush1.bf16.msra.mxu0 %v1158
        %1278 = vmatprep.subr.bf16.mxu0 0
        %1279 = vmatpush1.bf16.msra.mxu0 %v1161
        %1280 = vmatprep.subr.bf16.mxu0 0
        %1281 = vmatpush1.bf16.msra.mxu0 %v1164
        %1282 = vmatprep.subr.bf16.mxu0 0
        %1283 = vmatpush1.bf16.msra.mxu0 %v1167
        %1284 = vmatprep.subr.bf16.mxu0 0
        %1285 = vmatpush1.bf16.msra.mxu0 %v1170
        %1286 = vmatprep.subr.bf16.mxu0 0
        %1287 = vmatpush1.bf16.msra.mxu0 %v1173
        %1288 = vmatprep.subr.bf16.mxu0 0
        %1289 = vmatpush1.bf16.msra.mxu0 %v1176
        %1290 = vmatprep.subr.bf16.mxu0 0
        %1291 = vmatpush1.bf16.msra.mxu0 0
        %1292 = vmatprep.subr.bf16.mxu0 0
        %1293 = vmatpush1.bf16.msra.mxu0 0
        %1294 = vmatprep.subr.bf16.mxu0 0
        %1295 = vmatpush1.bf16.msra.mxu0 0
        %1296 = vmatprep.subr.bf16.mxu0 0
        %1297 = vmatpush1.bf16.msra.mxu0 0
        %1298 = vmatprep.subr.bf16.mxu0 0
        %1299 = vmatpush1.bf16.msra.mxu0 0
        %1300 = vmatprep.subr.bf16.mxu0 0
        %1301 = vmatpush1.bf16.msra.mxu0 0
        %1302 = vmatprep.subr.bf16.mxu0 0
        %1303 = vmatpush1.bf16.msra.mxu0 0
        %1304 = vmatprep.subr.bf16.mxu0 0
        %1305 = vmatpush1.bf16.msra.mxu0 0
        %1306 = vmatprep.mubr.bf16.mxu0 0
        %1307 = vmatmul.mubr.bf16.gmra.mrb[0].mxu0 %v1020
        %v1308 = vpop.f32.mrb[0].mxu0
        %v1309 = vadd.f32 %v1069, %v1308
        %v1310 = vpop.f32.mrb[0].mxu0
        %v1311 = vpop.f32.mrb[0].mxu0
        %v1312 = vadd.f32 %v1069, %v1311
        %v1313 = vpop.f32.mrb[0].mxu0
        %1314 = vmatprep.mubr.bf16.mxu0 0
        %1315 = vmatmul.mubr.bf16.gmra.mrb[0].mxu0 %v1021
        %v1316 = vpop.f32.mrb[0].mxu0
        %v1317 = vadd.f32 %v1069, %v1316
        %v1318 = vpop.f32.mrb[0].mxu0
        %v1319 = vpop.f32.mrb[0].mxu0
        %v1320 = vadd.f32 %v1069, %v1319
        %v1321 = vpop.f32.mrb[0].mxu0
        %1322 = vmatprep.mubr.bf16.mxu0 0
        %1323 = vmatmul.mubr.bf16.gmra.mrb[0].mxu0 %v1022
        %v1324 = vpop.f32.mrb[0].mxu0
        %v1325 = vadd.f32 %v1069, %v1324
        %v1326 = vpop.f32.mrb[0].mxu0
        %v1327 = vpop.f32.mrb[0].mxu0
        %v1328 = vadd.f32 %v1069, %v1327
        %v1329 = vpop.f32.mrb[0].mxu0
        %1330 = vmatprep.mubr.bf16.mxu0 0
        %1331 = vmatmul.mubr.bf16.gmra.mrb[0].mxu0 %v1023
        %v1332 = vpop.f32.mrb[0].mxu0
        %v1333 = vadd.f32 %v1069, %v1332
        %v1334 = vpop.f32.mrb[0].mxu0
        %v1335 = vpop.f32.mrb[0].mxu0
        %v1336 = vadd.f32 %v1069, %v1335
        %v1337 = vpop.f32.mrb[0].mxu0
        %1338 = vdwg.mxu0
        %v1339 = vpack.c.bf16 %v1240, %v1236
        %v1340 = vpack.c.bf16 %v1250, %v1246
        %v1341 = vpack.c.bf16 %v1260, %v1256
        %v1342 = vpack.c.bf16 %v1270, %v1266
        %v1343 = vpack.c.bf16 %v1242, %v1238
        %v1344 = vpack.c.bf16 %v1252, %v1248
        %v1345 = vpack.c.bf16 %v1262, %v1258
        %v1346 = vpack.c.bf16 %v1272, %v1268
        %v1347 = vpack.c.bf16 %v1312, %v1309
        %v1348 = vpack.c.bf16 %v1320, %v1317
        %v1349 = vpack.c.bf16 %v1328, %v1325
        %v1350 = vpack.c.bf16 %v1336, %v1333
        %1351 = vmatprep.subr.bf16.mxu0 0
        %1352 = vmatpush1.bf16.xpose.msra.mxu0 %v1343
        %1353 = vmatprep.subr.bf16.mxu0 0
        %1354 = vmatpush1.bf16.xpose.msra.mxu0 %v1344
        %1355 = vmatprep.subr.bf16.mxu0 0
        %1356 = vmatpush1.bf16.xpose.msra.mxu0 %v1345
        %1357 = vmatprep.subr.bf16.mxu0 0
        %1358 = vmatpush1.bf16.xpose.msra.mxu0 %v1346
        %1359 = vmatprep.subr.bf16.mxu0 0
        %1360 = vmatpush1.bf16.xpose.msra.mxu0 0
        %1361 = vmatprep.subr.bf16.mxu0 0
        %1362 = vmatpush1.bf16.xpose.msra.mxu0 0
        %1363 = vmatprep.subr.bf16.mxu0 0
        %1364 = vmatpush1.bf16.xpose.msra.mxu0 0
        %1365 = vmatprep.subr.bf16.mxu0 0
        %1366 = vmatpush1.bf16.xpose.msra.mxu0 0
        %1367 = vmatprep.subr.bf16.mxu0 0
        %1368 = vmatpush1.bf16.xpose.msra.mxu0 0
        %1369 = vmatprep.subr.bf16.mxu0 0
        %1370 = vmatpush1.bf16.xpose.msra.mxu0 0
        %1371 = vmatprep.subr.bf16.mxu0 0
        %1372 = vmatpush1.bf16.xpose.msra.mxu0 0
        %1373 = vmatprep.subr.bf16.mxu0 0
        %1374 = vmatpush1.bf16.xpose.msra.mxu0 0
        %1375 = vmatprep.subr.bf16.mxu0 0
        %1376 = vmatpush1.bf16.xpose.msra.mxu0 0
        %1377 = vmatprep.subr.bf16.mxu0 0
        %1378 = vmatpush1.bf16.xpose.msra.mxu0 0
        %1379 = vmatprep.subr.bf16.mxu0 0
        %1380 = vmatpush1.bf16.xpose.msra.mxu0 0
        %1381 = vmatprep.subr.bf16.mxu0 0
        %1382 = vmatpush1.bf16.xpose.msra.mxu0 0
        %1383 = vmatprep.mubr.bf16.mxu0 0
        %1384 = vmatmul.mubr.bf16.gmra.mrb[0].mxu0 %v1339
        %v1385 = vpop.f32.mrb[0].mxu0
        %v1386 = vadd.f32 0.0, %v1385
        %v1387 = vpop.f32.mrb[0].mxu0
        %v1388 = vpop.f32.mrb[0].mxu0
        %v1389 = vadd.f32 0.0, %v1388
        %v1390 = vpop.f32.mrb[0].mxu0
        %1391 = vmatprep.mubr.bf16.mxu0 0
        %1392 = vmatmul.mubr.bf16.gmra.mrb[0].mxu0 %v1340
        %v1393 = vpop.f32.mrb[0].mxu0
        %v1394 = vadd.f32 0.0, %v1393
        %v1395 = vpop.f32.mrb[0].mxu0
        %v1396 = vpop.f32.mrb[0].mxu0
        %v1397 = vadd.f32 0.0, %v1396
        %v1398 = vpop.f32.mrb[0].mxu0
        %1399 = vmatprep.mubr.bf16.mxu0 0
        %1400 = vmatmul.mubr.bf16.gmra.mrb[0].mxu0 %v1341
        %v1401 = vpop.f32.mrb[0].mxu0
        %v1402 = vadd.f32 0.0, %v1401
        %v1403 = vpop.f32.mrb[0].mxu0
        %v1404 = vpop.f32.mrb[0].mxu0
        %v1405 = vadd.f32 0.0, %v1404
        %v1406 = vpop.f32.mrb[0].mxu0
        %1407 = vmatprep.mubr.bf16.mxu0 0
        %1408 = vmatmul.mubr.bf16.gmra.mrb[0].mxu0 %v1342
        %v1409 = vpop.f32.mrb[0].mxu0
        %v1410 = vadd.f32 0.0, %v1409
        %v1411 = vpop.f32.mrb[0].mxu0
        %v1412 = vpop.f32.mrb[0].mxu0
        %v1413 = vadd.f32 0.0, %v1412
        %v1414 = vpop.f32.mrb[0].mxu0
        %1415 = vdwg.mxu0
        %vm1416 = vcmask 523264
        %v1417 = vsel %vm1416, %v1386, -inf
        %1418 = vmax.xlane.f32.xlu0 %v1417
        %v1419 = vpop.xlane.xlu0 %1418
        %v1420 = vsel %vm1416, %v1389, -inf
        %1421 = vmax.xlane.f32.xlu0 %v1420
        %v1422 = vpop.xlane.xlu0 %1421
        %v1423 = vsel %vm1416, %v1394, -inf
        %1424 = vmax.xlane.f32.xlu0 %v1423
        %v1425 = vpop.xlane.xlu0 %1424
        %v1426 = vsel %vm1416, %v1397, -inf
        %1427 = vmax.xlane.f32.xlu0 %v1426
        %v1428 = vpop.xlane.xlu0 %1427
        %v1429 = vsel %vm1416, %v1402, -inf
        %1430 = vmax.xlane.f32.xlu0 %v1429
        %v1431 = vpop.xlane.xlu0 %1430
        %v1432 = vsel %vm1416, %v1405, -inf
        %1433 = vmax.xlane.f32.xlu0 %v1432
        %v1434 = vpop.xlane.xlu0 %1433
        %v1435 = vsel %vm1416, %v1410, -inf
        %1436 = vmax.xlane.f32.xlu0 %v1435
        %v1437 = vpop.xlane.xlu0 %1436
        %v1438 = vsel %vm1416, %v1413, -inf
        %1439 = vmax.xlane.f32.xlu0 %v1438
        %v1440 = vpop.xlane.xlu0 %1439
        %v1441 = vsub.f32 %v1386, %v1419
        %v1442 = vsub.f32 %v1389, %v1422
        %v1443 = vsub.f32 %v1394, %v1425
        %v1444 = vsub.f32 %v1397, %v1428
        %v1445 = vsub.f32 %v1402, %v1431
        %v1446 = vsub.f32 %v1405, %v1434
        %v1447 = vsub.f32 %v1410, %v1437
        %v1448 = vsub.f32 %v1413, %v1440
        %v1449 = vmul.f32 %v1441, 1.442695
        %v1450 = vpow.pop %v1449
        %v1451 = vmul.f32 %v1442, 1.442695
        %v1452 = vpow.pop %v1451
        %v1453 = vmul.f32 %v1443, 1.442695
        %v1454 = vpow.pop %v1453
        %v1455 = vmul.f32 %v1444, 1.442695
        %v1456 = vpow.pop %v1455
        %v1457 = vmul.f32 %v1445, 1.442695
        %v1458 = vpow.pop %v1457
        %v1459 = vmul.f32 %v1446, 1.442695
        %v1460 = vpow.pop %v1459
        %v1461 = vmul.f32 %v1447, 1.442695
        %v1462 = vpow.pop %v1461
        %v1463 = vmul.f32 %v1448, 1.442695
        %v1464 = vpow.pop %v1463
        %v1465 = vsel %vm1416, %v1450, 0.0
        %1466 = vadd.xlane.f32.xlu0 %v1465
        %v1467 = vpop.xlane.xlu0 %1466
        %v1468 = vsel %vm1416, %v1452, 0.0
        %1469 = vadd.xlane.f32.xlu0 %v1468
        %v1470 = vpop.xlane.xlu0 %1469
        %v1471 = vsel %vm1416, %v1454, 0.0
        %1472 = vadd.xlane.f32.xlu0 %v1471
        %v1473 = vpop.xlane.xlu0 %1472
        %v1474 = vsel %vm1416, %v1456, 0.0
        %1475 = vadd.xlane.f32.xlu0 %v1474
        %v1476 = vpop.xlane.xlu0 %1475
        %v1477 = vsel %vm1416, %v1458, 0.0
        %1478 = vadd.xlane.f32.xlu0 %v1477
        %v1479 = vpop.xlane.xlu0 %1478
        %v1480 = vsel %vm1416, %v1460, 0.0
        %1481 = vadd.xlane.f32.xlu0 %v1480
        %v1482 = vpop.xlane.xlu0 %1481
        %v1483 = vsel %vm1416, %v1462, 0.0
        %1484 = vadd.xlane.f32.xlu0 %v1483
        %v1485 = vpop.xlane.xlu0 %1484
        %v1486 = vsel %vm1416, %v1464, 0.0
        %1487 = vadd.xlane.f32.xlu0 %v1486
        %v1488 = vpop.xlane.xlu0 %1487
        %v1489 = vrcp.pop %v1467
        %v1490 = vrcp.pop %v1470
        %v1491 = vrcp.pop %v1473
        %v1492 = vrcp.pop %v1476
        %v1493 = vrcp.pop %v1479
        %v1494 = vrcp.pop %v1482
        %v1495 = vrcp.pop %v1485
        %v1496 = vrcp.pop %v1488
        %v1497 = vmul.f32 %v1450, %v1489
        %v1498 = vmul.f32 %v1452, %v1490
        %v1499 = vmul.f32 %v1454, %v1491
        %v1500 = vmul.f32 %v1456, %v1492
        %v1501 = vmul.f32 %v1458, %v1493
        %v1502 = vmul.f32 %v1460, %v1494
        %v1503 = vmul.f32 %v1462, %v1495
        %v1504 = vmul.f32 %v1464, %v1496
        %v1505 = vpack.c.bf16 %v1498, %v1497
        %v1506 = vpack.c.bf16 %v1500, %v1499
        %v1507 = vpack.c.bf16 %v1502, %v1501
        %v1508 = vpack.c.bf16 %v1504, %v1503
        %v1510 = vsel %vm1416, %v1505, 0
        %v1513 = vsel %vm1416, %v1506, 0
        %v1516 = vsel %vm1416, %v1507, 0
        %v1519 = vsel %vm1416, %v1508, 0
        %1521 = vmatprep.subr.bf16.mxu0 0
        %1522 = vmatpush1.bf16.msra.mxu0 %v1347
        %1523 = vmatprep.subr.bf16.mxu0 0
        %1524 = vmatpush1.bf16.msra.mxu0 %v1348
        %1525 = vmatprep.subr.bf16.mxu0 0
        %1526 = vmatpush1.bf16.msra.mxu0 %v1349
        %1527 = vmatprep.subr.bf16.mxu0 0
        %1528 = vmatpush1.bf16.msra.mxu0 %v1350
        %1529 = vmatprep.subr.bf16.mxu0 0
        %1530 = vmatpush1.bf16.msra.mxu0 0
        %1531 = vmatprep.subr.bf16.mxu0 0
        %1532 = vmatpush1.bf16.msra.mxu0 0
        %1533 = vmatprep.subr.bf16.mxu0 0
        %1534 = vmatpush1.bf16.msra.mxu0 0
        %1535 = vmatprep.subr.bf16.mxu0 0
        %1536 = vmatpush1.bf16.msra.mxu0 0
        %1537 = vmatprep.subr.bf16.mxu0 0
        %1538 = vmatpush1.bf16.msra.mxu0 0
        %1539 = vmatprep.subr.bf16.mxu0 0
        %1540 = vmatpush1.bf16.msra.mxu0 0
        %1541 = vmatprep.subr.bf16.mxu0 0
        %1542 = vmatpush1.bf16.msra.mxu0 0
        %1543 = vmatprep.subr.bf16.mxu0 0
        %1544 = vmatpush1.bf16.msra.mxu0 0
        %1545 = vmatprep.subr.bf16.mxu0 0
        %1546 = vmatpush1.bf16.msra.mxu0 0
        %1547 = vmatprep.subr.bf16.mxu0 0
        %1548 = vmatpush1.bf16.msra.mxu0 0
        %1549 = vmatprep.subr.bf16.mxu0 0
        %1550 = vmatpush1.bf16.msra.mxu0 0
        %1551 = vmatprep.subr.bf16.mxu0 0
        %1552 = vmatpush1.bf16.msra.mxu0 0
        %1553 = vmatprep.mubr.bf16.mxu0 0
        %1554 = vmatmul.mubr.bf16.gmra.mrb[0].mxu0 %v1510
        %v1555 = vpop.f32.mrb[0].mxu0
        %v1556 = vadd.f32 0.0, %v1555
        %v1557 = vpop.f32.mrb[0].mxu0
        %v1558 = vpop.f32.mrb[0].mxu0
        %v1559 = vadd.f32 0.0, %v1558
        %v1560 = vpop.f32.mrb[0].mxu0
        %1561 = vmatprep.mubr.bf16.mxu0 0
        %1562 = vmatmul.mubr.bf16.gmra.mrb[0].mxu0 %v1513
        %v1563 = vpop.f32.mrb[0].mxu0
        %v1564 = vadd.f32 0.0, %v1563
        %v1565 = vpop.f32.mrb[0].mxu0
        %v1566 = vpop.f32.mrb[0].mxu0
        %v1567 = vadd.f32 0.0, %v1566
        %v1568 = vpop.f32.mrb[0].mxu0
        %1569 = vmatprep.mubr.bf16.mxu0 0
        %1570 = vmatmul.mubr.bf16.gmra.mrb[0].mxu0 %v1516
        %v1571 = vpop.f32.mrb[0].mxu0
        %v1572 = vadd.f32 0.0, %v1571
        %v1573 = vpop.f32.mrb[0].mxu0
        %v1574 = vpop.f32.mrb[0].mxu0
        %v1575 = vadd.f32 0.0, %v1574
        %v1576 = vpop.f32.mrb[0].mxu0
        %1577 = vmatprep.mubr.bf16.mxu0 0
        %1578 = vmatmul.mubr.bf16.gmra.mrb[0].mxu0 %v1519
        %v1579 = vpop.f32.mrb[0].mxu0
        %v1580 = vadd.f32 0.0, %v1579
        %v1581 = vpop.f32.mrb[0].mxu0
        %v1582 = vpop.f32.mrb[0].mxu0
        %v1583 = vadd.f32 0.0, %v1582
        %v1584 = vpop.f32.mrb[0].mxu0
        %1585 = vdwg.mxu0
        %v1586 = vpack.c.bf16 %v1559, %v1556
        %v1587 = vpack.c.bf16 %v1567, %v1564
        %v1588 = vpack.c.bf16 %v1575, %v1572
        %v1589 = vpack.c.bf16 %v1583, %v1580
        %v1590 = vld [vmem:[#allocation8] sm:$0xf]
        %v1591 = vld [vmem:[#allocation8 + $0x4] sm:$0xf]
        %v1592 = vld [vmem:[#allocation8 + $0x8] sm:$0xf]
        %v1593 = vld [vmem:[#allocation8 + $0xc] sm:$0xf]
        %v1594 = vld [vmem:[#allocation8 + $0x10] sm:$0xf]
        %v1595 = vld [vmem:[#allocation8 + $0x14] sm:$0xf]
        %v1596 = vld [vmem:[#allocation8 + $0x18] sm:$0xf]
        %v1597 = vld [vmem:[#allocation8 + $0x1c] sm:$0xf]
        %v1598 = vld [vmem:[#allocation8 + $0x20] sm:$0xf]
        %v1599 = vld [vmem:[#allocation8 + $0x24] sm:$0xf]
        %v1600 = vld [vmem:[#allocation8 + $0x28] sm:$0xf]
        %v1601 = vld [vmem:[#allocation8 + $0x2c] sm:$0xf]
        %v1602 = vld [vmem:[#allocation8 + $0x30] sm:$0xf]
        %v1603 = vld [vmem:[#allocation8 + $0x34] sm:$0xf]
        %v1604 = vld [vmem:[#allocation8 + $0x38] sm:$0xf]
        %v1605 = vld [vmem:[#allocation8 + $0x3c] sm:$0xf]
        %v1606 = vld [vmem:[#allocation10] sm:$0x1]
        %v1608 = vlaneseq
        %v1609 = vshrl.u32 %v1608, 7
        %v1610 = vsub.s32 0, %v1609
        %v1611 = vrot.slane %v1606, %v1610
        %v1629 = vunpack.c.l.b16 %v1590
        %v1630 = vunpack.c.l.b16 %v1591
        %v1631 = vunpack.c.l.b16 %v1592
        %v1632 = vunpack.c.l.b16 %v1593
        %v1633 = vunpack.c.l.b16 %v1594
        %v1634 = vunpack.c.l.b16 %v1595
        %v1635 = vunpack.c.l.b16 %v1596
        %v1636 = vunpack.c.l.b16 %v1597
        %v1637 = vunpack.c.l.b16 %v1598
        %v1638 = vunpack.c.l.b16 %v1599
        %v1639 = vunpack.c.l.b16 %v1600
        %v1640 = vunpack.c.l.b16 %v1601
        %v1641 = vunpack.c.l.b16 %v1602
        %v1642 = vunpack.c.l.b16 %v1603
        %v1643 = vunpack.c.l.b16 %v1604
        %v1644 = vunpack.c.l.b16 %v1605
        %v1645 = vpack.c.b16 %v1630, %v1629
        %v1646 = vpack.c.b16 %v1632, %v1631
        %v1647 = vpack.c.b16 %v1634, %v1633
        %v1648 = vpack.c.b16 %v1636, %v1635
        %v1649 = vpack.c.b16 %v1638, %v1637
        %v1650 = vpack.c.b16 %v1640, %v1639
        %v1651 = vpack.c.b16 %v1642, %v1641
        %v1652 = vpack.c.b16 %v1644, %v1643
        %1661 = vmatprep.subr.bf16.mxu0 0
        %1662 = vmatpush1.bf16.msra.mxu0 %v1645
        %1663 = vmatprep.subr.bf16.mxu0 0
        %1664 = vmatpush1.bf16.msra.mxu0 %v1646
        %1665 = vmatprep.subr.bf16.mxu0 0
        %1666 = vmatpush1.bf16.msra.mxu0 %v1647
        %1667 = vmatprep.subr.bf16.mxu0 0
        %1668 = vmatpush1.bf16.msra.mxu0 %v1648
        %1669 = vmatprep.subr.bf16.mxu0 0
        %1670 = vmatpush1.bf16.msra.mxu0 %v1649
        %1671 = vmatprep.subr.bf16.mxu0 0
        %1672 = vmatpush1.bf16.msra.mxu0 %v1650
        %1673 = vmatprep.subr.bf16.mxu0 0
        %1674 = vmatpush1.bf16.msra.mxu0 %v1651
        %1675 = vmatprep.subr.bf16.mxu0 0
        %1676 = vmatpush1.bf16.msra.mxu0 %v1652
        %1677 = vmatprep.subr.bf16.mxu0 0
        %1678 = vmatpush1.bf16.msra.mxu0 0
        %1679 = vmatprep.subr.bf16.mxu0 0
        %1680 = vmatpush1.bf16.msra.mxu0 0
        %1681 = vmatprep.subr.bf16.mxu0 0
        %1682 = vmatpush1.bf16.msra.mxu0 0
        %1683 = vmatprep.subr.bf16.mxu0 0
        %1684 = vmatpush1.bf16.msra.mxu0 0
        %1685 = vmatprep.subr.bf16.mxu0 0
        %1686 = vmatpush1.bf16.msra.mxu0 0
        %1687 = vmatprep.subr.bf16.mxu0 0
        %1688 = vmatpush1.bf16.msra.mxu0 0
        %1689 = vmatprep.subr.bf16.mxu0 0
        %1690 = vmatpush1.bf16.msra.mxu0 0
        %1691 = vmatprep.subr.bf16.mxu0 0
        %1692 = vmatpush1.bf16.msra.mxu0 0
        %1693 = vmatprep.mubr.bf16.mxu0 0
        %1694 = vmatmul.mubr.bf16.gmra.mrb[0].mxu0 %v1586
        %v1695 = vpop.f32.mrb[0].mxu0
        %v1696 = vadd.f32 %v1611, %v1695
        %v1697 = vpop.f32.mrb[0].mxu0
        %v1698 = vpop.f32.mrb[0].mxu0
        %v1699 = vadd.f32 %v1611, %v1698
        %v1700 = vpop.f32.mrb[0].mxu0
        %1701 = vmatprep.mubr.bf16.mxu0 0
        %1702 = vmatmul.mubr.bf16.gmra.mrb[0].mxu0 %v1587
        %v1703 = vpop.f32.mrb[0].mxu0
        %v1704 = vadd.f32 %v1611, %v1703
        %v1705 = vpop.f32.mrb[0].mxu0
        %v1706 = vpop.f32.mrb[0].mxu0
        %v1707 = vadd.f32 %v1611, %v1706
        %v1708 = vpop.f32.mrb[0].mxu0
        %1709 = vmatprep.mubr.bf16.mxu0 0
        %1710 = vmatmul.mubr.bf16.gmra.mrb[0].mxu0 %v1588
        %v1711 = vpop.f32.mrb[0].mxu0
        %v1712 = vadd.f32 %v1611, %v1711
        %v1713 = vpop.f32.mrb[0].mxu0
        %v1714 = vpop.f32.mrb[0].mxu0
        %v1715 = vadd.f32 %v1611, %v1714
        %v1716 = vpop.f32.mrb[0].mxu0
        %1717 = vmatprep.mubr.bf16.mxu0 0
        %1718 = vmatmul.mubr.bf16.gmra.mrb[0].mxu0 %v1589
        %v1719 = vpop.f32.mrb[0].mxu0
        %v1720 = vadd.f32 %v1611, %v1719
        %v1721 = vpop.f32.mrb[0].mxu0
        %v1722 = vpop.f32.mrb[0].mxu0
        %v1723 = vadd.f32 %v1611, %v1722
        %v1724 = vpop.f32.mrb[0].mxu0
        %1725 = vdwg.mxu0
        %v1726 = vadd.f32 %v876, %v1696
        %v1727 = vadd.f32 %v877, %v1699
        %v1728 = vadd.f32 %v878, %v1704
        %v1729 = vadd.f32 %v879, %v1707
        %v1730 = vadd.f32 %v880, %v1712
        %v1731 = vadd.f32 %v881, %v1715
        %v1732 = vadd.f32 %v882, %v1720
        %v1733 = vadd.f32 %v883, %v1723
        %1734 = vadd.xlane.f32.xlu0 %v1726
        %v1735 = vpop.xlane.xlu0 %1734
        %1736 = vadd.xlane.f32.xlu0 %v1727
        %v1737 = vpop.xlane.xlu0 %1736
        %1738 = vadd.xlane.f32.xlu0 %v1728
        %v1739 = vpop.xlane.xlu0 %1738
        %1740 = vadd.xlane.f32.xlu0 %v1729
        %v1741 = vpop.xlane.xlu0 %1740
        %1742 = vadd.xlane.f32.xlu0 %v1730
        %v1743 = vpop.xlane.xlu0 %1742
        %1744 = vadd.xlane.f32.xlu0 %v1731
        %v1745 = vpop.xlane.xlu0 %1744
        %1746 = vadd.xlane.f32.xlu0 %v1732
        %v1747 = vpop.xlane.xlu0 %1746
        %1748 = vadd.xlane.f32.xlu0 %v1733
        %v1749 = vpop.xlane.xlu0 %1748
        %v1750 = vmul.f32 %v1735, %v763
        %v1751 = vmul.f32 %v1737, %v763
        %v1752 = vmul.f32 %v1739, %v763
        %v1753 = vmul.f32 %v1741, %v763
        %v1754 = vmul.f32 %v1743, %v763
        %v1755 = vmul.f32 %v1745, %v763
        %v1756 = vmul.f32 %v1747, %v763
        %v1757 = vmul.f32 %v1749, %v763
        %v1758 = vmul.f32 %v1726, %v1726
        %v1759 = vmul.f32 %v1727, %v1727
        %v1760 = vmul.f32 %v1728, %v1728
        %v1761 = vmul.f32 %v1729, %v1729
        %v1762 = vmul.f32 %v1730, %v1730
        %v1763 = vmul.f32 %v1731, %v1731
        %v1764 = vmul.f32 %v1732, %v1732
        %v1765 = vmul.f32 %v1733, %v1733
        %1766 = vadd.xlane.f32.xlu0 %v1758
        %v1767 = vpop.xlane.xlu0 %1766
        %1768 = vadd.xlane.f32.xlu0 %v1759
        %v1769 = vpop.xlane.xlu0 %1768
        %1770 = vadd.xlane.f32.xlu0 %v1760
        %v1771 = vpop.xlane.xlu0 %1770
        %1772 = vadd.xlane.f32.xlu0 %v1761
        %v1773 = vpop.xlane.xlu0 %1772
        %1774 = vadd.xlane.f32.xlu0 %v1762
        %v1775 = vpop.xlane.xlu0 %1774
        %1776 = vadd.xlane.f32.xlu0 %v1763
        %v1777 = vpop.xlane.xlu0 %1776
        %1778 = vadd.xlane.f32.xlu0 %v1764
        %v1779 = vpop.xlane.xlu0 %1778
        %1780 = vadd.xlane.f32.xlu0 %v1765
        %v1781 = vpop.xlane.xlu0 %1780
        %v1782 = vmul.f32 %v1767, %v763
        %v1783 = vmul.f32 %v1769, %v763
        %v1784 = vmul.f32 %v1771, %v763
        %v1785 = vmul.f32 %v1773, %v763
        %v1786 = vmul.f32 %v1775, %v763
        %v1787 = vmul.f32 %v1777, %v763
        %v1788 = vmul.f32 %v1779, %v763
        %v1789 = vmul.f32 %v1781, %v763
        %v1790 = vmul.f32 %v1750, %v1750
        %v1791 = vmul.f32 %v1751, %v1751
        %v1792 = vmul.f32 %v1752, %v1752
        %v1793 = vmul.f32 %v1753, %v1753
        %v1794 = vmul.f32 %v1754, %v1754
        %v1795 = vmul.f32 %v1755, %v1755
        %v1796 = vmul.f32 %v1756, %v1756
        %v1797 = vmul.f32 %v1757, %v1757
        %v1798 = vsub.f32 %v1782, %v1790
        %v1799 = vsub.f32 %v1783, %v1791
        %v1800 = vsub.f32 %v1784, %v1792
        %v1801 = vsub.f32 %v1785, %v1793
        %v1802 = vsub.f32 %v1786, %v1794
        %v1803 = vsub.f32 %v1787, %v1795
        %v1804 = vsub.f32 %v1788, %v1796
        %v1805 = vsub.f32 %v1789, %v1797
        %v1806 = vmax.f32 %v1798, 0.0
        %v1807 = vmax.f32 %v1799, 0.0
        %v1808 = vmax.f32 %v1800, 0.0
        %v1809 = vmax.f32 %v1801, 0.0
        %v1810 = vmax.f32 %v1802, 0.0
        %v1811 = vmax.f32 %v1803, 0.0
        %v1812 = vmax.f32 %v1804, 0.0
        %v1813 = vmax.f32 %v1805, 0.0
        %v1814 = vsub.f32 %v1726, %v1750
        %v1815 = vsub.f32 %v1727, %v1751
        %v1816 = vsub.f32 %v1728, %v1752
        %v1817 = vsub.f32 %v1729, %v1753
        %v1818 = vsub.f32 %v1730, %v1754
        %v1819 = vsub.f32 %v1731, %v1755
        %v1820 = vsub.f32 %v1732, %v1756
        %v1821 = vsub.f32 %v1733, %v1757
        %v1822 = vadd.f32 %v1806, 1e-05
        %v1823 = vadd.f32 %v1807, 1e-05
        %v1824 = vadd.f32 %v1808, 1e-05
        %v1825 = vadd.f32 %v1809, 1e-05
        %v1826 = vadd.f32 %v1810, 1e-05
        %v1827 = vadd.f32 %v1811, 1e-05
        %v1828 = vadd.f32 %v1812, 1e-05
        %v1829 = vadd.f32 %v1813, 1e-05
        %v1830 = vrsqrt.pop %v1822
        %v1831 = vrsqrt.pop %v1823
        %v1832 = vrsqrt.pop %v1824
        %v1833 = vrsqrt.pop %v1825
        %v1834 = vrsqrt.pop %v1826
        %v1835 = vrsqrt.pop %v1827
        %v1836 = vrsqrt.pop %v1828
        %v1837 = vrsqrt.pop %v1829
        %v1838 = vmul.f32 %v1814, %v1830
        %v1839 = vmul.f32 %v1815, %v1831
        %v1840 = vmul.f32 %v1816, %v1832
        %v1841 = vmul.f32 %v1817, %v1833
        %v1842 = vmul.f32 %v1818, %v1834
        %v1843 = vmul.f32 %v1819, %v1835
        %v1844 = vmul.f32 %v1820, %v1836
        %v1845 = vmul.f32 %v1821, %v1837
        %v1846 = vlaneseq
        %v1847 = vshrl.u32 %v1846, 7
        %v1848 = vsub.s32 4, %v1847
        %v1849 = vrot.slane %v603, %v1848
        %v1850 = vmul.f32 %v1838, %v1849
        %v1851 = vmul.f32 %v1839, %v1849
        %v1852 = vmul.f32 %v1840, %v1849
        %v1853 = vmul.f32 %v1841, %v1849
        %v1854 = vmul.f32 %v1842, %v1849
        %v1855 = vmul.f32 %v1843, %v1849
        %v1856 = vmul.f32 %v1844, %v1849
        %v1857 = vmul.f32 %v1845, %v1849
        %v1858 = vlaneseq
        %v1859 = vshrl.u32 %v1858, 7
        %v1860 = vsub.s32 5, %v1859
        %v1861 = vrot.slane %v603, %v1860
        %v1862 = vadd.f32 %v1850, %v1861
        %v1863 = vadd.f32 %v1851, %v1861
        %v1864 = vadd.f32 %v1852, %v1861
        %v1865 = vadd.f32 %v1853, %v1861
        %v1866 = vadd.f32 %v1854, %v1861
        %v1867 = vadd.f32 %v1855, %v1861
        %v1868 = vadd.f32 %v1856, %v1861
        %v1869 = vadd.f32 %v1857, %v1861
        %v1870 = vpack.c.bf16 %v1863, %v1862
        %v1871 = vpack.c.bf16 %v1865, %v1864
        %v1872 = vpack.c.bf16 %v1867, %v1866
        %v1873 = vpack.c.bf16 %v1869, %v1868
        %v1874 = vld [vmem:[%s8] sm:$0xff]
        %v1875 = vld [vmem:[%s8 + $0x8] sm:$0xff]
        %v1876 = vld [vmem:[%s8 + $0x10] sm:$0xff]
        %v1877 = vld [vmem:[%s8 + $0x18] sm:$0xff]
        %v1878 = vld [vmem:[%s8 + $0x20] sm:$0xff]
        %v1879 = vld [vmem:[%s8 + $0x28] sm:$0xff]
        %v1880 = vld [vmem:[%s8 + $0x30] sm:$0xff]
        %v1881 = vld [vmem:[%s8 + $0x38] sm:$0xff]
        %v1882 = vld [vmem:[%s8 + $0x40] sm:$0xff]
        %v1883 = vld [vmem:[%s8 + $0x48] sm:$0xff]
        %v1884 = vld [vmem:[%s8 + $0x50] sm:$0xff]
        %v1885 = vld [vmem:[%s8 + $0x58] sm:$0xff]
        %v1886 = vld [vmem:[%s8 + $0x60] sm:$0xff]
        %v1887 = vld [vmem:[%s8 + $0x68] sm:$0xff]
        %v1888 = vld [vmem:[%s8 + $0x70] sm:$0xff]
        %v1889 = vld [vmem:[%s8 + $0x78] sm:$0xff]
        %v1890 = vld [vmem:[%s9] sm:$0x3]
        %v1892 = vlaneseq
        %v1893 = vshrl.u32 %v1892, 7
        %v1894 = vsub.s32 0, %v1893
        %v1895 = vrot.slane %v1890, %v1894
        %v1896 = vlaneseq
        %v1897 = vshrl.u32 %v1896, 7
        %v1898 = vsub.s32 1, %v1897
        %v1899 = vrot.slane %v1890, %v1898
        %v1918 = vunpack.c.l.b16 %v1874
        %v1919 = vunpack.c.h.b16 %v1874
        %v1920 = vunpack.c.l.b16 %v1875
        %v1921 = vunpack.c.h.b16 %v1875
        %v1922 = vunpack.c.l.b16 %v1876
        %v1923 = vunpack.c.h.b16 %v1876
        %v1924 = vunpack.c.l.b16 %v1877
        %v1925 = vunpack.c.h.b16 %v1877
        %v1926 = vunpack.c.l.b16 %v1878
        %v1927 = vunpack.c.h.b16 %v1878
        %v1928 = vunpack.c.l.b16 %v1879
        %v1929 = vunpack.c.h.b16 %v1879
        %v1930 = vunpack.c.l.b16 %v1880
        %v1931 = vunpack.c.h.b16 %v1880
        %v1932 = vunpack.c.l.b16 %v1881
        %v1933 = vunpack.c.h.b16 %v1881
        %v1934 = vunpack.c.l.b16 %v1882
        %v1935 = vunpack.c.h.b16 %v1882
        %v1936 = vunpack.c.l.b16 %v1883
        %v1937 = vunpack.c.h.b16 %v1883
        %v1938 = vunpack.c.l.b16 %v1884
        %v1939 = vunpack.c.h.b16 %v1884
        %v1940 = vunpack.c.l.b16 %v1885
        %v1941 = vunpack.c.h.b16 %v1885
        %v1942 = vunpack.c.l.b16 %v1886
        %v1943 = vunpack.c.h.b16 %v1886
        %v1944 = vunpack.c.l.b16 %v1887
        %v1945 = vunpack.c.h.b16 %v1887
        %v1946 = vunpack.c.l.b16 %v1888
        %v1947 = vunpack.c.h.b16 %v1888
        %v1948 = vunpack.c.l.b16 %v1889
        %v1949 = vunpack.c.h.b16 %v1889
        %v1950 = vpack.c.b16 %v1920, %v1918
        %v1951 = vpack.c.b16 %v1921, %v1919
        %v1952 = vpack.c.b16 %v1924, %v1922
        %v1953 = vpack.c.b16 %v1925, %v1923
        %v1954 = vpack.c.b16 %v1928, %v1926
        %v1955 = vpack.c.b16 %v1929, %v1927
        %v1956 = vpack.c.b16 %v1932, %v1930
        %v1957 = vpack.c.b16 %v1933, %v1931
        %v1958 = vpack.c.b16 %v1936, %v1934
        %v1959 = vpack.c.b16 %v1937, %v1935
        %v1960 = vpack.c.b16 %v1940, %v1938
        %v1961 = vpack.c.b16 %v1941, %v1939
        %v1962 = vpack.c.b16 %v1944, %v1942
        %v1963 = vpack.c.b16 %v1945, %v1943
        %v1964 = vpack.c.b16 %v1948, %v1946
        %v1965 = vpack.c.b16 %v1949, %v1947
        %1982 = vmatprep.subr.bf16.mxu0 %v1951
        %1983 = vmatpush1.bf16.msra.mxu0 %v1950
        %1984 = vmatprep.subr.bf16.mxu0 %v1953
        %1985 = vmatpush1.bf16.msra.mxu0 %v1952
        %1986 = vmatprep.subr.bf16.mxu0 %v1955
        %1987 = vmatpush1.bf16.msra.mxu0 %v1954
        %1988 = vmatprep.subr.bf16.mxu0 %v1957
        %1989 = vmatpush1.bf16.msra.mxu0 %v1956
        %1990 = vmatprep.subr.bf16.mxu0 %v1959
        %1991 = vmatpush1.bf16.msra.mxu0 %v1958
        %1992 = vmatprep.subr.bf16.mxu0 %v1961
        %1993 = vmatpush1.bf16.msra.mxu0 %v1960
        %1994 = vmatprep.subr.bf16.mxu0 %v1963
        %1995 = vmatpush1.bf16.msra.mxu0 %v1962
        %1996 = vmatprep.subr.bf16.mxu0 %v1965
        %1997 = vmatpush1.bf16.msra.mxu0 %v1964
        %1998 = vmatprep.subr.bf16.mxu0 0
        %1999 = vmatpush1.bf16.msra.mxu0 0
        %2000 = vmatprep.subr.bf16.mxu0 0
        %2001 = vmatpush1.bf16.msra.mxu0 0
        %2002 = vmatprep.subr.bf16.mxu0 0
        %2003 = vmatpush1.bf16.msra.mxu0 0
        %2004 = vmatprep.subr.bf16.mxu0 0
        %2005 = vmatpush1.bf16.msra.mxu0 0
        %2006 = vmatprep.subr.bf16.mxu0 0
        %2007 = vmatpush1.bf16.msra.mxu0 0
        %2008 = vmatprep.subr.bf16.mxu0 0
        %2009 = vmatpush1.bf16.msra.mxu0 0
        %2010 = vmatprep.subr.bf16.mxu0 0
        %2011 = vmatpush1.bf16.msra.mxu0 0
        %2012 = vmatprep.subr.bf16.mxu0 0
        %2013 = vmatpush1.bf16.msra.mxu0 0
        %2014 = vmatprep.mubr.bf16.mxu0 0
        %2015 = vmatmul.mubr.bf16.gmra.mrb[0].mxu0 %v1870
        %v2016 = vpop.f32.mrb[0].mxu0
        %v2017 = vadd.f32 %v1895, %v2016
        %v2018 = vpop.f32.mrb[0].mxu0
        %v2019 = vadd.f32 %v1899, %v2018
        %v2020 = vpop.f32.mrb[0].mxu0
        %v2021 = vadd.f32 %v1895, %v2020
        %v2022 = vpop.f32.mrb[0].mxu0
        %v2023 = vadd.f32 %v1899, %v2022
        %2024 = vmatprep.mubr.bf16.mxu0 0
        %2025 = vmatmul.mubr.bf16.gmra.mrb[0].mxu0 %v1871
        %v2026 = vpop.f32.mrb[0].mxu0
        %v2027 = vadd.f32 %v1895, %v2026
        %v2028 = vpop.f32.mrb[0].mxu0
        %v2029 = vadd.f32 %v1899, %v2028
        %v2030 = vpop.f32.mrb[0].mxu0
        %v2031 = vadd.f32 %v1895, %v2030
        %v2032 = vpop.f32.mrb[0].mxu0
        %v2033 = vadd.f32 %v1899, %v2032
        %2034 = vmatprep.mubr.bf16.mxu0 0
        %2035 = vmatmul.mubr.bf16.gmra.mrb[0].mxu0 %v1872
        %v2036 = vpop.f32.mrb[0].mxu0
        %v2037 = vadd.f32 %v1895, %v2036
        %v2038 = vpop.f32.mrb[0].mxu0
        %v2039 = vadd.f32 %v1899, %v2038
        %v2040 = vpop.f32.mrb[0].mxu0
        %v2041 = vadd.f32 %v1895, %v2040
        %v2042 = vpop.f32.mrb[0].mxu0
        %v2043 = vadd.f32 %v1899, %v2042
        %2044 = vmatprep.mubr.bf16.mxu0 0
        %2045 = vmatmul.mubr.bf16.gmra.mrb[0].mxu0 %v1873
        %v2046 = vpop.f32.mrb[0].mxu0
        %v2047 = vadd.f32 %v1895, %v2046
        %v2048 = vpop.f32.mrb[0].mxu0
        %v2049 = vadd.f32 %v1899, %v2048
        %v2050 = vpop.f32.mrb[0].mxu0
        %v2051 = vadd.f32 %v1895, %v2050
        %v2052 = vpop.f32.mrb[0].mxu0
        %v2053 = vadd.f32 %v1899, %v2052
        %2054 = vdwg.mxu0
        %v2055 = vmul.f32 %v2017, %v2017
        %v2056 = vmul.f32 %v2019, %v2019
        %v2057 = vmul.f32 %v2021, %v2021
        %v2058 = vmul.f32 %v2023, %v2023
        %v2059 = vmul.f32 %v2027, %v2027
        %v2060 = vmul.f32 %v2029, %v2029
        %v2061 = vmul.f32 %v2031, %v2031
        %v2062 = vmul.f32 %v2033, %v2033
        %v2063 = vmul.f32 %v2037, %v2037
        %v2064 = vmul.f32 %v2039, %v2039
        %v2065 = vmul.f32 %v2041, %v2041
        %v2066 = vmul.f32 %v2043, %v2043
        %v2067 = vmul.f32 %v2047, %v2047
        %v2068 = vmul.f32 %v2049, %v2049
        %v2069 = vmul.f32 %v2051, %v2051
        %v2070 = vmul.f32 %v2053, %v2053
        %v2071 = vmul.f32 %v2017, %v2055
        %v2072 = vmul.f32 %v2019, %v2056
        %v2073 = vmul.f32 %v2021, %v2057
        %v2074 = vmul.f32 %v2023, %v2058
        %v2075 = vmul.f32 %v2027, %v2059
        %v2076 = vmul.f32 %v2029, %v2060
        %v2077 = vmul.f32 %v2031, %v2061
        %v2078 = vmul.f32 %v2033, %v2062
        %v2079 = vmul.f32 %v2037, %v2063
        %v2080 = vmul.f32 %v2039, %v2064
        %v2081 = vmul.f32 %v2041, %v2065
        %v2082 = vmul.f32 %v2043, %v2066
        %v2083 = vmul.f32 %v2047, %v2067
        %v2084 = vmul.f32 %v2049, %v2068
        %v2085 = vmul.f32 %v2051, %v2069
        %v2086 = vmul.f32 %v2053, %v2070
        %v2087 = vmul.f32 %v2071, 0.044715
        %v2088 = vmul.f32 %v2072, 0.044715
        %v2089 = vmul.f32 %v2073, 0.044715
        %v2090 = vmul.f32 %v2074, 0.044715
        %v2091 = vmul.f32 %v2075, 0.044715
        %v2092 = vmul.f32 %v2076, 0.044715
        %v2093 = vmul.f32 %v2077, 0.044715
        %v2094 = vmul.f32 %v2078, 0.044715
        %v2095 = vmul.f32 %v2079, 0.044715
        %v2096 = vmul.f32 %v2080, 0.044715
        %v2097 = vmul.f32 %v2081, 0.044715
        %v2098 = vmul.f32 %v2082, 0.044715
        %v2099 = vmul.f32 %v2083, 0.044715
        %v2100 = vmul.f32 %v2084, 0.044715
        %v2101 = vmul.f32 %v2085, 0.044715
        %v2102 = vmul.f32 %v2086, 0.044715
        %v2103 = vadd.f32 %v2017, %v2087
        %v2104 = vadd.f32 %v2019, %v2088
        %v2105 = vadd.f32 %v2021, %v2089
        %v2106 = vadd.f32 %v2023, %v2090
        %v2107 = vadd.f32 %v2027, %v2091
        %v2108 = vadd.f32 %v2029, %v2092
        %v2109 = vadd.f32 %v2031, %v2093
        %v2110 = vadd.f32 %v2033, %v2094
        %v2111 = vadd.f32 %v2037, %v2095
        %v2112 = vadd.f32 %v2039, %v2096
        %v2113 = vadd.f32 %v2041, %v2097
        %v2114 = vadd.f32 %v2043, %v2098
        %v2115 = vadd.f32 %v2047, %v2099
        %v2116 = vadd.f32 %v2049, %v2100
        %v2117 = vadd.f32 %v2051, %v2101
        %v2118 = vadd.f32 %v2053, %v2102
        %v2119 = vmul.f32 %v2103, 0.7978846
        %v2120 = vmul.f32 %v2104, 0.7978846
        %v2121 = vmul.f32 %v2105, 0.7978846
        %v2122 = vmul.f32 %v2106, 0.7978846
        %v2123 = vmul.f32 %v2107, 0.7978846
        %v2124 = vmul.f32 %v2108, 0.7978846
        %v2125 = vmul.f32 %v2109, 0.7978846
        %v2126 = vmul.f32 %v2110, 0.7978846
        %v2127 = vmul.f32 %v2111, 0.7978846
        %v2128 = vmul.f32 %v2112, 0.7978846
        %v2129 = vmul.f32 %v2113, 0.7978846
        %v2130 = vmul.f32 %v2114, 0.7978846
        %v2131 = vmul.f32 %v2115, 0.7978846
        %v2132 = vmul.f32 %v2116, 0.7978846
        %v2133 = vmul.f32 %v2117, 0.7978846
        %v2134 = vmul.f32 %v2118, 0.7978846
        %v2135 = vtanh.pop %v2119
        %v2136 = vtanh.pop %v2120
        %v2137 = vtanh.pop %v2121
        %v2138 = vtanh.pop %v2122
        %v2139 = vtanh.pop %v2123
        %v2140 = vtanh.pop %v2124
        %v2141 = vtanh.pop %v2125
        %v2142 = vtanh.pop %v2126
        %v2143 = vtanh.pop %v2127
        %v2144 = vtanh.pop %v2128
        %v2145 = vtanh.pop %v2129
        %v2146 = vtanh.pop %v2130
        %v2147 = vtanh.pop %v2131
        %v2148 = vtanh.pop %v2132
        %v2149 = vtanh.pop %v2133
        %v2150 = vtanh.pop %v2134
        %v2151 = vadd.f32 %v2135, 1.0
        %v2152 = vadd.f32 %v2136, 1.0
        %v2153 = vadd.f32 %v2137, 1.0
        %v2154 = vadd.f32 %v2138, 1.0
        %v2155 = vadd.f32 %v2139, 1.0
        %v2156 = vadd.f32 %v2140, 1.0
        %v2157 = vadd.f32 %v2141, 1.0
        %v2158 = vadd.f32 %v2142, 1.0
        %v2159 = vadd.f32 %v2143, 1.0
        %v2160 = vadd.f32 %v2144, 1.0
        %v2161 = vadd.f32 %v2145, 1.0
        %v2162 = vadd.f32 %v2146, 1.0
        %v2163 = vadd.f32 %v2147, 1.0
        %v2164 = vadd.f32 %v2148, 1.0
        %v2165 = vadd.f32 %v2149, 1.0
        %v2166 = vadd.f32 %v2150, 1.0
        %v2167 = vmul.f32 %v2151, 0.5
        %v2168 = vmul.f32 %v2152, 0.5
        %v2169 = vmul.f32 %v2153, 0.5
        %v2170 = vmul.f32 %v2154, 0.5
        %v2171 = vmul.f32 %v2155, 0.5
        %v2172 = vmul.f32 %v2156, 0.5
        %v2173 = vmul.f32 %v2157, 0.5
        %v2174 = vmul.f32 %v2158, 0.5
        %v2175 = vmul.f32 %v2159, 0.5
        %v2176 = vmul.f32 %v2160, 0.5
        %v2177 = vmul.f32 %v2161, 0.5
        %v2178 = vmul.f32 %v2162, 0.5
        %v2179 = vmul.f32 %v2163, 0.5
        %v2180 = vmul.f32 %v2164, 0.5
        %v2181 = vmul.f32 %v2165, 0.5
        %v2182 = vmul.f32 %v2166, 0.5
        %v2183 = vmul.f32 %v2017, %v2167
        %v2184 = vmul.f32 %v2019, %v2168
        %v2185 = vmul.f32 %v2021, %v2169
        %v2186 = vmul.f32 %v2023, %v2170
        %v2187 = vmul.f32 %v2027, %v2171
        %v2188 = vmul.f32 %v2029, %v2172
        %v2189 = vmul.f32 %v2031, %v2173
        %v2190 = vmul.f32 %v2033, %v2174
        %v2191 = vmul.f32 %v2037, %v2175
        %v2192 = vmul.f32 %v2039, %v2176
        %v2193 = vmul.f32 %v2041, %v2177
        %v2194 = vmul.f32 %v2043, %v2178
        %v2195 = vmul.f32 %v2047, %v2179
        %v2196 = vmul.f32 %v2049, %v2180
        %v2197 = vmul.f32 %v2051, %v2181
        %v2198 = vmul.f32 %v2053, %v2182
        %v2199 = vpack.c.bf16 %v2185, %v2183
        %v2200 = vpack.c.bf16 %v2186, %v2184
        %v2201 = vpack.c.bf16 %v2189, %v2187
        %v2202 = vpack.c.bf16 %v2190, %v2188
        %v2203 = vpack.c.bf16 %v2193, %v2191
        %v2204 = vpack.c.bf16 %v2194, %v2192
        %v2205 = vpack.c.bf16 %v2197, %v2195
        %v2206 = vpack.c.bf16 %v2198, %v2196
        %v2207 = vld [vmem:[#allocation11] sm:$0xf]
        %v2208 = vld [vmem:[#allocation11 + $0x4] sm:$0xf]
        %v2209 = vld [vmem:[#allocation11 + $0x8] sm:$0xf]
        %v2210 = vld [vmem:[#allocation11 + $0xc] sm:$0xf]
        %v2211 = vld [vmem:[#allocation11 + $0x10] sm:$0xf]
        %v2212 = vld [vmem:[#allocation11 + $0x14] sm:$0xf]
        %v2213 = vld [vmem:[#allocation11 + $0x18] sm:$0xf]
        %v2214 = vld [vmem:[#allocation11 + $0x1c] sm:$0xf]
        %v2215 = vld [vmem:[#allocation11 + $0x20] sm:$0xf]
        %v2216 = vld [vmem:[#allocation11 + $0x24] sm:$0xf]
        %v2217 = vld [vmem:[#allocation11 + $0x28] sm:$0xf]
        %v2218 = vld [vmem:[#allocation11 + $0x2c] sm:$0xf]
        %v2219 = vld [vmem:[#allocation11 + $0x30] sm:$0xf]
        %v2220 = vld [vmem:[#allocation11 + $0x34] sm:$0xf]
        %v2221 = vld [vmem:[#allocation11 + $0x38] sm:$0xf]
        %v2222 = vld [vmem:[#allocation11 + $0x3c] sm:$0xf]
        %v2223 = vld [vmem:[#allocation11 + $0x40] sm:$0xf]
        %v2224 = vld [vmem:[#allocation11 + $0x44] sm:$0xf]
        %v2225 = vld [vmem:[#allocation11 + $0x48] sm:$0xf]
        %v2226 = vld [vmem:[#allocation11 + $0x4c] sm:$0xf]
        %v2227 = vld [vmem:[#allocation11 + $0x50] sm:$0xf]
        %v2228 = vld [vmem:[#allocation11 + $0x54] sm:$0xf]
        %v2229 = vld [vmem:[#allocation11 + $0x58] sm:$0xf]
        %v2230 = vld [vmem:[#allocation11 + $0x5c] sm:$0xf]
        %v2231 = vld [vmem:[#allocation11 + $0x60] sm:$0xf]
        %v2232 = vld [vmem:[#allocation11 + $0x64] sm:$0xf]
        %v2233 = vld [vmem:[#allocation11 + $0x68] sm:$0xf]
        %v2234 = vld [vmem:[#allocation11 + $0x6c] sm:$0xf]
        %v2235 = vld [vmem:[#allocation11 + $0x70] sm:$0xf]
        %v2236 = vld [vmem:[#allocation11 + $0x74] sm:$0xf]
        %v2237 = vld [vmem:[#allocation11 + $0x78] sm:$0xf]
        %v2238 = vld [vmem:[#allocation11 + $0x7c] sm:$0xf]
        %v2239 = vld [vmem:[%s11] sm:$0x1]
        %v2241 = vlaneseq
        %v2242 = vshrl.u32 %v2241, 7
        %v2243 = vsub.s32 0, %v2242
        %v2244 = vrot.slane %v2239, %v2243
        %v2278 = vunpack.c.l.b16 %v2207
        %v2279 = vunpack.c.l.b16 %v2208
        %v2280 = vunpack.c.l.b16 %v2209
        %v2281 = vunpack.c.l.b16 %v2210
        %v2282 = vunpack.c.l.b16 %v2211
        %v2283 = vunpack.c.l.b16 %v2212
        %v2284 = vunpack.c.l.b16 %v2213
        %v2285 = vunpack.c.l.b16 %v2214
        %v2286 = vunpack.c.l.b16 %v2215
        %v2287 = vunpack.c.l.b16 %v2216
        %v2288 = vunpack.c.l.b16 %v2217
        %v2289 = vunpack.c.l.b16 %v2218
        %v2290 = vunpack.c.l.b16 %v2219
        %v2291 = vunpack.c.l.b16 %v2220
        %v2292 = vunpack.c.l.b16 %v2221
        %v2293 = vunpack.c.l.b16 %v2222
        %v2294 = vunpack.c.l.b16 %v2223
        %v2295 = vunpack.c.l.b16 %v2224
        %v2296 = vunpack.c.l.b16 %v2225
        %v2297 = vunpack.c.l.b16 %v2226
        %v2298 = vunpack.c.l.b16 %v2227
        %v2299 = vunpack.c.l.b16 %v2228
        %v2300 = vunpack.c.l.b16 %v2229
        %v2301 = vunpack.c.l.b16 %v2230
        %v2302 = vunpack.c.l.b16 %v2231
        %v2303 = vunpack.c.l.b16 %v2232
        %v2304 = vunpack.c.l.b16 %v2233
        %v2305 = vunpack.c.l.b16 %v2234
        %v2306 = vunpack.c.l.b16 %v2235
        %v2307 = vunpack.c.l.b16 %v2236
        %v2308 = vunpack.c.l.b16 %v2237
        %v2309 = vunpack.c.l.b16 %v2238
        %v2310 = vpack.c.b16 %v2279, %v2278
        %v2311 = vpack.c.b16 %v2281, %v2280
        %v2312 = vpack.c.b16 %v2283, %v2282
        %v2313 = vpack.c.b16 %v2285, %v2284
        %v2314 = vpack.c.b16 %v2287, %v2286
        %v2315 = vpack.c.b16 %v2289, %v2288
        %v2316 = vpack.c.b16 %v2291, %v2290
        %v2317 = vpack.c.b16 %v2293, %v2292
        %v2318 = vpack.c.b16 %v2295, %v2294
        %v2319 = vpack.c.b16 %v2297, %v2296
        %v2320 = vpack.c.b16 %v2299, %v2298
        %v2321 = vpack.c.b16 %v2301, %v2300
        %v2322 = vpack.c.b16 %v2303, %v2302
        %v2323 = vpack.c.b16 %v2305, %v2304
        %v2324 = vpack.c.b16 %v2307, %v2306
        %v2325 = vpack.c.b16 %v2309, %v2308
        %2342 = vmatprep.subr.bf16.mxu0 0
        %2343 = vmatpush1.bf16.msra.mxu0 %v2310
        %2344 = vmatprep.subr.bf16.mxu0 0
        %2345 = vmatpush1.bf16.msra.mxu0 %v2311
        %2346 = vmatprep.subr.bf16.mxu0 0
        %2347 = vmatpush1.bf16.msra.mxu0 %v2312
        %2348 = vmatprep.subr.bf16.mxu0 0
        %2349 = vmatpush1.bf16.msra.mxu0 %v2313
        %2350 = vmatprep.subr.bf16.mxu0 0
        %2351 = vmatpush1.bf16.msra.mxu0 %v2314
        %2352 = vmatprep.subr.bf16.mxu0 0
        %2353 = vmatpush1.bf16.msra.mxu0 %v2315
        %2354 = vmatprep.subr.bf16.mxu0 0
        %2355 = vmatpush1.bf16.msra.mxu0 %v2316
        %2356 = vmatprep.subr.bf16.mxu0 0
        %2357 = vmatpush1.bf16.msra.mxu0 %v2317
        %2358 = vmatprep.subr.bf16.mxu0 0
        %2359 = vmatpush1.bf16.msra.mxu0 %v2318
        %2360 = vmatprep.subr.bf16.mxu0 0
        %2361 = vmatpush1.bf16.msra.mxu0 %v2319
        %2362 = vmatprep.subr.bf16.mxu0 0
        %2363 = vmatpush1.bf16.msra.mxu0 %v2320
        %2364 = vmatprep.subr.bf16.mxu0 0
        %2365 = vmatpush1.bf16.msra.mxu0 %v2321
        %2366 = vmatprep.subr.bf16.mxu0 0
        %2367 = vmatpush1.bf16.msra.mxu0 %v2322
        %2368 = vmatprep.subr.bf16.mxu0 0
        %2369 = vmatpush1.bf16.msra.mxu0 %v2323
        %2370 = vmatprep.subr.bf16.mxu0 0
        %2371 = vmatpush1.bf16.msra.mxu0 %v2324
        %2372 = vmatprep.subr.bf16.mxu0 0
        %2373 = vmatpush1.bf16.msra.mxu0 %v2325
        %2374 = vmatprep.mubr.bf16.mxu0 %v2200
        %2375 = vmatmul.mubr.bf16.gmra.mrb[0].mxu0 %v2199
        %v2376 = vpop.f32.mrb[0].mxu0
        %v2377 = vadd.f32 %v2244, %v2376
        %v2378 = vpop.f32.mrb[0].mxu0
        %v2379 = vpop.f32.mrb[0].mxu0
        %v2380 = vadd.f32 %v2244, %v2379
        %v2381 = vpop.f32.mrb[0].mxu0
        %2382 = vmatprep.mubr.bf16.mxu0 %v2202
        %2383 = vmatmul.mubr.bf16.gmra.mrb[0].mxu0 %v2201
        %v2384 = vpop.f32.mrb[0].mxu0
        %v2385 = vadd.f32 %v2244, %v2384
        %v2386 = vpop.f32.mrb[0].mxu0
        %v2387 = vpop.f32.mrb[0].mxu0
        %v2388 = vadd.f32 %v2244, %v2387
        %v2389 = vpop.f32.mrb[0].mxu0
        %2390 = vmatprep.mubr.bf16.mxu0 %v2204
        %2391 = vmatmul.mubr.bf16.gmra.mrb[0].mxu0 %v2203
        %v2392 = vpop.f32.mrb[0].mxu0
        %v2393 = vadd.f32 %v2244, %v2392
        %v2394 = vpop.f32.mrb[0].mxu0
        %v2395 = vpop.f32.mrb[0].mxu0
        %v2396 = vadd.f32 %v2244, %v2395
        %v2397 = vpop.f32.mrb[0].mxu0
        %2398 = vmatprep.mubr.bf16.mxu0 %v2206
        %2399 = vmatmul.mubr.bf16.gmra.mrb[0].mxu0 %v2205
        %v2400 = vpop.f32.mrb[0].mxu0
        %v2401 = vadd.f32 %v2244, %v2400
        %v2402 = vpop.f32.mrb[0].mxu0
        %v2403 = vpop.f32.mrb[0].mxu0
        %v2404 = vadd.f32 %v2244, %v2403
        %v2405 = vpop.f32.mrb[0].mxu0
        %2406 = vdwg.mxu0
        %v2407 = vadd.f32 %v1726, %v2377
        %v2408 = vadd.f32 %v1727, %v2380
        %v2409 = vadd.f32 %v1728, %v2385
        %v2410 = vadd.f32 %v1729, %v2388
        %v2411 = vadd.f32 %v1730, %v2393
        %v2412 = vadd.f32 %v1731, %v2396
        %v2413 = vadd.f32 %v1732, %v2401
        %v2414 = vadd.f32 %v1733, %v2404
        %2415 = vadd.xlane.f32.xlu0 %v2407
        %v2416 = vpop.xlane.xlu0 %2415
        %2417 = vadd.xlane.f32.xlu0 %v2408
        %v2418 = vpop.xlane.xlu0 %2417
        %2419 = vadd.xlane.f32.xlu0 %v2409
        %v2420 = vpop.xlane.xlu0 %2419
        %2421 = vadd.xlane.f32.xlu0 %v2410
        %v2422 = vpop.xlane.xlu0 %2421
        %2423 = vadd.xlane.f32.xlu0 %v2411
        %v2424 = vpop.xlane.xlu0 %2423
        %2425 = vadd.xlane.f32.xlu0 %v2412
        %v2426 = vpop.xlane.xlu0 %2425
        %2427 = vadd.xlane.f32.xlu0 %v2413
        %v2428 = vpop.xlane.xlu0 %2427
        %2429 = vadd.xlane.f32.xlu0 %v2414
        %v2430 = vpop.xlane.xlu0 %2429
        %v2431 = vmul.f32 %v2416, %v763
        %v2432 = vmul.f32 %v2418, %v763
        %v2433 = vmul.f32 %v2420, %v763
        %v2434 = vmul.f32 %v2422, %v763
        %v2435 = vmul.f32 %v2424, %v763
        %v2436 = vmul.f32 %v2426, %v763
        %v2437 = vmul.f32 %v2428, %v763
        %v2438 = vmul.f32 %v2430, %v763
        %v2439 = vmul.f32 %v2407, %v2407
        %v2440 = vmul.f32 %v2408, %v2408
        %v2441 = vmul.f32 %v2409, %v2409
        %v2442 = vmul.f32 %v2410, %v2410
        %v2443 = vmul.f32 %v2411, %v2411
        %v2444 = vmul.f32 %v2412, %v2412
        %v2445 = vmul.f32 %v2413, %v2413
        %v2446 = vmul.f32 %v2414, %v2414
        %2447 = vadd.xlane.f32.xlu0 %v2439
        %v2448 = vpop.xlane.xlu0 %2447
        %2449 = vadd.xlane.f32.xlu0 %v2440
        %v2450 = vpop.xlane.xlu0 %2449
        %2451 = vadd.xlane.f32.xlu0 %v2441
        %v2452 = vpop.xlane.xlu0 %2451
        %2453 = vadd.xlane.f32.xlu0 %v2442
        %v2454 = vpop.xlane.xlu0 %2453
        %2455 = vadd.xlane.f32.xlu0 %v2443
        %v2456 = vpop.xlane.xlu0 %2455
        %2457 = vadd.xlane.f32.xlu0 %v2444
        %v2458 = vpop.xlane.xlu0 %2457
        %2459 = vadd.xlane.f32.xlu0 %v2445
        %v2460 = vpop.xlane.xlu0 %2459
        %2461 = vadd.xlane.f32.xlu0 %v2446
        %v2462 = vpop.xlane.xlu0 %2461
        %v2463 = vmul.f32 %v2448, %v763
        %v2464 = vmul.f32 %v2450, %v763
        %v2465 = vmul.f32 %v2452, %v763
        %v2466 = vmul.f32 %v2454, %v763
        %v2467 = vmul.f32 %v2456, %v763
        %v2468 = vmul.f32 %v2458, %v763
        %v2469 = vmul.f32 %v2460, %v763
        %v2470 = vmul.f32 %v2462, %v763
        %v2471 = vmul.f32 %v2431, %v2431
        %v2472 = vmul.f32 %v2432, %v2432
        %v2473 = vmul.f32 %v2433, %v2433
        %v2474 = vmul.f32 %v2434, %v2434
        %v2475 = vmul.f32 %v2435, %v2435
        %v2476 = vmul.f32 %v2436, %v2436
        %v2477 = vmul.f32 %v2437, %v2437
        %v2478 = vmul.f32 %v2438, %v2438
        %v2479 = vsub.f32 %v2463, %v2471
        %v2480 = vsub.f32 %v2464, %v2472
        %v2481 = vsub.f32 %v2465, %v2473
        %v2482 = vsub.f32 %v2466, %v2474
        %v2483 = vsub.f32 %v2467, %v2475
        %v2484 = vsub.f32 %v2468, %v2476
        %v2485 = vsub.f32 %v2469, %v2477
        %v2486 = vsub.f32 %v2470, %v2478
        %v2487 = vmax.f32 %v2479, 0.0
        %v2488 = vmax.f32 %v2480, 0.0
        %v2489 = vmax.f32 %v2481, 0.0
        %v2490 = vmax.f32 %v2482, 0.0
        %v2491 = vmax.f32 %v2483, 0.0
        %v2492 = vmax.f32 %v2484, 0.0
        %v2493 = vmax.f32 %v2485, 0.0
        %v2494 = vmax.f32 %v2486, 0.0
        %v2495 = vsub.f32 %v2407, %v2431
        %v2496 = vsub.f32 %v2408, %v2432
        %v2497 = vsub.f32 %v2409, %v2433
        %v2498 = vsub.f32 %v2410, %v2434
        %v2499 = vsub.f32 %v2411, %v2435
        %v2500 = vsub.f32 %v2412, %v2436
        %v2501 = vsub.f32 %v2413, %v2437
        %v2502 = vsub.f32 %v2414, %v2438
        %v2503 = vadd.f32 %v2487, 1e-05
        %v2504 = vadd.f32 %v2488, 1e-05
        %v2505 = vadd.f32 %v2489, 1e-05
        %v2506 = vadd.f32 %v2490, 1e-05
        %v2507 = vadd.f32 %v2491, 1e-05
        %v2508 = vadd.f32 %v2492, 1e-05
        %v2509 = vadd.f32 %v2493, 1e-05
        %v2510 = vadd.f32 %v2494, 1e-05
        %v2511 = vrsqrt.pop %v2503
        %v2512 = vrsqrt.pop %v2504
        %v2513 = vrsqrt.pop %v2505
        %v2514 = vrsqrt.pop %v2506
        %v2515 = vrsqrt.pop %v2507
        %v2516 = vrsqrt.pop %v2508
        %v2517 = vrsqrt.pop %v2509
        %v2518 = vrsqrt.pop %v2510
        %v2519 = vmul.f32 %v2495, %v2511
        %v2520 = vmul.f32 %v2496, %v2512
        %v2521 = vmul.f32 %v2497, %v2513
        %v2522 = vmul.f32 %v2498, %v2514
        %v2523 = vmul.f32 %v2499, %v2515
        %v2524 = vmul.f32 %v2500, %v2516
        %v2525 = vmul.f32 %v2501, %v2517
        %v2526 = vmul.f32 %v2502, %v2518
        %v2527 = vlaneseq
        %v2528 = vshrl.u32 %v2527, 7
        %v2529 = vsub.s32 6, %v2528
        %v2530 = vrot.slane %v603, %v2529
        %v2531 = vmul.f32 %v2519, %v2530
        %v2532 = vmul.f32 %v2520, %v2530
        %v2533 = vmul.f32 %v2521, %v2530
        %v2534 = vmul.f32 %v2522, %v2530
        %v2535 = vmul.f32 %v2523, %v2530
        %v2536 = vmul.f32 %v2524, %v2530
        %v2537 = vmul.f32 %v2525, %v2530
        %v2538 = vmul.f32 %v2526, %v2530
        %v2539 = vlaneseq
        %v2540 = vshrl.u32 %v2539, 7
        %v2541 = vsub.s32 7, %v2540
        %v2542 = vrot.slane %v603, %v2541
        %v2543 = vadd.f32 %v2531, %v2542
        %v2544 = vadd.f32 %v2532, %v2542
        %v2545 = vadd.f32 %v2533, %v2542
        %v2546 = vadd.f32 %v2534, %v2542
        %v2547 = vadd.f32 %v2535, %v2542
        %v2548 = vadd.f32 %v2536, %v2542
        %v2549 = vadd.f32 %v2537, %v2542
        %v2550 = vadd.f32 %v2538, %v2542
        %v2551 = vpack.c.bf16 %v2544, %v2543
        %v2552 = vpack.c.bf16 %v2546, %v2545
        %v2553 = vpack.c.bf16 %v2548, %v2547
        %v2554 = vpack.c.bf16 %v2550, %v2549
        %v2559 = vunpack.c.l.b16 %v2551
        %v2560 = vunpack.c.h.b16 %v2551
        %v2561 = vunpack.c.l.b16 %v2552
        %v2562 = vunpack.c.h.b16 %v2552
        %v2563 = vunpack.c.l.b16 %v2553
        %v2564 = vunpack.c.h.b16 %v2553
        %v2565 = vunpack.c.l.b16 %v2554
        %v2566 = vunpack.c.h.b16 %v2554
        %v2567 = vpack.c.b16 %v2559, %v2559
        %v2568 = vpack.c.b16 %v2560, %v2560
        %v2569 = vpack.c.b16 %v2561, %v2561
        %v2570 = vpack.c.b16 %v2562, %v2562
        %v2571 = vpack.c.b16 %v2563, %v2563
        %v2572 = vpack.c.b16 %v2564, %v2564
        %v2573 = vpack.c.b16 %v2565, %v2565
        %v2574 = vpack.c.b16 %v2566, %v2566
        %2583 = vst [vmem:[%s589] sm:$0xf] %v2567
        %2584 = vst [vmem:[%s589 + $0x4] sm:$0xf] %v2568
        %2585 = vst [vmem:[%s589 + $0x8] sm:$0xf] %v2569
        %2586 = vst [vmem:[%s589 + $0xc] sm:$0xf] %v2570
        %2587 = vst [vmem:[%s589 + $0x10] sm:$0xf] %v2571
        %2588 = vst [vmem:[%s589 + $0x14] sm:$0xf] %v2572
        %2589 = vst [vmem:[%s589 + $0x18] sm:$0xf] %v2573
        %2590 = vst [vmem:[%s589 + $0x1c] sm:$0xf] %v2574
        %v2591 = vld [vmem:[#allocation13] sm:$0xf]
        %v2592 = vld [vmem:[#allocation13 + $0x4] sm:$0xf]
        %v2593 = vld [vmem:[#allocation13 + $0x8] sm:$0xf]
        %v2594 = vld [vmem:[#allocation13 + $0xc] sm:$0xf]
        %v2595 = vld [vmem:[#allocation13 + $0x10] sm:$0xf]
        %v2596 = vld [vmem:[#allocation13 + $0x14] sm:$0xf]
        %v2597 = vld [vmem:[#allocation13 + $0x18] sm:$0xf]
        %v2598 = vld [vmem:[#allocation13 + $0x1c] sm:$0xf]
        %v2599 = vld [vmem:[#allocation13 + $0x20] sm:$0xf]
        %v2600 = vld [vmem:[#allocation13 + $0x24] sm:$0xf]
        %v2601 = vld [vmem:[#allocation13 + $0x28] sm:$0xf]
        %v2602 = vld [vmem:[#allocation13 + $0x2c] sm:$0xf]
        %v2603 = vld [vmem:[#allocation13 + $0x30] sm:$0xf]
        %v2604 = vld [vmem:[#allocation13 + $0x34] sm:$0xf]
        %v2605 = vld [vmem:[#allocation13 + $0x38] sm:$0xf]
        %v2606 = vld [vmem:[#allocation13 + $0x3c] sm:$0xf]
        %v2607 = vld [vmem:[%s13] sm:$0x1]
        %v2609 = vlaneseq
        %v2610 = vshrl.u32 %v2609, 7
        %v2611 = vsub.s32 0, %v2610
        %v2612 = vrot.slane %v2607, %v2611
        %v2630 = vunpack.c.l.b16 %v2591
        %v2631 = vunpack.c.l.b16 %v2592
        %v2632 = vunpack.c.l.b16 %v2593
        %v2633 = vunpack.c.l.b16 %v2594
        %v2634 = vunpack.c.l.b16 %v2595
        %v2635 = vunpack.c.l.b16 %v2596
        %v2636 = vunpack.c.l.b16 %v2597
        %v2637 = vunpack.c.l.b16 %v2598
        %v2638 = vunpack.c.l.b16 %v2599
        %v2639 = vunpack.c.l.b16 %v2600
        %v2640 = vunpack.c.l.b16 %v2601
        %v2641 = vunpack.c.l.b16 %v2602
        %v2642 = vunpack.c.l.b16 %v2603
        %v2643 = vunpack.c.l.b16 %v2604
        %v2644 = vunpack.c.l.b16 %v2605
        %v2645 = vunpack.c.l.b16 %v2606
        %v2646 = vpack.c.b16 %v2631, %v2630
        %v2647 = vpack.c.b16 %v2633, %v2632
        %v2648 = vpack.c.b16 %v2635, %v2634
        %v2649 = vpack.c.b16 %v2637, %v2636
        %v2650 = vpack.c.b16 %v2639, %v2638
        %v2651 = vpack.c.b16 %v2641, %v2640
        %v2652 = vpack.c.b16 %v2643, %v2642
        %v2653 = vpack.c.b16 %v2645, %v2644
        %2662 = vmatprep.subr.bf16.mxu0 0
        %2663 = vmatpush1.bf16.msra.mxu0 %v2646
        %2664 = vmatprep.subr.bf16.mxu0 0
        %2665 = vmatpush1.bf16.msra.mxu0 %v2647
        %2666 = vmatprep.subr.bf16.mxu0 0
        %2667 = vmatpush1.bf16.msra.mxu0 %v2648
        %2668 = vmatprep.subr.bf16.mxu0 0
        %2669 = vmatpush1.bf16.msra.mxu0 %v2649
        %2670 = vmatprep.subr.bf16.mxu0 0
        %2671 = vmatpush1.bf16.msra.mxu0 %v2650
        %2672 = vmatprep.subr.bf16.mxu0 0
        %2673 = vmatpush1.bf16.msra.mxu0 %v2651
        %2674 = vmatprep.subr.bf16.mxu0 0
        %2675 = vmatpush1.bf16.msra.mxu0 %v2652
        %2676 = vmatprep.subr.bf16.mxu0 0
        %2677 = vmatpush1.bf16.msra.mxu0 %v2653
        %2678 = vmatprep.subr.bf16.mxu0 0
        %2679 = vmatpush1.bf16.msra.mxu0 0
        %2680 = vmatprep.subr.bf16.mxu0 0
        %2681 = vmatpush1.bf16.msra.mxu0 0
        %2682 = vmatprep.subr.bf16.mxu0 0
        %2683 = vmatpush1.bf16.msra.mxu0 0
        %2684 = vmatprep.subr.bf16.mxu0 0
        %2685 = vmatpush1.bf16.msra.mxu0 0
        %2686 = vmatprep.subr.bf16.mxu0 0
        %2687 = vmatpush1.bf16.msra.mxu0 0
        %2688 = vmatprep.subr.bf16.mxu0 0
        %2689 = vmatpush1.bf16.msra.mxu0 0
        %2690 = vmatprep.subr.bf16.mxu0 0
        %2691 = vmatpush1.bf16.msra.mxu0 0
        %2692 = vmatprep.subr.bf16.mxu0 0
        %2693 = vmatpush1.bf16.msra.mxu0 0
        %2694 = vmatprep.mubr.bf16.mxu0 0
        %2695 = vmatmul.mubr.bf16.gmra.mrb[0].mxu0 %v2551
        %v2696 = vpop.f32.mrb[0].mxu0
        %v2697 = vadd.f32 %v2612, %v2696
        %v2698 = vpop.f32.mrb[0].mxu0
        %v2699 = vpop.f32.mrb[0].mxu0
        %v2700 = vadd.f32 %v2612, %v2699
        %v2701 = vpop.f32.mrb[0].mxu0
        %2702 = vmatprep.mubr.bf16.mxu0 0
        %2703 = vmatmul.mubr.bf16.gmra.mrb[0].mxu0 %v2552
        %v2704 = vpop.f32.mrb[0].mxu0
        %v2705 = vadd.f32 %v2612, %v2704
        %v2706 = vpop.f32.mrb[0].mxu0
        %v2707 = vpop.f32.mrb[0].mxu0
        %v2708 = vadd.f32 %v2612, %v2707
        %v2709 = vpop.f32.mrb[0].mxu0
        %2710 = vmatprep.mubr.bf16.mxu0 0
        %2711 = vmatmul.mubr.bf16.gmra.mrb[0].mxu0 %v2553
        %v2712 = vpop.f32.mrb[0].mxu0
        %v2713 = vadd.f32 %v2612, %v2712
        %v2714 = vpop.f32.mrb[0].mxu0
        %v2715 = vpop.f32.mrb[0].mxu0
        %v2716 = vadd.f32 %v2612, %v2715
        %v2717 = vpop.f32.mrb[0].mxu0
        %2718 = vmatprep.mubr.bf16.mxu0 0
        %2719 = vmatmul.mubr.bf16.gmra.mrb[0].mxu0 %v2554
        %v2720 = vpop.f32.mrb[0].mxu0
        %v2721 = vadd.f32 %v2612, %v2720
        %v2722 = vpop.f32.mrb[0].mxu0
        %v2723 = vpop.f32.mrb[0].mxu0
        %v2724 = vadd.f32 %v2612, %v2723
        %v2725 = vpop.f32.mrb[0].mxu0
        %2726 = vdwg.mxu0
        %v2727 = vpack.c.bf16 %v2700, %v2697
        %v2728 = vpack.c.bf16 %v2708, %v2705
        %v2729 = vpack.c.bf16 %v2716, %v2713
        %v2730 = vpack.c.bf16 %v2724, %v2721
        %v2735 = vunpack.c.l.b16 %v2727
        %v2736 = vunpack.c.h.b16 %v2727
        %v2737 = vunpack.c.l.b16 %v2728
        %v2738 = vunpack.c.h.b16 %v2728
        %v2739 = vunpack.c.l.b16 %v2729
        %v2740 = vunpack.c.h.b16 %v2729
        %v2741 = vunpack.c.l.b16 %v2730
        %v2742 = vunpack.c.h.b16 %v2730
        %v2743 = vpack.c.b16 %v2735, %v2735
        %v2744 = vpack.c.b16 %v2736, %v2736
        %v2745 = vpack.c.b16 %v2737, %v2737
        %v2746 = vpack.c.b16 %v2738, %v2738
        %v2747 = vpack.c.b16 %v2739, %v2739
        %v2748 = vpack.c.b16 %v2740, %v2740
        %v2749 = vpack.c.b16 %v2741, %v2741
        %v2750 = vpack.c.b16 %v2742, %v2742
        %2759 = vst [vmem:[%s596] sm:$0xf] %v2743
        %2760 = vst [vmem:[%s596 + $0x4] sm:$0xf] %v2744
        %2761 = vst [vmem:[%s596 + $0x8] sm:$0xf] %v2745
        %2762 = vst [vmem:[%s596 + $0xc] sm:$0xf] %v2746
        %2763 = vst [vmem:[%s596 + $0x10] sm:$0xf] %v2747
        %2764 = vst [vmem:[%s596 + $0x14] sm:$0xf] %v2748
        %2765 = vst [vmem:[%s596 + $0x18] sm:$0xf] %v2749
        %2766 = vst [vmem:[%s596 + $0x1c] sm:$0xf] %v2750
        %s2767 = sand.u32 %s344, 1
        %s2768 = scalar_lea.sflag [#allocation4], %s2767
        %s2769 = sand.u32 %s344, 1
        %s2770 = smul.addr %s2769, 32
        %s2771 = scalar_lea.vmem [#allocation14], %s2770
        %s2772 = sand.u32 %s370, 1
        %s2773 = scalar_lea.sflag [#allocation16], %s2772
        %s2774 = sand.u32 %s370, 1
        %s2775 = smul.addr %s2774, 32
        %s2776 = scalar_lea.vmem [#allocation15], %s2775
        // Predicated region
        $region105: #{tpu_custom_call.1} parent=75 // pred_check
          %p2777 = pneg %p354
        $region106: #{tpu_custom_call.1} parent=75 // pred_check_branch
          %2779 = sbr.rel (%p2777) target = $region108
        $region107: #{tpu_custom_call.1} parent=75 // pred_region
          %s2781 = ssub.s32 512, 512
          %2782 = vsyncadd %s2768, %s2781
          %s2783 = smul.addr %s37, 8
          %s2784 = smul.addr %s2783, 64
          %s2785 = scalar_lea.hbm %s14, %s2784
          %s2786 = sshll.u32 %s2771, 4
          %s2787 = int_to_ptr.vmem [resolvable:$true] %s2786
          %2792 = dma.vmem_to_hbm [thread:$0]  %s2787, 512, %s2785, %s2768, 64, 64, 4
        $region108: #{tpu_custom_call.1} parent=75 // pred_fallthru
          _
        // Predicated region
        $region109: #{tpu_custom_call.1} parent=75 // pred_check
          %p2793 = pneg %p380
        $region110: #{tpu_custom_call.1} parent=75 // pred_check_branch
          %2795 = sbr.rel (%p2793) target = $region112
        $region111: #{tpu_custom_call.1} parent=75 // pred_region
          %s2797 = ssub.s32 512, 512
          %2798 = vsyncadd %s2773, %s2797
          %s2799 = smul.addr %s37, 8
          %s2800 = smul.addr %s2799, 64
          %s2801 = scalar_lea.hbm %s15, %s2800
          %s2802 = sshll.u32 %s2776, 4
          %s2803 = int_to_ptr.vmem [resolvable:$true] %s2802
          %2808 = dma.vmem_to_hbm [thread:$0]  %s2803, 512, %s2801, %s2773, 64, 64, 4
        $region112: #{tpu_custom_call.1} parent=75 // pred_fallthru
          _
      $region76: #{tpu_custom_call.1} parent=5 // pred_fallthru
        _
      %p2809 = scmp.le.s32.totalorder 2, %s32
      // Predicated region
      $region113: #{tpu_custom_call.1} parent=5 // pred_check
        %p2810 = pneg %p2809
      $region114: #{tpu_custom_call.1} parent=5 // pred_check_branch
        %2812 = sbr.rel (%p2810) target = $region116
      $region115: #{tpu_custom_call.1} parent=5 // pred_region
        %s2813 = ssub.s32 %s32, 2
        // Predicated region
        $region117: #{tpu_custom_call.1} parent=115 // pred_check
          %p2814 = pneg %p360
        $region118: #{tpu_custom_call.1} parent=115 // pred_check_branch
          %2816 = sbr.rel (%p2814) target = $region120
        $region119: #{tpu_custom_call.1} parent=115 // pred_region
          %s2817 = sand.u32 %s345, 1
          %s2818 = scalar_lea.sflag [#allocation4], %s2817
          %s2819 = sand.u32 %s345, 1
          %s2820 = smul.addr %s2819, 32
          %s2821 = scalar_lea.vmem [#allocation14], %s2820
          %2822 = dma.done %s2818, 512
        $region120: #{tpu_custom_call.1} parent=115 // pred_fallthru
          _
        // Predicated region
        $region121: #{tpu_custom_call.1} parent=115 // pred_check
          %p2823 = pneg %p386
        $region122: #{tpu_custom_call.1} parent=115 // pred_check_branch
          %2825 = sbr.rel (%p2823) target = $region124
        $region123: #{tpu_custom_call.1} parent=115 // pred_region
          %s2826 = sand.u32 %s371, 1
          %s2827 = scalar_lea.sflag [#allocation16], %s2826
          %s2828 = sand.u32 %s371, 1
          %s2829 = smul.addr %s2828, 32
          %s2830 = scalar_lea.vmem [#allocation15], %s2829
          %2831 = dma.done %s2827, 512
        $region124: #{tpu_custom_call.1} parent=115 // pred_fallthru
          _
      $region116: #{tpu_custom_call.1} parent=5 // pred_fallthru
        _
    $region6: #{tpu_custom_call.1} parent=1 // loop_footer
      %s36 = sadd.s32 1, %s32
    $region7: #{tpu_custom_call.1} parent=1 // loop_footer_branch
      %31 = sbr.rel target = $region3
    $region8: #{tpu_custom_call.1} parent=1 // loop_exit
      _
    %2832 = vsyncpa [#allocation3], 1
    %s2833 = scalar_lea.sflag [#allocation3], 1
    %2834 = vsyncpa %s2833, 1
    %2835 = vsyncpa [#allocation6], 1
    %2836 = vsyncpa [#allocation9], 1
    %2837 = vsyncpa [#allocation12], 1
    %2838 = vsyncpa [#allocation4], 1
    %s2839 = scalar_lea.sflag [#allocation4], 1
    %2840 = vsyncpa %s2839, 1
    %2841 = vsyncpa [#allocation16], 1
    %s2842 = scalar_lea.sflag [#allocation16], 1
    %2843 = vsyncpa %s2842, 1

</llo_original>
